<compile_context>
chip_gen: v7x
topology: tpu7x:2x2x1
jax: 0.10.0
libtpu: 0.0.40
codegen_flags: <defaults>
</compile_context>

<pallas_src>
import jax
import jax.numpy as jnp
from jax.experimental import pallas as pl
from jax.experimental.pallas import tpu as pltpu

# ---------------- model config (small, synthetic) ----------------
B = 2                        # batch
T = 8                        # frames
NJ = 17                      # input joints
DIM_REP = 32                 # dim_rep (512 in the real config)
HID = 128                    # hidden_dim (2048 in the real config)
POSE6D = 24 * 6              # 144
N_SMPL_JOINTS = 24
BN_EPS = 1e-5
SMPL_PARENTS = [-1, 0, 0, 0, 1, 2, 3, 4, 5, 6, 7, 8,
                9, 9, 9, 12, 13, 14, 16, 17, 18, 19, 20, 21]

# kernel A tiling (regressor): K-tile over the JC feature axis
JC = NJ * DIM_REP            # 544
KTILE = 128                  # 512-1024 at the real JC=8704 / HID=2048 config
JC_PAD = -(-JC // KTILE) * KTILE      # 640

# kernel B tiling (LBS): lane-dense vertex tiles, 2-way core split on the outer axis
N_VERTS = 1800               # synthetic mesh size (6890 in the real model)
VTILE = 512                  # vertex tile (lane-dense, fills 256-wide MXU on v6e/v7x)
NCORES = 2                   # outer "parallel" grid axis (v7x 2-TC sharding; harmless on 1-TC)
V_PAD = -(-N_VERTS // (VTILE * NCORES)) * (VTILE * NCORES)   # 2048
NJ_PAD = 128                 # lane-dense padded joint axis for the kp accumulator
K_DIRS = 10 + 23 * 9 + 1     # 218 = betas | pose_feature | template-ones


# ============================ Pallas kernel A: fused regressor ============================
# dropout(eval) -> fc (BN folded, K-tiled, f32 accumulate) -> ReLU -> head (+mean params folded
# into bias), pose branch (NT rows) and shape branch (N rows) in a single launch.

def _regressor_kernel(fp_ref, fs_ref, w1_ref, b1_ref, w2_ref, b2_ref,
                      hpw_ref, hpb_ref, hsw_ref, hsb_ref,
                      pose_ref, shape_ref, hp_acc, hs_acc):
    k = pl.program_id(0)

    @pl.when(k == 0)
    def _():
        hp_acc[...] = jnp.zeros_like(hp_acc)
        hs_acc[...] = jnp.zeros_like(hs_acc)

    hp_acc[...] += jnp.dot(fp_ref[...].astype(jnp.bfloat16), w1_ref[...],
                           preferred_element_type=jnp.float32)
    hs_acc[...] += jnp.dot(fs_ref[...].astype(jnp.bfloat16), w2_ref[...],
                           preferred_element_type=jnp.float32)

    @pl.when(k == pl.num_programs(0) - 1)
    def _():
        hp = jnp.maximum(hp_acc[...] + b1_ref[...], 0.0).astype(jnp.bfloat16)
        pose_ref[...] = (jnp.dot(hp, hpw_ref[...], preferred_element_type=jnp.float32)
                         + hpb_ref[...])
        hs = jnp.maximum(hs_acc[...] + b2_ref[...], 0.0).astype(jnp.bfloat16)
        shape_ref[...] = (jnp.dot(hs, hsw_ref[...], preferred_element_type=jnp.float32)
                          + hsb_ref[...])


def fused_regressor(feat_pose, feat_shape, p):
    NT = feat_pose.shape[0]
    N_ = feat_shape.shape[0]
    k_tiles = JC_PAD // KTILE

    def rep(shape):
        zeros = (0,) * len(shape)
        return pl.BlockSpec(shape, lambda k: zeros)

    return pl.pallas_call(
        _regressor_kernel,
        grid=(k_tiles,),
        out_shape=(jax.ShapeDtypeStruct((NT, POSE6D), jnp.float32),
                   jax.ShapeDtypeStruct((N_, 10), jnp.float32)),
        in_specs=[pl.BlockSpec((NT, KTILE), lambda k: (0, k)),
                  pl.BlockSpec((N_, KTILE), lambda k: (0, k)),
                  pl.BlockSpec((KTILE, HID), lambda k: (k, 0)),
                  rep((1, HID)),
                  pl.BlockSpec((KTILE, HID), lambda k: (k, 0)),
                  rep((1, HID)),
                  rep((HID, POSE6D)), rep((1, POSE6D)),
                  rep((HID, 10)), rep((1, 10))],
        out_specs=(rep((NT, POSE6D)), rep((N_, 10))),
        scratch_shapes=[pltpu.VMEM((NT, HID), jnp.float32),
                        pltpu.VMEM((N_, HID), jnp.float32)],
        compiler_params=pltpu.CompilerParams(dimension_semantics=("arbitrary",)),
    )(feat_pose, feat_shape,
      p['fc1_w'], p['fc1_b'], p['fc2_w'], p['fc2_b'],
      p['head_pose_w'], p['head_pose_b'], p['head_shape_w'], p['head_shape_b'])


# ============== Pallas kernel B: fused LBS + H36M joint regression (vertex-tiled) ==============
# grid = (NCORES parallel, tiles-per-core arbitrary); per-tile: one fused dirs dot, one skinning-
# matrix dot, elementwise homogeneous apply (*1000), kp partial accumulated in VMEM scratch.

def _lbs_kernel(act_ref, a_ref, dirs_ref, lw_ref, jr_ref,
                verts_ref, kp_ref, kp_acc):
    v = pl.program_id(1)
    nt = act_ref.shape[0]

    @pl.when(v == 0)
    def _():
        kp_acc[...] = jnp.zeros_like(kp_acc)

    act = act_ref[...].astype(jnp.bfloat16)        # (NT, 218) = [betas | pose_feature | 1]
    a_bf = a_ref[...].astype(jnp.bfloat16)         # (12*NT, 24) skinning transform rows
    # TODO(synk): the translation column of a_flat is cast to bf16 here; keep it f32 and add it
    # separately if sub-mm agreement with the PyTorch reference is required.

    # fused shapedirs / posedirs / v_template blendshapes: ONE lane-dense dot per tile
    planes = jnp.dot(act, dirs_ref[...], preferred_element_type=jnp.float32)   # (NT, 3*VTILE)
    # per-vertex skinning matrices: Tall[(i*4+j)*NT + b, v] = T[b, v, i, j]
    Tall = jnp.dot(a_bf, lw_ref[...], preferred_element_type=jnp.float32)      # (12*NT, VTILE)
    Jt = jr_ref[...]                                                            # (VTILE, 128)

    for i in range(3):
        def row(j, _i=i):
            s = (_i * 4 + j) * nt
            return Tall[s:s + nt]                                               # (NT, VTILE)
        vi = (row(0) * planes[:, :VTILE]
              + row(1) * planes[:, VTILE:2 * VTILE]
              + row(2) * planes[:, 2 * VTILE:3 * VTILE]
              + row(3)) * 1000.0
        verts_ref[i] = vi
        kp_acc[i] += jnp.dot(vi.astype(jnp.bfloat16), Jt,
                             preferred_element_type=jnp.float32)                # (NT, 128)

    @pl.when(v == pl.num_programs(1) - 1)
    def _():
        kp_ref[0] = kp_acc[...]


def fused_lbs_joints(act, a_flat, p):
    NT = act.shape[0]
    nvt = V_PAD // VTILE
    nvt_core = nvt // NCORES

    return pl.pallas_call(
        _lbs_kernel,
        grid=(NCORES, nvt_core),
        out_shape=(jax.ShapeDtypeStruct((3, NT, V_PAD), jnp.float32),
                   jax.ShapeDtypeStruct((NCORES, 3, NT, NJ_PAD), jnp.float32)),
        in_specs=[pl.BlockSpec((NT, K_DIRS), lambda c, v: (0, 0)),
                  pl.BlockSpec((12 * NT, 24), lambda c, v: (0, 0)),
                  pl.BlockSpec((K_DIRS, 3 * VTILE), lambda c, v: (0, c * nvt_core + v)),
                  pl.BlockSpec((24, VTILE), lambda c, v: (0, c * nvt_core + v)),
                  pl.BlockSpec((VTILE, NJ_PAD), lambda c, v: (c * nvt_core + v, 0))],
        out_specs=(pl.BlockSpec((3, NT, VTILE), lambda c, v: (0, 0, c * nvt_core + v)),
                   pl.BlockSpec((1, 3, NT, NJ_PAD), lambda c, v: (c, 0, 0, 0))),
        scratch_shapes=[pltpu.VMEM((3, NT, NJ_PAD), jnp.float32)],
        compiler_params=pltpu.CompilerParams(dimension_semantics=("parallel", "arbitrary")),
    )(act, a_flat, p['dirs_packed'], p['lbs_w_T'], p['Jreg_h36m_T'])


# ============================ rotation helpers (XLA glue) ============================

def rot6d_to_rotmat(x):
    # x: (M, 144) -> (M*24, 3, 3)
    x = x.reshape(-1, 3, 2)
    a1 = x[:, :, 0]
    a2 = x[:, :, 1]
    b1 = a1 / jnp.maximum(jnp.linalg.norm(a1, axis=-1, keepdims=True), 1e-8)
    dot = jnp.sum(b1 * a2, axis=-1, keepdims=True)
    b2u = a2 - dot * b1
    b2 = b2u / jnp.maximum(jnp.linalg.norm(b2u, axis=-1, keepdims=True), 1e-8)
    b3 = jnp.cross(b1, b2)
    return jnp.stack([b1, b2, b3], axis=-1)


def rotmat_to_angle_axis(R):
    # R: (M,3,3) -> (M,3)  (rotation_matrix_to_angle_axis equivalent via quaternion)
    m00, m01, m02 = R[:, 0, 0], R[:, 0, 1], R[:, 0, 2]
    m10, m11, m12 = R[:, 1, 0], R[:, 1, 1], R[:, 1, 2]
    m20, m21, m22 = R[:, 2, 0], R[:, 2, 1], R[:, 2, 2]
    trace = m00 + m11 + m22

    def ssqrt(v):
        return jnp.sqrt(jnp.maximum(v, 1e-12))

    s0 = 2.0 * ssqrt(1.0 + trace)
    q0 = jnp.stack([0.25 * s0, (m21 - m12) / s0, (m02 - m20) / s0, (m10 - m01) / s0], -1)
    s1 = 2.0 * ssqrt(1.0 + m00 - m11 - m22)
    q1 = jnp.stack([(m21 - m12) / s1, 0.25 * s1, (m01 + m10) / s1, (m02 + m20) / s1], -1)
    s2 = 2.0 * ssqrt(1.0 + m11 - m00 - m22)
    q2 = jnp.stack([(m02 - m20) / s2, (m01 + m10) / s2, 0.25 * s2, (m12 + m21) / s2], -1)
    s3 = 2.0 * ssqrt(1.0 + m22 - m00 - m11)
    q3 = jnp.stack([(m10 - m01) / s3, (m02 + m20) / s3, (m12 + m21) / s3, 0.25 * s3], -1)

    cond0 = (trace > 0.0)[:, None]
    cond1 = ((m00 > m11) & (m00 > m22))[:, None]
    cond2 = (m11 > m22)[:, None]
    q = jnp.where(cond0, q0, jnp.where(cond1, q1, jnp.where(cond2, q2, q3)))
    q = q / jnp.maximum(jnp.linalg.norm(q, axis=-1, keepdims=True), 1e-12)

    w, xyz = q[:, 0], q[:, 1:]
    sin2 = jnp.sum(xyz * xyz, axis=-1)
    sin_t = jnp.sqrt(jnp.maximum(sin2, 1e-12))
    theta = 2.0 * jnp.where(w < 0.0, jnp.arctan2(-sin_t, -w), jnp.arctan2(sin_t, w))
    k = jnp.where(sin2 > 1e-12, theta / sin_t, 2.0)
    return xyz * k[:, None]


def _rigid_transform_chain(rotmats, Jpos):
    # rotmats: (Bn,24,3,3), Jpos: (Bn,24,3) -> relative skinning transforms A_rel (Bn,24,4,4)
    Bn = rotmats.shape[0]
    par = jnp.array(SMPL_PARENTS[1:], dtype=jnp.int32)
    rel_j = Jpos.at[:, 1:].set(Jpos[:, 1:] - Jpos[:, par])
    tmat = jnp.concatenate([rotmats, rel_j[..., None]], axis=-1)           # (B,24,3,4)
    bottom = jnp.broadcast_to(jnp.array([0., 0., 0., 1.], jnp.float32),
                              (Bn, N_SMPL_JOINTS, 1, 4))
    tmat = jnp.concatenate([tmat, bottom], axis=2)                         # (B,24,4,4)
    chain = [tmat[:, 0]]
    for i in range(1, N_SMPL_JOINTS):
        chain.append(chain[SMPL_PARENTS[i]] @ tmat[:, i])
    A = jnp.stack(chain, axis=1)                                           # (B,24,4,4)
    j_h = jnp.concatenate([Jpos, jnp.zeros((Bn, N_SMPL_JOINTS, 1), jnp.float32)],
                          axis=-1)[..., None]                              # (B,24,4,1)
    return A - jnp.pad(A @ j_h, ((0, 0), (0, 0), (0, 0), (3, 0)))


# ============================ SMPLRegressor forward ============================

def smpl_regressor_forward(params, feat):
    # feat: (N, T, J, C) -> [{'theta':(NT,82), 'verts':(NT,V,3), 'kp_3d':(NT,17,3)}]
    N_, T_, J_, C_ = feat.shape
    NT = N_ * T_
    jc = J_ * C_
    assert NT % 8 == 0, "B*T must be a multiple of 8 for sublane-aligned skinning rows"

    feat_pose = feat.reshape(NT, jc)                        # dropout(eval) == identity
    feat_shape = feat.reshape(N_, T_, jc).mean(axis=1)      # AdaptiveAvgPool2d((None,1)) over T
    # pad the feature axis to the K-tile multiple (zeros are matmul-neutral)
    feat_pose = jnp.pad(feat_pose, ((0, 0), (0, JC_PAD - jc)))
    feat_shape = jnp.pad(feat_shape, ((0, 0), (0, JC_PAD - jc)))

    pred_pose, pred_shape_n = fused_regressor(feat_pose, feat_shape, params)
    pred_shape = jnp.broadcast_to(pred_shape_n[:, None, :], (N_, T_, 10)).reshape(NT, 10)

    rotmat = rot6d_to_rotmat(pred_pose).reshape(NT, 24, 3, 3)
    ident = jnp.eye(3, dtype=jnp.float32)
    pose_feature = (rotmat[:, 1:] - ident).reshape(NT, 23 * 9)

    # shaped-template joint locations via constant-folded (J_regressor @ shapedirs)
    Jpos = params['J_template'][None] + \
        (pred_shape @ params['J_shapedirs']).reshape(NT, 24, 3)

    A_rel = _rigid_transform_chain(rotmat, Jpos)                            # (NT,24,4,4)
    a_flat = A_rel[:, :, :3, :].transpose(2, 3, 0, 1).reshape(12 * NT, 24)

    # fused blendshape activations: [betas | pose_feature | 1]
    act = jnp.concatenate([pred_shape, pose_feature,
                           jnp.ones((NT, 1), jnp.float32)], axis=1)         # (NT, 218)

    verts_pl, kp_part = fused_lbs_joints(act, a_flat, params)
    verts = verts_pl.transpose(1, 2, 0)[:, :N_VERTS, :]                     # (NT,V,3), *1000 applied
    kp_full = kp_part.sum(axis=0)                                           # (3, NT, 128) core partials
    kp_3d = kp_full[:, :, :NJ].transpose(1, 2, 0)                           # (NT, 17, 3)

    pose_aa = rotmat_to_angle_axis(rotmat.reshape(-1, 3, 3)).reshape(NT, 72)
    theta = jnp.concatenate([pose_aa, pred_shape], axis=1)                  # (NT, 82)
    return [{'theta': theta, 'verts': verts, 'kp_3d': kp_3d}]


# ============================ parameter init ============================

def init_params(key):
    keys = iter(jax.random.split(key, 24))

    def nrm(shape, scale):
        return scale * jax.random.normal(next(keys), shape, jnp.float32)

    def pos_rows(shape):
        w = jnp.abs(nrm(shape, 1.0)) + 1e-3
        return w / jnp.sum(w, axis=-1, keepdims=True)

    p = {}

    # --- regressor weights; BatchNorm1d(eval: mean=0, var=1, gamma=1, beta=0) folded into fc ---
    # TODO(synk): with real checkpoint stats the fold must use running_mean / running_var.
    bn_scale = 1.0 / jnp.sqrt(1.0 + BN_EPS)
    fc1_w = nrm((JC, HID), 0.02) * bn_scale
    fc2_w = nrm((JC, HID), 0.02) * bn_scale
    p['fc1_w'] = jnp.pad(fc1_w, ((0, JC_PAD - JC), (0, 0))).astype(jnp.bfloat16)
    p['fc2_w'] = jnp.pad(fc2_w, ((0, JC_PAD - JC), (0, 0))).astype(jnp.bfloat16)
    p['fc1_b'] = jnp.zeros((1, HID), jnp.float32)            # (b*scale + shift) with b=0, shift=0
    p['fc2_b'] = jnp.zeros((1, HID), jnp.float32)

    # heads (xavier gain 0.01 ~ tiny); init_pose / init_shape folded into the head biases.
    # TODO(synk): init_pose/init_shape come from smpl_mean_params.npz; identity 6D pose +
    # small synthetic mean shape used instead.
    p['head_pose_w'] = nrm((HID, POSE6D), 0.01).astype(jnp.bfloat16)
    init_pose = jnp.tile(jnp.array([1., 0., 0., 1., 0., 0.], jnp.float32), 24)
    p['head_pose_b'] = init_pose.reshape(1, POSE6D)
    p['head_shape_w'] = nrm((HID, 10), 0.01).astype(jnp.bfloat16)
    p['head_shape_b'] = nrm((10,), 0.03).reshape(1, 10)

    # --- synthetic SMPL buffers (deterministic, reduced vertex count) ---
    v_template = nrm((N_VERTS, 3), 0.3)                      # (V, 3)
    shapedirs = nrm((N_VERTS, 3, 10), 0.03)                  # (V, 3, 10)
    posedirs = nrm((23 * 9, N_VERTS * 3), 0.01)              # (207, V*3)
    J_reg_smpl = pos_rows((N_SMPL_JOINTS, N_VERTS))          # (24, V)
    lbs_w = pos_rows((N_VERTS, N_SMPL_JOINTS))               # (V, 24)
    Jreg_h36m = pos_rows((NJ, N_VERTS))                      # (17, V)

    # constant layout transforms, precomputed once: planar coords with the vertex axis on lanes,
    # zero-padded to V_PAD (padded vertices are sliced off in glue / regress to zero).
    pad_v = V_PAD - N_VERTS
    vt_pl = jnp.pad(v_template.T, ((0, 0), (0, pad_v)))                                  # (3, Vp)
    sd_pl = jnp.pad(shapedirs.transpose(1, 2, 0), ((0, 0), (0, 0), (0, pad_v)))          # (3,10,Vp)
    pd_pl = jnp.pad(posedirs.reshape(23 * 9, N_VERTS, 3).transpose(2, 0, 1),
                    ((0, 0), (0, 0), (0, pad_v)))                                        # (3,207,Vp)

    # fused dirs slab: rows ordered [shapedirs(10) | posedirs(207) | template(1)] matching the
    # act layout; vertex-tile interleaved so each grid tile reads ONE (218, 3*VTILE) block whose
    # lanes are [plane-x tile | plane-y tile | plane-z tile].
    dirs = jnp.concatenate([sd_pl, pd_pl, vt_pl[:, None, :]], axis=1)                    # (3,218,Vp)
    nvt = V_PAD // VTILE
    dirs = (dirs.transpose(1, 0, 2)                     # (218, 3, Vp)
                .reshape(K_DIRS, 3, nvt, VTILE)
                .transpose(0, 2, 1, 3)                  # (218, nvt, 3, VTILE)
                .reshape(K_DIRS, nvt * 3 * VTILE))
    p['dirs_packed'] = dirs.astype(jnp.bfloat16)

    p['lbs_w_T'] = jnp.pad(lbs_w.T, ((0, 0), (0, pad_v))).astype(jnp.bfloat16)           # (24, Vp)
    p['Jreg_h36m_T'] = jnp.pad(Jreg_h36m.T,
                               ((0, pad_v), (0, NJ_PAD - NJ))).astype(jnp.bfloat16)      # (Vp, 128)

    p['J_template'] = J_reg_smpl @ v_template                                            # (24, 3)
    p['J_shapedirs'] = jnp.einsum('jv,vks->sjk', J_reg_smpl, shapedirs).reshape(10, 72)
    return p


# ============================ main ============================

if __name__ == "__main__":
    key = jax.random.PRNGKey(0)
    pkey, dkey = jax.random.split(key)
    params = init_params(pkey)

    feat = jax.random.normal(dkey, (B, T, NJ, DIM_REP), jnp.float32)

    fwd = jax.jit(smpl_regressor_forward)
    out = fwd(params, feat)
    jax.block_until_ready(out)

    NT = B * T
    assert out[0]['theta'].shape == (NT, 82)
    assert out[0]['verts'].shape == (NT, N_VERTS, 3)
    assert out[0]['kp_3d'].shape == (NT, NJ, 3)
    assert bool(jnp.all(jnp.isfinite(out[0]['theta'])))
    assert bool(jnp.all(jnp.isfinite(out[0]['verts'])))
    assert bool(jnp.all(jnp.isfinite(out[0]['kp_3d'])))
    print("KERNEL_OK")
</pallas_src>

<mosaic_0001>
module attributes {stable_mosaic.version = 11 : i64} {
  func.func @_regressor_kernel(%arg0: i32, %arg1: memref<16x128xf32, #tpu.memory_space<vmem>>, %arg2: memref<2x128xf32, #tpu.memory_space<vmem>>, %arg3: memref<128x128xbf16, #tpu.memory_space<vmem>>, %arg4: memref<1x128xf32, #tpu.memory_space<vmem>>, %arg5: memref<128x128xbf16, #tpu.memory_space<vmem>>, %arg6: memref<1x128xf32, #tpu.memory_space<vmem>>, %arg7: memref<128x144xbf16, #tpu.memory_space<vmem>>, %arg8: memref<1x144xf32, #tpu.memory_space<vmem>>, %arg9: memref<128x10xbf16, #tpu.memory_space<vmem>>, %arg10: memref<1x10xf32, #tpu.memory_space<vmem>>, %arg11: memref<16x144xf32, #tpu.memory_space<vmem>>, %arg12: memref<2x10xf32, #tpu.memory_space<vmem>>, %arg13: memref<16x128xf32, #tpu.memory_space<vmem>>, %arg14: memref<2x128xf32, #tpu.memory_space<vmem>>) attributes {dimension_semantics = [#tpu.dimension_semantics<arbitrary>], iteration_bounds = array<i64: 5>, scalar_prefetch = 0 : i64, scratch_operands = 2 : i64, tpu.core_type = #tpu.core_type<tc>, window_params = [{transform_indices = @transform_0, window_bounds = array<i64: 16, 128>}, {transform_indices = @transform_1, window_bounds = array<i64: 2, 128>}, {transform_indices = @transform_2, window_bounds = array<i64: 128, 128>}, {pipeline_mode = #tpu.pipeline_mode<synchronous>, transform_indices = @transform_3, window_bounds = array<i64: 1, 128>}, {transform_indices = @transform_4, window_bounds = array<i64: 128, 128>}, {pipeline_mode = #tpu.pipeline_mode<synchronous>, transform_indices = @transform_5, window_bounds = array<i64: 1, 128>}, {pipeline_mode = #tpu.pipeline_mode<synchronous>, transform_indices = @transform_6, window_bounds = array<i64: 128, 144>}, {pipeline_mode = #tpu.pipeline_mode<synchronous>, transform_indices = @transform_7, window_bounds = array<i64: 1, 144>}, {pipeline_mode = #tpu.pipeline_mode<synchronous>, transform_indices = @transform_8, window_bounds = array<i64: 128, 10>}, {pipeline_mode = #tpu.pipeline_mode<synchronous>, transform_indices = @transform_9, window_bounds = array<i64: 1, 10>}, {pipeline_mode = #tpu.pipeline_mode<synchronous>, transform_indices = @transform_10, window_bounds = array<i64: 16, 144>}, {pipeline_mode = #tpu.pipeline_mode<synchronous>, transform_indices = @transform_11, window_bounds = array<i64: 2, 10>}]} {
    %c0_i32 = arith.constant 0 : i32
    %0 = arith.cmpi eq, %arg0, %c0_i32 : i32
    %1 = arith.extui %0 : i1 to i32
    %c0_i32_0 = arith.constant 0 : i32
    %2 = arith.cmpi ne, %1, %c0_i32_0 : i32
    scf.if %2 {
      %cst_18 = arith.constant 0.000000e+00 : f32
      %20 = vector.broadcast %cst_18 : f32 to vector<16x128xf32>
      %c0_19 = arith.constant 0 : index
      %c0_20 = arith.constant 0 : index
      %21 = vector.load %arg13[%c0_19, %c0_20] : memref<16x128xf32, #tpu.memory_space<vmem>>, vector<16x128xf32>
      tpu.vector_store %arg13[%c0_19, %c0_20], %20 {strides = array<i32>} : memref<16x128xf32, #tpu.memory_space<vmem>>, vector<16x128xf32>,
      %cst_21 = arith.constant 0.000000e+00 : f32
      %22 = vector.broadcast %cst_21 : f32 to vector<2x128xf32>
      %c0_22 = arith.constant 0 : index
      %c0_23 = arith.constant 0 : index
      %23 = vector.load %arg14[%c0_22, %c0_23] : memref<2x128xf32, #tpu.memory_space<vmem>>, vector<2x128xf32>
      tpu.vector_store %arg14[%c0_22, %c0_23], %22 {strides = array<i32>} : memref<2x128xf32, #tpu.memory_space<vmem>>, vector<2x128xf32>,
    } else {
    }
    %c0 = arith.constant 0 : index
    %c0_1 = arith.constant 0 : index
    %3 = vector.load %arg13[%c0, %c0_1] : memref<16x128xf32, #tpu.memory_space<vmem>>, vector<16x128xf32>
    %c0_2 = arith.constant 0 : index
    %c0_3 = arith.constant 0 : index
    %4 = vector.load %arg1[%c0_2, %c0_3] : memref<16x128xf32, #tpu.memory_space<vmem>>, vector<16x128xf32>
    %5 = arith.truncf %4 : vector<16x128xf32> to vector<16x128xbf16>
    %c0_4 = arith.constant 0 : index
    %c0_5 = arith.constant 0 : index
    %6 = vector.load %arg3[%c0_4, %c0_5] : memref<128x128xbf16, #tpu.memory_space<vmem>>, vector<128x128xbf16>
    %cst = arith.constant dense<0.000000e+00> : vector<16x128xf32>
    %7 = tpu.matmul %5, %6, %cst {dimension_numbers = #tpu.dot_dimension_numbers<[1], [0], [0], [1], [0, 0, 1, 1], [], []>} : vector<16x128xbf16>, vector<128x128xbf16>, vector<16x128xf32> -> vector<16x128xf32>
    %8 = arith.addf %3, %7 : vector<16x128xf32>
    %c0_6 = arith.constant 0 : index
    %c0_7 = arith.constant 0 : index
    %9 = vector.load %arg13[%c0_6, %c0_7] : memref<16x128xf32, #tpu.memory_space<vmem>>, vector<16x128xf32>
    tpu.vector_store %arg13[%c0_6, %c0_7], %8 {strides = array<i32>} : memref<16x128xf32, #tpu.memory_space<vmem>>, vector<16x128xf32>,
    %c0_8 = arith.constant 0 : index
    %c0_9 = arith.constant 0 : index
    %10 = vector.load %arg14[%c0_8, %c0_9] : memref<2x128xf32, #tpu.memory_space<vmem>>, vector<2x128xf32>
    %c0_10 = arith.constant 0 : index
    %c0_11 = arith.constant 0 : index
    %11 = vector.load %arg2[%c0_10, %c0_11] : memref<2x128xf32, #tpu.memory_space<vmem>>, vector<2x128xf32>
    %12 = arith.truncf %11 : vector<2x128xf32> to vector<2x128xbf16>
    %c0_12 = arith.constant 0 : index
    %c0_13 = arith.constant 0 : index
    %13 = vector.load %arg5[%c0_12, %c0_13] : memref<128x128xbf16, #tpu.memory_space<vmem>>, vector<128x128xbf16>
    %cst_14 = arith.constant dense<0.000000e+00> : vector<2x128xf32>
    %14 = tpu.matmul %12, %13, %cst_14 {dimension_numbers = #tpu.dot_dimension_numbers<[1], [0], [0], [1], [0, 0, 1, 1], [], []>} : vector<2x128xbf16>, vector<128x128xbf16>, vector<2x128xf32> -> vector<2x128xf32>
    %15 = arith.addf %10, %14 : vector<2x128xf32>
    %c0_15 = arith.constant 0 : index
    %c0_16 = arith.constant 0 : index
    %16 = vector.load %arg14[%c0_15, %c0_16] : memref<2x128xf32, #tpu.memory_space<vmem>>, vector<2x128xf32>
    tpu.vector_store %arg14[%c0_15, %c0_16], %15 {strides = array<i32>} : memref<2x128xf32, #tpu.memory_space<vmem>>, vector<2x128xf32>,
    %c4_i32 = arith.constant 4 : i32
    %17 = arith.cmpi eq, %arg0, %c4_i32 : i32
    %18 = arith.extui %17 : i1 to i32
    %c0_i32_17 = arith.constant 0 : i32
    %19 = arith.cmpi ne, %18, %c0_i32_17 : i32
    scf.if %19 {
      %c0_18 = arith.constant 0 : index
      %c0_19 = arith.constant 0 : index
      %20 = vector.load %arg13[%c0_18, %c0_19] : memref<16x128xf32, #tpu.memory_space<vmem>>, vector<16x128xf32>
      %c0_20 = arith.constant 0 : index
      %c0_21 = arith.constant 0 : index
      %21 = vector.load %arg4[%c0_20, %c0_21] : memref<1x128xf32, #tpu.memory_space<vmem>>, vector<1x128xf32>
      %22 = vector.broadcast %21 : vector<1x128xf32> to vector<16x128xf32>
      %23 = arith.addf %20, %22 : vector<16x128xf32>
      %cst_22 = arith.constant 0.000000e+00 : f32
      %24 = vector.broadcast %cst_22 : f32 to vector<16x128xf32>
      %25 = arith.maximumf %23, %24 : vector<16x128xf32>
      %26 = arith.truncf %25 : vector<16x128xf32> to vector<16x128xbf16>
      %c0_23 = arith.constant 0 : index
      %c0_24 = arith.constant 0 : index
      %27 = vector.load %arg7[%c0_23, %c0_24] : memref<128x144xbf16, #tpu.memory_space<vmem>>, vector<128x144xbf16>
      %cst_25 = arith.constant dense<0.000000e+00> : vector<16x144xf32>
      %28 = tpu.matmul %26, %27, %cst_25 {dimension_numbers = #tpu.dot_dimension_numbers<[1], [0], [0], [1], [0, 0, 1, 1], [], []>} : vector<16x128xbf16>, vector<128x144xbf16>, vector<16x144xf32> -> vector<16x144xf32>
      %c0_26 = arith.constant 0 : index
      %c0_27 = arith.constant 0 : index
      %29 = vector.load %arg8[%c0_26, %c0_27] : memref<1x144xf32, #tpu.memory_space<vmem>>, vector<1x144xf32>
      %30 = vector.broadcast %29 : vector<1x144xf32> to vector<16x144xf32>
      %31 = arith.addf %28, %30 : vector<16x144xf32>
      %c0_28 = arith.constant 0 : index
      %c0_29 = arith.constant 0 : index
      %32 = vector.load %arg11[%c0_28, %c0_29] : memref<16x144xf32, #tpu.memory_space<vmem>>, vector<16x144xf32>
      tpu.vector_store %arg11[%c0_28, %c0_29], %31 {strides = array<i32>} : memref<16x144xf32, #tpu.memory_space<vmem>>, vector<16x144xf32>,
      %c0_30 = arith.constant 0 : index
      %c0_31 = arith.constant 0 : index
      %33 = vector.load %arg14[%c0_30, %c0_31] : memref<2x128xf32, #tpu.memory_space<vmem>>, vector<2x128xf32>
      %c0_32 = arith.constant 0 : index
      %c0_33 = arith.constant 0 : index
      %34 = vector.load %arg6[%c0_32, %c0_33] : memref<1x128xf32, #tpu.memory_space<vmem>>, vector<1x128xf32>
      %35 = vector.broadcast %34 : vector<1x128xf32> to vector<2x128xf32>
      %36 = arith.addf %33, %35 : vector<2x128xf32>
      %cst_34 = arith.constant 0.000000e+00 : f32
      %37 = vector.broadcast %cst_34 : f32 to vector<2x128xf32>
      %38 = arith.maximumf %36, %37 : vector<2x128xf32>
      %39 = arith.truncf %38 : vector<2x128xf32> to vector<2x128xbf16>
      %c0_35 = arith.constant 0 : index
      %c0_36 = arith.constant 0 : index
      %40 = vector.load %arg9[%c0_35, %c0_36] : memref<128x10xbf16, #tpu.memory_space<vmem>>, vector<128x10xbf16>
      %cst_37 = arith.constant dense<0.000000e+00> : vector<2x10xf32>
      %41 = tpu.matmul %39, %40, %cst_37 {dimension_numbers = #tpu.dot_dimension_numbers<[1], [0], [0], [1], [0, 0, 1, 1], [], []>} : vector<2x128xbf16>, vector<128x10xbf16>, vector<2x10xf32> -> vector<2x10xf32>
      %c0_38 = arith.constant 0 : index
      %c0_39 = arith.constant 0 : index
      %42 = vector.load %arg10[%c0_38, %c0_39] : memref<1x10xf32, #tpu.memory_space<vmem>>, vector<1x10xf32>
      %43 = vector.broadcast %42 : vector<1x10xf32> to vector<2x10xf32>
      %44 = arith.addf %41, %43 : vector<2x10xf32>
      %c0_40 = arith.constant 0 : index
      %c0_41 = arith.constant 0 : index
      %45 = vector.load %arg12[%c0_40, %c0_41] : memref<2x10xf32, #tpu.memory_space<vmem>>, vector<2x10xf32>
      tpu.vector_store %arg12[%c0_40, %c0_41], %44 {strides = array<i32>} : memref<2x10xf32, #tpu.memory_space<vmem>>, vector<2x10xf32>,
    } else {
    }
    return
  }
  func.func @transform_0(%arg0: i32) -> (i32, i32) {
    %c0_i32 = arith.constant 0 : i32
    %c0_i32_0 = arith.constant 0 : i32
    return %c0_i32, %arg0 : i32, i32
  }
  func.func @transform_1(%arg0: i32) -> (i32, i32) {
    %c0_i32 = arith.constant 0 : i32
    %c0_i32_0 = arith.constant 0 : i32
    return %c0_i32, %arg0 : i32, i32
  }
  func.func @transform_2(%arg0: i32) -> (i32, i32) {
    %c0_i32 = arith.constant 0 : i32
    %c0_i32_0 = arith.constant 0 : i32
    return %arg0, %c0_i32 : i32, i32
  }
  func.func @transform_3(%arg0: i32) -> (i32, i32) {
    %c0_i32 = arith.constant 0 : i32
    %c0_i32_0 = arith.constant 0 : i32
    %c0_i32_1 = arith.constant 0 : i32
    return %c0_i32, %c0_i32_0 : i32, i32
  }
  func.func @transform_4(%arg0: i32) -> (i32, i32) {
    %c0_i32 = arith.constant 0 : i32
    %c0_i32_0 = arith.constant 0 : i32
    return %arg0, %c0_i32 : i32, i32
  }
  func.func @transform_5(%arg0: i32) -> (i32, i32) {
    %c0_i32 = arith.constant 0 : i32
    %c0_i32_0 = arith.constant 0 : i32
    %c0_i32_1 = arith.constant 0 : i32
    return %c0_i32, %c0_i32_0 : i32, i32
  }
  func.func @transform_6(%arg0: i32) -> (i32, i32) {
    %c0_i32 = arith.constant 0 : i32
    %c0_i32_0 = arith.constant 0 : i32
    %c0_i32_1 = arith.constant 0 : i32
    return %c0_i32, %c0_i32_0 : i32, i32
  }
  func.func @transform_7(%arg0: i32) -> (i32, i32) {
    %c0_i32 = arith.constant 0 : i32
    %c0_i32_0 = arith.constant 0 : i32
    %c0_i32_1 = arith.constant 0 : i32
    return %c0_i32, %c0_i32_0 : i32, i32
  }
  func.func @transform_8(%arg0: i32) -> (i32, i32) {
    %c0_i32 = arith.constant 0 : i32
    %c0_i32_0 = arith.constant 0 : i32
    %c0_i32_1 = arith.constant 0 : i32
    return %c0_i32, %c0_i32_0 : i32, i32
  }
  func.func @transform_9(%arg0: i32) -> (i32, i32) {
    %c0_i32 = arith.constant 0 : i32
    %c0_i32_0 = arith.constant 0 : i32
    %c0_i32_1 = arith.constant 0 : i32
    return %c0_i32, %c0_i32_0 : i32, i32
  }
  func.func @transform_10(%arg0: i32) -> (i32, i32) {
    %c0_i32 = arith.constant 0 : i32
    %c0_i32_0 = arith.constant 0 : i32
    %c0_i32_1 = arith.constant 0 : i32
    return %c0_i32, %c0_i32_0 : i32, i32
  }
  func.func @transform_11(%arg0: i32) -> (i32, i32) {
    %c0_i32 = arith.constant 0 : i32
    %c0_i32_0 = arith.constant 0 : i32
    %c0_i32_1 = arith.constant 0 : i32
    return %c0_i32, %c0_i32_0 : i32, i32
  }
}

module attributes {stable_mosaic.version = 11 : i64} {
  func.func @_lbs_kernel(%arg0: i32, %arg1: i32, %arg2: memref<16x218xf32, #tpu.memory_space<vmem>>, %arg3: memref<192x24xf32, #tpu.memory_space<vmem>>, %arg4: memref<218x1536xbf16, #tpu.memory_space<vmem>>, %arg5: memref<24x512xbf16, #tpu.memory_space<vmem>>, %arg6: memref<512x128xbf16, #tpu.memory_space<vmem>>, %arg7: memref<3x16x512xf32, #tpu.memory_space<vmem>>, %arg8: memref<1x3x16x128xf32, #tpu.memory_space<vmem>>, %arg9: memref<3x16x128xf32, #tpu.memory_space<vmem>>) attributes {dimension_semantics = [#tpu.dimension_semantics<parallel>, #tpu.dimension_semantics<arbitrary>], iteration_bounds = array<i64: 2, 2>, scalar_prefetch = 0 : i64, scratch_operands = 1 : i64, tpu.core_type = #tpu.core_type<tc>, window_params = [{pipeline_mode = #tpu.pipeline_mode<synchronous>, transform_indices = @transform_0, window_bounds = array<i64: 16, 218>}, {pipeline_mode = #tpu.pipeline_mode<synchronous>, transform_indices = @transform_1, window_bounds = array<i64: 192, 24>}, {transform_indices = @transform_2, window_bounds = array<i64: 218, 1536>}, {transform_indices = @transform_3, window_bounds = array<i64: 24, 512>}, {transform_indices = @transform_4, window_bounds = array<i64: 512, 128>}, {transform_indices = @transform_5, window_bounds = array<i64: 3, 16, 512>}, {transform_indices = @transform_6, window_bounds = array<i64: 1, 3, 16, 128>}]} {
    %c0_i32 = arith.constant 0 : i32
    %0 = arith.cmpi eq, %arg1, %c0_i32 : i32
    %1 = arith.extui %0 : i1 to i32
    %c0_i32_0 = arith.constant 0 : i32
    %2 = arith.cmpi ne, %1, %c0_i32_0 : i32
    scf.if %2 {
      %cst_43 = arith.constant 0.000000e+00 : f32
      %93 = vector.broadcast %cst_43 : f32 to vector<3x16x128xf32>
      %c0_44 = arith.constant 0 : index
      %c0_45 = arith.constant 0 : index
      %c0_46 = arith.constant 0 : index
      %94 = vector.load %arg9[%c0_44, %c0_45, %c0_46] : memref<3x16x128xf32, #tpu.memory_space<vmem>>, vector<3x16x128xf32>
      tpu.vector_store %arg9[%c0_44, %c0_45, %c0_46], %93 {strides = array<i32>} : memref<3x16x128xf32, #tpu.memory_space<vmem>>, vector<3x16x128xf32>,
    } else {
    }
    %c0 = arith.constant 0 : index
    %c0_1 = arith.constant 0 : index
    %3 = vector.load %arg2[%c0, %c0_1] : memref<16x218xf32, #tpu.memory_space<vmem>>, vector<16x218xf32>
    %4 = arith.truncf %3 : vector<16x218xf32> to vector<16x218xbf16>
    %c0_2 = arith.constant 0 : index
    %c0_3 = arith.constant 0 : index
    %5 = vector.load %arg3[%c0_2, %c0_3] : memref<192x24xf32, #tpu.memory_space<vmem>>, vector<192x24xf32>
    %6 = arith.truncf %5 : vector<192x24xf32> to vector<192x24xbf16>
    %c0_4 = arith.constant 0 : index
    %c0_5 = arith.constant 0 : index
    %7 = vector.load %arg4[%c0_4, %c0_5] : memref<218x1536xbf16, #tpu.memory_space<vmem>>, vector<218x1536xbf16>
    %cst = arith.constant dense<0.000000e+00> : vector<16x1536xf32>
    %8 = tpu.matmul %4, %7, %cst {dimension_numbers = #tpu.dot_dimension_numbers<[1], [0], [0], [1], [0, 0, 1, 1], [], []>} : vector<16x218xbf16>, vector<218x1536xbf16>, vector<16x1536xf32> -> vector<16x1536xf32>
    %c0_6 = arith.constant 0 : index
    %c0_7 = arith.constant 0 : index
    %9 = vector.load %arg5[%c0_6, %c0_7] : memref<24x512xbf16, #tpu.memory_space<vmem>>, vector<24x512xbf16>
    %cst_8 = arith.constant dense<0.000000e+00> : vector<192x512xf32>
    %10 = tpu.matmul %6, %9, %cst_8 {dimension_numbers = #tpu.dot_dimension_numbers<[1], [0], [0], [1], [0, 0, 1, 1], [], []>} : vector<192x24xbf16>, vector<24x512xbf16>, vector<192x512xf32> -> vector<192x512xf32>
    %c0_9 = arith.constant 0 : index
    %c0_10 = arith.constant 0 : index
    %11 = vector.load %arg6[%c0_9, %c0_10] : memref<512x128xbf16, #tpu.memory_space<vmem>>, vector<512x128xbf16>
    %12 = vector.extract_strided_slice %10 {offsets = [0, 0], sizes = [16, 512], strides = [1, 1]} : vector<192x512xf32> to vector<16x512xf32>
    %13 = vector.extract_strided_slice %8 {offsets = [0, 0], sizes = [16, 512], strides = [1, 1]} : vector<16x1536xf32> to vector<16x512xf32>
    %14 = arith.mulf %12, %13 : vector<16x512xf32>
    %15 = vector.extract_strided_slice %10 {offsets = [16, 0], sizes = [16, 512], strides = [1, 1]} : vector<192x512xf32> to vector<16x512xf32>
    %16 = vector.extract_strided_slice %8 {offsets = [0, 512], sizes = [16, 512], strides = [1, 1]} : vector<16x1536xf32> to vector<16x512xf32>
    %17 = arith.mulf %15, %16 : vector<16x512xf32>
    %18 = arith.addf %14, %17 : vector<16x512xf32>
    %19 = vector.extract_strided_slice %10 {offsets = [32, 0], sizes = [16, 512], strides = [1, 1]} : vector<192x512xf32> to vector<16x512xf32>
    %20 = vector.extract_strided_slice %8 {offsets = [0, 1024], sizes = [16, 512], strides = [1, 1]} : vector<16x1536xf32> to vector<16x512xf32>
    %21 = arith.mulf %19, %20 : vector<16x512xf32>
    %22 = arith.addf %18, %21 : vector<16x512xf32>
    %23 = vector.extract_strided_slice %10 {offsets = [48, 0], sizes = [16, 512], strides = [1, 1]} : vector<192x512xf32> to vector<16x512xf32>
    %24 = arith.addf %22, %23 : vector<16x512xf32>
    %cst_11 = arith.constant 1.000000e+03 : f32
    %25 = vector.broadcast %cst_11 : f32 to vector<16x512xf32>
    %26 = arith.mulf %24, %25 : vector<16x512xf32>
    %c0_12 = arith.constant 0 : index
    %c0_13 = arith.constant 0 : index
    %c0_14 = arith.constant 0 : index
    %27 = vector.load %arg7[%c0_12, %c0_13, %c0_14] : memref<3x16x512xf32, #tpu.memory_space<vmem>>, vector<1x16x512xf32>
    %28 = vector.shape_cast %27 : vector<1x16x512xf32> to vector<16x512xf32>
    %29 = vector.shape_cast %26 : vector<16x512xf32> to vector<1x16x512xf32>
    tpu.vector_store %arg7[%c0_12, %c0_13, %c0_14], %29 {strides = array<i32>} : memref<3x16x512xf32, #tpu.memory_space<vmem>>, vector<1x16x512xf32>,
    %c0_15 = arith.constant 0 : index
    %c0_16 = arith.constant 0 : index
    %c0_17 = arith.constant 0 : index
    %30 = vector.load %arg9[%c0_15, %c0_16, %c0_17] : memref<3x16x128xf32, #tpu.memory_space<vmem>>, vector<1x16x128xf32>
    %31 = vector.shape_cast %30 : vector<1x16x128xf32> to vector<16x128xf32>
    %32 = arith.truncf %26 : vector<16x512xf32> to vector<16x512xbf16>
    %cst_18 = arith.constant dense<0.000000e+00> : vector<16x128xf32>
    %33 = tpu.matmul %32, %11, %cst_18 {dimension_numbers = #tpu.dot_dimension_numbers<[1], [0], [0], [1], [0, 0, 1, 1], [], []>} : vector<16x512xbf16>, vector<512x128xbf16>, vector<16x128xf32> -> vector<16x128xf32>
    %34 = arith.addf %31, %33 : vector<16x128xf32>
    %c0_19 = arith.constant 0 : index
    %c0_20 = arith.constant 0 : index
    %c0_21 = arith.constant 0 : index
    %35 = vector.load %arg9[%c0_19, %c0_20, %c0_21] : memref<3x16x128xf32, #tpu.memory_space<vmem>>, vector<1x16x128xf32>
    %36 = vector.shape_cast %35 : vector<1x16x128xf32> to vector<16x128xf32>
    %37 = vector.shape_cast %34 : vector<16x128xf32> to vector<1x16x128xf32>
    tpu.vector_store %arg9[%c0_19, %c0_20, %c0_21], %37 {strides = array<i32>} : memref<3x16x128xf32, #tpu.memory_space<vmem>>, vector<1x16x128xf32>,
    %38 = vector.extract_strided_slice %10 {offsets = [64, 0], sizes = [16, 512], strides = [1, 1]} : vector<192x512xf32> to vector<16x512xf32>
    %39 = vector.extract_strided_slice %8 {offsets = [0, 0], sizes = [16, 512], strides = [1, 1]} : vector<16x1536xf32> to vector<16x512xf32>
    %40 = arith.mulf %38, %39 : vector<16x512xf32>
    %41 = vector.extract_strided_slice %10 {offsets = [80, 0], sizes = [16, 512], strides = [1, 1]} : vector<192x512xf32> to vector<16x512xf32>
    %42 = vector.extract_strided_slice %8 {offsets = [0, 512], sizes = [16, 512], strides = [1, 1]} : vector<16x1536xf32> to vector<16x512xf32>
    %43 = arith.mulf %41, %42 : vector<16x512xf32>
    %44 = arith.addf %40, %43 : vector<16x512xf32>
    %45 = vector.extract_strided_slice %10 {offsets = [96, 0], sizes = [16, 512], strides = [1, 1]} : vector<192x512xf32> to vector<16x512xf32>
    %46 = vector.extract_strided_slice %8 {offsets = [0, 1024], sizes = [16, 512], strides = [1, 1]} : vector<16x1536xf32> to vector<16x512xf32>
    %47 = arith.mulf %45, %46 : vector<16x512xf32>
    %48 = arith.addf %44, %47 : vector<16x512xf32>
    %49 = vector.extract_strided_slice %10 {offsets = [112, 0], sizes = [16, 512], strides = [1, 1]} : vector<192x512xf32> to vector<16x512xf32>
    %50 = arith.addf %48, %49 : vector<16x512xf32>
    %cst_22 = arith.constant 1.000000e+03 : f32
    %51 = vector.broadcast %cst_22 : f32 to vector<16x512xf32>
    %52 = arith.mulf %50, %51 : vector<16x512xf32>
    %c1 = arith.constant 1 : index
    %c0_23 = arith.constant 0 : index
    %c0_24 = arith.constant 0 : index
    %53 = vector.load %arg7[%c1, %c0_23, %c0_24] : memref<3x16x512xf32, #tpu.memory_space<vmem>>, vector<1x16x512xf32>
    %54 = vector.shape_cast %53 : vector<1x16x512xf32> to vector<16x512xf32>
    %55 = vector.shape_cast %52 : vector<16x512xf32> to vector<1x16x512xf32>
    tpu.vector_store %arg7[%c1, %c0_23, %c0_24], %55 {strides = array<i32>} : memref<3x16x512xf32, #tpu.memory_space<vmem>>, vector<1x16x512xf32>,
    %c1_25 = arith.constant 1 : index
    %c0_26 = arith.constant 0 : index
    %c0_27 = arith.constant 0 : index
    %56 = vector.load %arg9[%c1_25, %c0_26, %c0_27] : memref<3x16x128xf32, #tpu.memory_space<vmem>>, vector<1x16x128xf32>
    %57 = vector.shape_cast %56 : vector<1x16x128xf32> to vector<16x128xf32>
    %58 = arith.truncf %52 : vector<16x512xf32> to vector<16x512xbf16>
    %cst_28 = arith.constant dense<0.000000e+00> : vector<16x128xf32>
    %59 = tpu.matmul %58, %11, %cst_28 {dimension_numbers = #tpu.dot_dimension_numbers<[1], [0], [0], [1], [0, 0, 1, 1], [], []>} : vector<16x512xbf16>, vector<512x128xbf16>, vector<16x128xf32> -> vector<16x128xf32>
    %60 = arith.addf %57, %59 : vector<16x128xf32>
    %c1_29 = arith.constant 1 : index
    %c0_30 = arith.constant 0 : index
    %c0_31 = arith.constant 0 : index
    %61 = vector.load %arg9[%c1_29, %c0_30, %c0_31] : memref<3x16x128xf32, #tpu.memory_space<vmem>>, vector<1x16x128xf32>
    %62 = vector.shape_cast %61 : vector<1x16x128xf32> to vector<16x128xf32>
    %63 = vector.shape_cast %60 : vector<16x128xf32> to vector<1x16x128xf32>
    tpu.vector_store %arg9[%c1_29, %c0_30, %c0_31], %63 {strides = array<i32>} : memref<3x16x128xf32, #tpu.memory_space<vmem>>, vector<1x16x128xf32>,
    %64 = vector.extract_strided_slice %10 {offsets = [128, 0], sizes = [16, 512], strides = [1, 1]} : vector<192x512xf32> to vector<16x512xf32>
    %65 = vector.extract_strided_slice %8 {offsets = [0, 0], sizes = [16, 512], strides = [1, 1]} : vector<16x1536xf32> to vector<16x512xf32>
    %66 = arith.mulf %64, %65 : vector<16x512xf32>
    %67 = vector.extract_strided_slice %10 {offsets = [144, 0], sizes = [16, 512], strides = [1, 1]} : vector<192x512xf32> to vector<16x512xf32>
    %68 = vector.extract_strided_slice %8 {offsets = [0, 512], sizes = [16, 512], strides = [1, 1]} : vector<16x1536xf32> to vector<16x512xf32>
    %69 = arith.mulf %67, %68 : vector<16x512xf32>
    %70 = arith.addf %66, %69 : vector<16x512xf32>
    %71 = vector.extract_strided_slice %10 {offsets = [160, 0], sizes = [16, 512], strides = [1, 1]} : vector<192x512xf32> to vector<16x512xf32>
    %72 = vector.extract_strided_slice %8 {offsets = [0, 1024], sizes = [16, 512], strides = [1, 1]} : vector<16x1536xf32> to vector<16x512xf32>
    %73 = arith.mulf %71, %72 : vector<16x512xf32>
    %74 = arith.addf %70, %73 : vector<16x512xf32>
    %75 = vector.extract_strided_slice %10 {offsets = [176, 0], sizes = [16, 512], strides = [1, 1]} : vector<192x512xf32> to vector<16x512xf32>
    %76 = arith.addf %74, %75 : vector<16x512xf32>
    %cst_32 = arith.constant 1.000000e+03 : f32
    %77 = vector.broadcast %cst_32 : f32 to vector<16x512xf32>
    %78 = arith.mulf %76, %77 : vector<16x512xf32>
    %c2 = arith.constant 2 : index
    %c0_33 = arith.constant 0 : index
    %c0_34 = arith.constant 0 : index
    %79 = vector.load %arg7[%c2, %c0_33, %c0_34] : memref<3x16x512xf32, #tpu.memory_space<vmem>>, vector<1x16x512xf32>
    %80 = vector.shape_cast %79 : vector<1x16x512xf32> to vector<16x512xf32>
    %81 = vector.shape_cast %78 : vector<16x512xf32> to vector<1x16x512xf32>
    tpu.vector_store %arg7[%c2, %c0_33, %c0_34], %81 {strides = array<i32>} : memref<3x16x512xf32, #tpu.memory_space<vmem>>, vector<1x16x512xf32>,
    %c2_35 = arith.constant 2 : index
    %c0_36 = arith.constant 0 : index
    %c0_37 = arith.constant 0 : index
    %82 = vector.load %arg9[%c2_35, %c0_36, %c0_37] : memref<3x16x128xf32, #tpu.memory_space<vmem>>, vector<1x16x128xf32>
    %83 = vector.shape_cast %82 : vector<1x16x128xf32> to vector<16x128xf32>
    %84 = arith.truncf %78 : vector<16x512xf32> to vector<16x512xbf16>
    %cst_38 = arith.constant dense<0.000000e+00> : vector<16x128xf32>
    %85 = tpu.matmul %84, %11, %cst_38 {dimension_numbers = #tpu.dot_dimension_numbers<[1], [0], [0], [1], [0, 0, 1, 1], [], []>} : vector<16x512xbf16>, vector<512x128xbf16>, vector<16x128xf32> -> vector<16x128xf32>
    %86 = arith.addf %83, %85 : vector<16x128xf32>
    %c2_39 = arith.constant 2 : index
    %c0_40 = arith.constant 0 : index
    %c0_41 = arith.constant 0 : index
    %87 = vector.load %arg9[%c2_39, %c0_40, %c0_41] : memref<3x16x128xf32, #tpu.memory_space<vmem>>, vector<1x16x128xf32>
    %88 = vector.shape_cast %87 : vector<1x16x128xf32> to vector<16x128xf32>
    %89 = vector.shape_cast %86 : vector<16x128xf32> to vector<1x16x128xf32>
    tpu.vector_store %arg9[%c2_39, %c0_40, %c0_41], %89 {strides = array<i32>} : memref<3x16x128xf32, #tpu.memory_space<vmem>>, vector<1x16x128xf32>,
    %c1_i32 = arith.constant 1 : i32
    %90 = arith.cmpi eq, %arg1, %c1_i32 : i32
    %91 = arith.extui %90 : i1 to i32
    %c0_i32_42 = arith.constant 0 : i32
    %92 = arith.cmpi ne, %91, %c0_i32_42 : i32
    scf.if %92 {
      %c0_43 = arith.constant 0 : index
      %c0_44 = arith.constant 0 : index
      %c0_45 = arith.constant 0 : index
      %93 = vector.load %arg9[%c0_43, %c0_44, %c0_45] : memref<3x16x128xf32, #tpu.memory_space<vmem>>, vector<3x16x128xf32>
      %c0_46 = arith.constant 0 : index
      %c0_47 = arith.constant 0 : index
      %c0_48 = arith.constant 0 : index
      %c0_49 = arith.constant 0 : index
      %94 = vector.load %arg8[%c0_46, %c0_47, %c0_48, %c0_49] : memref<1x3x16x128xf32, #tpu.memory_space<vmem>>, vector<1x3x16x128xf32>
      %95 = vector.shape_cast %94 : vector<1x3x16x128xf32> to vector<3x16x128xf32>
      %96 = vector.shape_cast %93 : vector<3x16x128xf32> to vector<1x3x16x128xf32>
      tpu.vector_store %arg8[%c0_46, %c0_47, %c0_48, %c0_49], %96 {strides = array<i32>} : memref<1x3x16x128xf32, #tpu.memory_space<vmem>>, vector<1x3x16x128xf32>,
    } else {
    }
    return
  }
  func.func @transform_0(%arg0: i32, %arg1: i32) -> (i32, i32) {
    %c0_i32 = arith.constant 0 : i32
    %c0_i32_0 = arith.constant 0 : i32
    %c0_i32_1 = arith.constant 0 : i32
    return %c0_i32, %c0_i32_0 : i32, i32
  }
  func.func @transform_1(%arg0: i32, %arg1: i32) -> (i32, i32) {
    %c0_i32 = arith.constant 0 : i32
    %c0_i32_0 = arith.constant 0 : i32
    %c0_i32_1 = arith.constant 0 : i32
    return %c0_i32, %c0_i32_0 : i32, i32
  }
  func.func @transform_2(%arg0: i32, %arg1: i32) -> (i32, i32) {
    %c2_i32 = arith.constant 2 : i32
    %0 = arith.muli %arg0, %c2_i32 : i32
    %1 = arith.addi %0, %arg1 : i32
    %c0_i32 = arith.constant 0 : i32
    %c0_i32_0 = arith.constant 0 : i32
    return %c0_i32, %1 : i32, i32
  }
  func.func @transform_3(%arg0: i32, %arg1: i32) -> (i32, i32) {
    %c2_i32 = arith.constant 2 : i32
    %0 = arith.muli %arg0, %c2_i32 : i32
    %1 = arith.addi %0, %arg1 : i32
    %c0_i32 = arith.constant 0 : i32
    %c0_i32_0 = arith.constant 0 : i32
    return %c0_i32, %1 : i32, i32
  }
  func.func @transform_4(%arg0: i32, %arg1: i32) -> (i32, i32) {
    %c2_i32 = arith.constant 2 : i32
    %0 = arith.muli %arg0, %c2_i32 : i32
    %1 = arith.addi %0, %arg1 : i32
    %c0_i32 = arith.constant 0 : i32
    %c0_i32_0 = arith.constant 0 : i32
    return %1, %c0_i32 : i32, i32
  }
  func.func @transform_5(%arg0: i32, %arg1: i32) -> (i32, i32, i32) {
    %c2_i32 = arith.constant 2 : i32
    %0 = arith.muli %arg0, %c2_i32 : i32
    %1 = arith.addi %0, %arg1 : i32
    %c0_i32 = arith.constant 0 : i32
    %c0_i32_0 = arith.constant 0 : i32
    %c0_i32_1 = arith.constant 0 : i32
    return %c0_i32, %c0_i32_0, %1 : i32, i32, i32
  }
  func.func @transform_6(%arg0: i32, %arg1: i32) -> (i32, i32, i32, i32) {
    %c0_i32 = arith.constant 0 : i32
    %c0_i32_0 = arith.constant 0 : i32
    %c0_i32_1 = arith.constant 0 : i32
    %c0_i32_2 = arith.constant 0 : i32
    return %arg0, %c0_i32, %c0_i32_0, %c0_i32_1 : i32, i32, i32, i32
  }
}

</mosaic_0001>

<llo_original>
// kernel: smpl_regressor_forward.2
$region0: #{smpl_regressor_forward.2}
  #allocation0 [shape = 'u32[]', space=smem, size = 0x4, offset = 0x4, fixed_abs, tag = 'smem constant byte address 0x4 - core index']
  #allocation1 [shape = 'u32[144,128]{1,0:T(1,128)}', space=vmem, size = 0x12000, scoped, tag = 'internal scratch']
  #allocation2 [shape = 'f32[16,128]{1,0:T(8,128)}', space=vmem, size = 0x2000, scoped, tag = 'scratch operand']
  #allocation3 [shape = 'f32[2,128]{1,0:T(2,128)}', space=vmem, size = 0x400, scoped, tag = 'scratch operand']
  %s0 = inlined_call_operand.vmem [shape: f32[16,640], index: 0, kind: input, shape index: {}]
  %s1 = inlined_call_operand.vmem [shape: f32[2,640], index: 1, kind: input, shape index: {}]
  %s2 = inlined_call_operand.hbm [shape: bf16[640,128], index: 2, kind: input, shape index: {}]
  %s3 = inlined_call_operand.hbm [shape: f32[1,128], index: 3, kind: input, shape index: {}]
  %s4 = inlined_call_operand.hbm [shape: bf16[640,128], index: 4, kind: input, shape index: {}]
  %s5 = inlined_call_operand.hbm [shape: f32[1,128], index: 5, kind: input, shape index: {}]
  %s6 = inlined_call_operand.vmem [shape: bf16[128,144], index: 6, kind: input, shape index: {}]
  %s7 = inlined_call_operand.hbm [shape: f32[1,144], index: 7, kind: input, shape index: {}]
  %s8 = inlined_call_operand.vmem [shape: bf16[128,10], index: 8, kind: input, shape index: {}]
  %s9 = inlined_call_operand.hbm [shape: f32[1,10], index: 9, kind: input, shape index: {}]
  %s10 = inlined_call_operand.vmem [shape: f32[16,144], index: 10, kind: output, shape index: {0}]
  %s11 = inlined_call_operand.vmem [shape: f32[2,10], index: 11, kind: output, shape index: {1}]
  %12 = xla_tuple %s10, %s11
  %s13 = sld [smem:[#allocation0]]
  $region151: #{smpl_regressor_forward.2} parent=0
    _
  %s15 = ssub.s32 1, %s13
  %s16 = scalar_select 0, %s15, %s13
  $region1: #{smpl_regressor_forward.2} parent=0
    #allocation4 [shape = 'u8[16384]{0}', space=vmem, size = 0x4000, scoped, tag = 'input window, operand 0']
    #allocation5 [shape = 'u8[65536]{0}', space=vmem, size = 0x10000, scoped, tag = 'input window, operand 2']
    #allocation6 [shape = 's32[2]{0}', space=sflag, size = 0x8, scoped, tag = 'scoped memory for smpl_regressor_forward.2']
    #allocation7 [shape = 'u8[512]{0}', space=vmem, size = 0x400, scoped, tag = 'input window, operand 3, single buffered']
    #allocation8 [shape = 's32[1]{0}', space=sflag, size = 0x4, scoped, tag = 'scoped memory for smpl_regressor_forward.2']
    #allocation9 [shape = 'u8[65536]{0}', space=vmem, size = 0x10000, scoped, tag = 'input window, operand 4']
    #allocation10 [shape = 'u8[512]{0}', space=vmem, size = 0x400, scoped, tag = 'input window, operand 5, single buffered']
    #allocation11 [shape = 'u8[1024]{0}', space=vmem, size = 0x400, scoped, tag = 'input window, operand 7, single buffered']
    #allocation12 [shape = 's32[1]{0}', space=sflag, size = 0x4, scoped, tag = 'scoped memory for smpl_regressor_forward.2']
    #allocation13 [shape = 'u8[512]{0}', space=vmem, size = 0x400, scoped, tag = 'input window, operand 9, single buffered']
    %17 = vsyncpa [#allocation6], 0
    %s18 = scalar_lea.sflag [#allocation6], 1
    %19 = vsyncpa %s18, 0
    %20 = vsyncpa [#allocation8], 0
    %21 = vsyncpa [#allocation12], 0
    loop: start=0, step=1, limit=7
    $region2: #{smpl_regressor_forward.2} parent=1 // loop_pre_header
      _
    $region3: #{smpl_regressor_forward.2} parent=1 // loop_header
      %s23 = sphi 0, %s27
      %p24 = scmp.ge.s32.totalorder %s23, 7
      %s33 = sphi 0, %s35
      %s36 = sphi 0, %s33
      %s37 = sphi 0, %s36
      %s53 = sphi 0, %s37
      %s59 = sphi 0, %s61
      %s62 = sphi 0, %s59
      %s63 = sphi 0, %s62
      %s79 = sphi 0, %s63
      %s85 = sphi 0, %s87
      %s88 = sphi 0, %s85
      %s89 = sphi 0, %s88
      %s105 = sphi 0, %s89
      %s109 = sphi 0, %s109
      %s111 = sphi 0, %s109
      %s112 = sphi 0, %s111
      %s126 = sphi 0, %s112
      %s132 = sphi 0, %s134
      %s135 = sphi 0, %s132
      %s136 = sphi 0, %s135
      %s152 = sphi 0, %s136
      %s156 = sphi 0, %s156
      %s158 = sphi 0, %s156
      %s159 = sphi 0, %s158
      %s173 = sphi 0, %s159
      %s177 = sphi 0, %s177
      %s179 = sphi 0, %s177
      %s180 = sphi 0, %s179
      %s194 = sphi 0, %s180
      %s198 = sphi 0, %s198
      %s200 = sphi 0, %s198
      %s201 = sphi 0, %s200
      %s215 = sphi 0, %s201
      %s219 = sphi 0, %s219
      %s221 = sphi 0, %s219
      %s222 = sphi 0, %s221
      %s236 = sphi 0, %s222
      %s240 = sphi 0, %s240
      %s242 = sphi 0, %s240
      %s243 = sphi 0, %s242
      %s257 = sphi 0, %s243
      %s261 = sphi 0, %s261
      %s263 = sphi 0, %s261
      %s264 = sphi 0, %s263
      %s278 = sphi 0, %s264
      %s282 = sphi 0, %s282
      %s284 = sphi 0, %s282
      %s285 = sphi 0, %s284
      %s299 = sphi 0, %s285
    $region4: #{smpl_regressor_forward.2} parent=1 // loop_header_branch
      %26 = sbr.rel (%p24) target = $region8
    $region5: #{smpl_regressor_forward.2} parent=1 // loop_body
      %s28 = ssub.s32 %s23, 1
      %s29 = ssub.s32 %s23, 2
      %s30 = sadd.s32 %s23, 1
      %s31 = ssub.s32 %s23, %s30
      %p32 = scmp.eq.s32.totalorder %s31, 0
      %s34 = sadd.s32 %s33, 1
      %s35 = scalar_select %p32, %s33, %s34
      %p38 = pneg %p32
      %p39 = scmp.eq.s32.totalorder %s23, 4
      %p40 = por %p38, %p39
      %p41 = scmp.ne.s32.totalorder %s33, %s36
      %p42 = scmp.eq.s32.totalorder %s23, 0
      %p43 = por %p41, %p42
      %p44 = scmp.ne.s32.totalorder %s33, %s36
      %p45 = scmp.eq.s32.totalorder %s28, 4
      %p46 = por %p44, %p45
      %p47 = scmp.ne.s32.totalorder %s36, %s37
      %p48 = scmp.eq.s32.totalorder %s28, 0
      %p49 = por %p47, %p48
      %p50 = scmp.ne.s32.totalorder %s36, %s37
      %p51 = scmp.eq.s32.totalorder %s29, 4
      %p52 = por %p50, %p51
      %p54 = scmp.ne.s32.totalorder %s37, %s53
      %p55 = scmp.eq.s32.totalorder %s29, 0
      %p56 = por %p54, %p55
      %s57 = ssub.s32 %s23, %s30
      %p58 = scmp.eq.s32.totalorder %s57, 0
      %s60 = sadd.s32 %s59, 1
      %s61 = scalar_select %p58, %s59, %s60
      %p64 = pneg %p58
      %p65 = scmp.eq.s32.totalorder %s23, 4
      %p66 = por %p64, %p65
      %p67 = scmp.ne.s32.totalorder %s59, %s62
      %p68 = scmp.eq.s32.totalorder %s23, 0
      %p69 = por %p67, %p68
      %p70 = scmp.ne.s32.totalorder %s59, %s62
      %p71 = scmp.eq.s32.totalorder %s28, 4
      %p72 = por %p70, %p71
      %p73 = scmp.ne.s32.totalorder %s62, %s63
      %p74 = scmp.eq.s32.totalorder %s28, 0
      %p75 = por %p73, %p74
      %p76 = scmp.ne.s32.totalorder %s62, %s63
      %p77 = scmp.eq.s32.totalorder %s29, 4
      %p78 = por %p76, %p77
      %p80 = scmp.ne.s32.totalorder %s63, %s79
      %p81 = scmp.eq.s32.totalorder %s29, 0
      %p82 = por %p80, %p81
      %s83 = ssub.s32 %s23, %s30
      %p84 = scmp.eq.s32.totalorder %s83, 0
      %s86 = sadd.s32 %s85, 1
      %s87 = scalar_select %p84, %s85, %s86
      %p90 = pneg %p84
      %p91 = scmp.eq.s32.totalorder %s23, 4
      %p92 = por %p90, %p91
      %p93 = scmp.ne.s32.totalorder %s85, %s88
      %p94 = scmp.eq.s32.totalorder %s23, 0
      %p95 = por %p93, %p94
      %p96 = scmp.ne.s32.totalorder %s85, %s88
      %p97 = scmp.eq.s32.totalorder %s28, 4
      %p98 = por %p96, %p97
      %p99 = scmp.ne.s32.totalorder %s88, %s89
      %p100 = scmp.eq.s32.totalorder %s28, 0
      %p101 = por %p99, %p100
      %p102 = scmp.ne.s32.totalorder %s88, %s89
      %p103 = scmp.eq.s32.totalorder %s29, 4
      %p104 = por %p102, %p103
      %p106 = scmp.ne.s32.totalorder %s89, %s105
      %p107 = scmp.eq.s32.totalorder %s29, 0
      %p108 = por %p106, %p107
      %s110 = sadd.s32 %s109, 1
      %p113 = scmp.eq.s32.totalorder %s23, 4
      %p114 = scmp.ne.s32.totalorder %s109, %s111
      %p115 = scmp.eq.s32.totalorder %s23, 0
      %p116 = por %p114, %p115
      %p117 = scmp.ne.s32.totalorder %s109, %s111
      %p118 = scmp.eq.s32.totalorder %s28, 4
      %p119 = por %p117, %p118
      %p120 = scmp.ne.s32.totalorder %s111, %s112
      %p121 = scmp.eq.s32.totalorder %s28, 0
      %p122 = por %p120, %p121
      %p123 = scmp.ne.s32.totalorder %s111, %s112
      %p124 = scmp.eq.s32.totalorder %s29, 4
      %p125 = por %p123, %p124
      %p127 = scmp.ne.s32.totalorder %s112, %s126
      %p128 = scmp.eq.s32.totalorder %s29, 0
      %p129 = por %p127, %p128
      %s130 = ssub.s32 %s23, %s30
      %p131 = scmp.eq.s32.totalorder %s130, 0
      %s133 = sadd.s32 %s132, 1
      %s134 = scalar_select %p131, %s132, %s133
      %p137 = pneg %p131
      %p138 = scmp.eq.s32.totalorder %s23, 4
      %p139 = por %p137, %p138
      %p140 = scmp.ne.s32.totalorder %s132, %s135
      %p141 = scmp.eq.s32.totalorder %s23, 0
      %p142 = por %p140, %p141
      %p143 = scmp.ne.s32.totalorder %s132, %s135
      %p144 = scmp.eq.s32.totalorder %s28, 4
      %p145 = por %p143, %p144
      %p146 = scmp.ne.s32.totalorder %s135, %s136
      %p147 = scmp.eq.s32.totalorder %s28, 0
      %p148 = por %p146, %p147
      %p149 = scmp.ne.s32.totalorder %s135, %s136
      %p150 = scmp.eq.s32.totalorder %s29, 4
      %p151 = por %p149, %p150
      %p153 = scmp.ne.s32.totalorder %s136, %s152
      %p154 = scmp.eq.s32.totalorder %s29, 0
      %p155 = por %p153, %p154
      %s157 = sadd.s32 %s156, 1
      %p160 = scmp.eq.s32.totalorder %s23, 4
      %p161 = scmp.ne.s32.totalorder %s156, %s158
      %p162 = scmp.eq.s32.totalorder %s23, 0
      %p163 = por %p161, %p162
      %p164 = scmp.ne.s32.totalorder %s156, %s158
      %p165 = scmp.eq.s32.totalorder %s28, 4
      %p166 = por %p164, %p165
      %p167 = scmp.ne.s32.totalorder %s158, %s159
      %p168 = scmp.eq.s32.totalorder %s28, 0
      %p169 = por %p167, %p168
      %p170 = scmp.ne.s32.totalorder %s158, %s159
      %p171 = scmp.eq.s32.totalorder %s29, 4
      %p172 = por %p170, %p171
      %p174 = scmp.ne.s32.totalorder %s159, %s173
      %p175 = scmp.eq.s32.totalorder %s29, 0
      %p176 = por %p174, %p175
      %s178 = sadd.s32 %s177, 1
      %p181 = scmp.eq.s32.totalorder %s23, 4
      %p182 = scmp.ne.s32.totalorder %s177, %s179
      %p183 = scmp.eq.s32.totalorder %s23, 0
      %p184 = por %p182, %p183
      %p185 = scmp.ne.s32.totalorder %s177, %s179
      %p186 = scmp.eq.s32.totalorder %s28, 4
      %p187 = por %p185, %p186
      %p188 = scmp.ne.s32.totalorder %s179, %s180
      %p189 = scmp.eq.s32.totalorder %s28, 0
      %p190 = por %p188, %p189
      %p191 = scmp.ne.s32.totalorder %s179, %s180
      %p192 = scmp.eq.s32.totalorder %s29, 4
      %p193 = por %p191, %p192
      %p195 = scmp.ne.s32.totalorder %s180, %s194
      %p196 = scmp.eq.s32.totalorder %s29, 0
      %p197 = por %p195, %p196
      %s199 = sadd.s32 %s198, 1
      %p202 = scmp.eq.s32.totalorder %s23, 4
      %p203 = scmp.ne.s32.totalorder %s198, %s200
      %p204 = scmp.eq.s32.totalorder %s23, 0
      %p205 = por %p203, %p204
      %p206 = scmp.ne.s32.totalorder %s198, %s200
      %p207 = scmp.eq.s32.totalorder %s28, 4
      %p208 = por %p206, %p207
      %p209 = scmp.ne.s32.totalorder %s200, %s201
      %p210 = scmp.eq.s32.totalorder %s28, 0
      %p211 = por %p209, %p210
      %p212 = scmp.ne.s32.totalorder %s200, %s201
      %p213 = scmp.eq.s32.totalorder %s29, 4
      %p214 = por %p212, %p213
      %p216 = scmp.ne.s32.totalorder %s201, %s215
      %p217 = scmp.eq.s32.totalorder %s29, 0
      %p218 = por %p216, %p217
      %s220 = sadd.s32 %s219, 1
      %p223 = scmp.eq.s32.totalorder %s23, 4
      %p224 = scmp.ne.s32.totalorder %s219, %s221
      %p225 = scmp.eq.s32.totalorder %s23, 0
      %p226 = por %p224, %p225
      %p227 = scmp.ne.s32.totalorder %s219, %s221
      %p228 = scmp.eq.s32.totalorder %s28, 4
      %p229 = por %p227, %p228
      %p230 = scmp.ne.s32.totalorder %s221, %s222
      %p231 = scmp.eq.s32.totalorder %s28, 0
      %p232 = por %p230, %p231
      %p233 = scmp.ne.s32.totalorder %s221, %s222
      %p234 = scmp.eq.s32.totalorder %s29, 4
      %p235 = por %p233, %p234
      %p237 = scmp.ne.s32.totalorder %s222, %s236
      %p238 = scmp.eq.s32.totalorder %s29, 0
      %p239 = por %p237, %p238
      %s241 = sadd.s32 %s240, 1
      %p244 = scmp.eq.s32.totalorder %s23, 4
      %p245 = scmp.ne.s32.totalorder %s240, %s242
      %p246 = scmp.eq.s32.totalorder %s23, 0
      %p247 = por %p245, %p246
      %p248 = scmp.ne.s32.totalorder %s240, %s242
      %p249 = scmp.eq.s32.totalorder %s28, 4
      %p250 = por %p248, %p249
      %p251 = scmp.ne.s32.totalorder %s242, %s243
      %p252 = scmp.eq.s32.totalorder %s28, 0
      %p253 = por %p251, %p252
      %p254 = scmp.ne.s32.totalorder %s242, %s243
      %p255 = scmp.eq.s32.totalorder %s29, 4
      %p256 = por %p254, %p255
      %p258 = scmp.ne.s32.totalorder %s243, %s257
      %p259 = scmp.eq.s32.totalorder %s29, 0
      %p260 = por %p258, %p259
      %s262 = sadd.s32 %s261, 1
      %p265 = scmp.eq.s32.totalorder %s23, 4
      %p266 = scmp.ne.s32.totalorder %s261, %s263
      %p267 = scmp.eq.s32.totalorder %s23, 0
      %p268 = por %p266, %p267
      %p269 = scmp.ne.s32.totalorder %s261, %s263
      %p270 = scmp.eq.s32.totalorder %s28, 4
      %p271 = por %p269, %p270
      %p272 = scmp.ne.s32.totalorder %s263, %s264
      %p273 = scmp.eq.s32.totalorder %s28, 0
      %p274 = por %p272, %p273
      %p275 = scmp.ne.s32.totalorder %s263, %s264
      %p276 = scmp.eq.s32.totalorder %s29, 4
      %p277 = por %p275, %p276
      %p279 = scmp.ne.s32.totalorder %s264, %s278
      %p280 = scmp.eq.s32.totalorder %s29, 0
      %p281 = por %p279, %p280
      %s283 = sadd.s32 %s282, 1
      %p286 = scmp.eq.s32.totalorder %s23, 4
      %p287 = scmp.ne.s32.totalorder %s282, %s284
      %p288 = scmp.eq.s32.totalorder %s23, 0
      %p289 = por %p287, %p288
      %p290 = scmp.ne.s32.totalorder %s282, %s284
      %p291 = scmp.eq.s32.totalorder %s28, 4
      %p292 = por %p290, %p291
      %p293 = scmp.ne.s32.totalorder %s284, %s285
      %p294 = scmp.eq.s32.totalorder %s28, 0
      %p295 = por %p293, %p294
      %p296 = scmp.ne.s32.totalorder %s284, %s285
      %p297 = scmp.eq.s32.totalorder %s29, 4
      %p298 = por %p296, %p297
      %p300 = scmp.ne.s32.totalorder %s285, %s299
      %p301 = scmp.eq.s32.totalorder %s29, 0
      %p302 = por %p300, %p301
      %p303 = scmp.le.s32.totalorder 1, %s23
      %p304 = scmp.lt.s32.totalorder %s23, 6
      %p305 = pnand %p303, %p304
      %p306 = pneg %p305
      // Predicated region
      $region9: #{smpl_regressor_forward.2} parent=5 // pred_check
        _
      $region10: #{smpl_regressor_forward.2} parent=5 // pred_check_branch
        %308 = sbr.rel (%p305) target = $region12
      $region11: #{smpl_regressor_forward.2} parent=5 // pred_region
        %s309 = ssub.s32 %s23, 1
        // Predicated region
        $region13: #{smpl_regressor_forward.2} parent=11 // pred_check
          %p310 = pneg %p122
        $region14: #{smpl_regressor_forward.2} parent=11 // pred_check_branch
          %312 = sbr.rel (%p310) target = $region16
        $region15: #{smpl_regressor_forward.2} parent=11 // pred_region
          %s314 = ssub.s32 16, 16
          %315 = vsyncadd [#allocation8], %s314
          %s317 = sshll.u32 [#allocation7], 4
          %s318 = int_to_ptr.vmem [resolvable:$true] %s317
          %320 = dma.hbm_to_vmem [thread:$0]  %s3, 16, %s318, [#allocation8]
        $region16: #{smpl_regressor_forward.2} parent=11 // pred_fallthru
          _
        // Predicated region
        $region17: #{smpl_regressor_forward.2} parent=11 // pred_check
          %p321 = pneg %p169
        $region18: #{smpl_regressor_forward.2} parent=11 // pred_check_branch
          %323 = sbr.rel (%p321) target = $region20
        $region19: #{smpl_regressor_forward.2} parent=11 // pred_region
          %s325 = ssub.s32 16, 16
          %326 = vsyncadd [#allocation8], %s325
          %s328 = sshll.u32 [#allocation10], 4
          %s329 = int_to_ptr.vmem [resolvable:$true] %s328
          %331 = dma.hbm_to_vmem [thread:$0]  %s5, 16, %s329, [#allocation8]
        $region20: #{smpl_regressor_forward.2} parent=11 // pred_fallthru
          _
        // Predicated region
        $region21: #{smpl_regressor_forward.2} parent=11 // pred_check
          %p332 = pneg %p190
        $region22: #{smpl_regressor_forward.2} parent=11 // pred_check_branch
          %334 = sbr.rel (%p332) target = $region24
        $region23: #{smpl_regressor_forward.2} parent=11 // pred_region
          _
        $region24: #{smpl_regressor_forward.2} parent=11 // pred_fallthru
          _
        // Predicated region
        $region25: #{smpl_regressor_forward.2} parent=11 // pred_check
          %p335 = pneg %p211
        $region26: #{smpl_regressor_forward.2} parent=11 // pred_check_branch
          %337 = sbr.rel (%p335) target = $region28
        $region27: #{smpl_regressor_forward.2} parent=11 // pred_region
          %s339 = ssub.s32 32, 32
          %340 = vsyncadd [#allocation12], %s339
          %s342 = sshll.u32 [#allocation11], 4
          %s343 = int_to_ptr.vmem [resolvable:$true] %s342
          %345 = dma.hbm_to_vmem [thread:$0]  %s7, 32, %s343, [#allocation12]
        $region28: #{smpl_regressor_forward.2} parent=11 // pred_fallthru
          _
        // Predicated region
        $region29: #{smpl_regressor_forward.2} parent=11 // pred_check
          %p346 = pneg %p232
        $region30: #{smpl_regressor_forward.2} parent=11 // pred_check_branch
          %348 = sbr.rel (%p346) target = $region32
        $region31: #{smpl_regressor_forward.2} parent=11 // pred_region
          _
        $region32: #{smpl_regressor_forward.2} parent=11 // pred_fallthru
          _
        // Predicated region
        $region33: #{smpl_regressor_forward.2} parent=11 // pred_check
          %p349 = pneg %p253
        $region34: #{smpl_regressor_forward.2} parent=11 // pred_check_branch
          %351 = sbr.rel (%p349) target = $region36
        $region35: #{smpl_regressor_forward.2} parent=11 // pred_region
          %s353 = ssub.s32 16, 16
          %354 = vsyncadd [#allocation12], %s353
          %s356 = sshll.u32 [#allocation13], 4
          %s357 = int_to_ptr.vmem [resolvable:$true] %s356
          %359 = dma.hbm_to_vmem [thread:$0]  %s9, 16, %s357, [#allocation12]
        $region36: #{smpl_regressor_forward.2} parent=11 // pred_fallthru
          _
      $region12: #{smpl_regressor_forward.2} parent=5 // pred_fallthru
        _
      %p360 = scmp.lt.s32.totalorder %s23, 5
      // Predicated region
      $region37: #{smpl_regressor_forward.2} parent=5 // pred_check
        %p361 = pneg %p360
      $region38: #{smpl_regressor_forward.2} parent=5 // pred_check_branch
        %363 = sbr.rel (%p361) target = $region40
      $region39: #{smpl_regressor_forward.2} parent=5 // pred_region
        // Predicated region
        $region41: #{smpl_regressor_forward.2} parent=39 // pred_check
          %p364 = pneg %p43
        $region42: #{smpl_regressor_forward.2} parent=39 // pred_check_branch
          %366 = sbr.rel (%p364) target = $region44
        $region43: #{smpl_regressor_forward.2} parent=39 // pred_region
          %s367 = sand.u32 %s33, 1
          %s368 = sand.u32 %s33, 1
          %s369 = smul.addr %s368, 16
          %s370 = scalar_lea.vmem [#allocation4], %s369
          %s371 = smul.addr %s23, 8
          %s372 = scalar_lea.vmem %s0, %s371
          // Predicated region
          $region45: #{smpl_regressor_forward.2} parent=43 // pred_check
            _
          $region46: #{smpl_regressor_forward.2} parent=43 // pred_check_branch
            %374 = sbr.rel (0) target = $region48
          $region47: #{smpl_regressor_forward.2} parent=43 // pred_region
            // Predicated region
            $region49: #{smpl_regressor_forward.2} parent=47 // pred_check
              _
            $region50: #{smpl_regressor_forward.2} parent=47 // pred_check_branch
              %376 = sbr.rel (0) target = $region52
            $region51: #{smpl_regressor_forward.2} parent=47 // pred_region
              // Predicated region
              $region64: #{smpl_regressor_forward.2} parent=51 // pred_check
                _
              $region65: #{smpl_regressor_forward.2} parent=51 // pred_check_branch
                %393 = sbr.rel (0) target = $region67
              $region66: #{smpl_regressor_forward.2} parent=51 // pred_region
                loop: start=0, step=1, limit=1
                $region68: #{smpl_regressor_forward.2} parent=66 // loop_pre_header
                  _
                $region69: #{smpl_regressor_forward.2} parent=66 // loop_header
                  %s395 = sphi 0, %s399
                  %p396 = scmp.ge.s32.totalorder %s395, 1
                  %s400 = sphi %s372, %s372
                  %s401 = sphi %s370, %s370
                $region70: #{smpl_regressor_forward.2} parent=66 // loop_header_branch
                  %398 = sbr.rel (%p396) target = $region74
                $region71: #{smpl_regressor_forward.2} parent=66 // loop_body
                  %v402 = vld [vmem:[%s400] sm:$0xff]
                  %403 = vst [vmem:[%s401] sm:$0xff] %v402
                  %v404 = vld [vmem:[%s400 + $0x28] sm:$0xff]
                  %405 = vst [vmem:[%s401 + $0x8] sm:$0xff] %v404
                $region72: #{smpl_regressor_forward.2} parent=66 // loop_footer
                  %s399 = sadd.s32 1, %s395
                $region73: #{smpl_regressor_forward.2} parent=66 // loop_footer_branch
                  %394 = sbr.rel target = $region69
                $region74: #{smpl_regressor_forward.2} parent=66 // loop_exit
                  _
              $region67: #{smpl_regressor_forward.2} parent=51 // pred_fallthru
                _
              // Predicated region
              $region75: #{smpl_regressor_forward.2} parent=51 // pred_check
                _
              $region76: #{smpl_regressor_forward.2} parent=51 // pred_check_branch
                %407 = sbr.rel target = $region78
              $region77: #{smpl_regressor_forward.2} parent=51 // pred_region
                _
              $region78: #{smpl_regressor_forward.2} parent=51 // pred_fallthru
                _
            $region52: #{smpl_regressor_forward.2} parent=47 // pred_fallthru
              _
            // Predicated region
            $region53: #{smpl_regressor_forward.2} parent=47 // pred_check
              _
            $region54: #{smpl_regressor_forward.2} parent=47 // pred_check_branch
              %378 = sbr.rel target = $region56
            $region55: #{smpl_regressor_forward.2} parent=47 // pred_region
              loop: start=0, step=1, limit=1
              $region57: #{smpl_regressor_forward.2} parent=55 // loop_pre_header
                _
              $region58: #{smpl_regressor_forward.2} parent=55 // loop_header
                %s381 = sphi 0, %s385
                %p382 = scmp.ge.s32.totalorder %s381, 1
                %s386 = sphi %s372, %s372
                %s387 = sphi %s370, %s370
              $region59: #{smpl_regressor_forward.2} parent=55 // loop_header_branch
                %384 = sbr.rel (%p382) target = $region63
              $region60: #{smpl_regressor_forward.2} parent=55 // loop_body
                %v388 = vld [vmem:[%s386] sm:$0xff]
                %389 = vst [vmem:[%s387] sm:$0xff] %v388
                %v390 = vld [vmem:[%s386 + $0x28] sm:$0xff]
                %391 = vst [vmem:[%s387 + $0x8] sm:$0xff] %v390
              $region61: #{smpl_regressor_forward.2} parent=55 // loop_footer
                %s385 = sadd.s32 1, %s381
              $region62: #{smpl_regressor_forward.2} parent=55 // loop_footer_branch
                %380 = sbr.rel target = $region58
              $region63: #{smpl_regressor_forward.2} parent=55 // loop_exit
                _
            $region56: #{smpl_regressor_forward.2} parent=47 // pred_fallthru
              _
          $region48: #{smpl_regressor_forward.2} parent=43 // pred_fallthru
            _
          %408 = vnop
        $region44: #{smpl_regressor_forward.2} parent=39 // pred_fallthru
          _
        // Predicated region
        $region79: #{smpl_regressor_forward.2} parent=39 // pred_check
          %p409 = pneg %p69
        $region80: #{smpl_regressor_forward.2} parent=39 // pred_check_branch
          %411 = sbr.rel (%p409) target = $region82
        $region81: #{smpl_regressor_forward.2} parent=39 // pred_region
          %p412 = scmp.lt.s32.totalorder %s23, 4
          %s413 = scalar_select %p412, %s23, 4
          %s414 = smul.addr %s413, 2
          %s415 = scalar_lea.vmem %s1, %s414
        $region82: #{smpl_regressor_forward.2} parent=39 // pred_fallthru
          _
        // Predicated region
        $region83: #{smpl_regressor_forward.2} parent=39 // pred_check
          %p416 = pneg %p95
        $region84: #{smpl_regressor_forward.2} parent=39 // pred_check_branch
          %418 = sbr.rel (%p416) target = $region86
        $region85: #{smpl_regressor_forward.2} parent=39 // pred_region
          %s419 = sand.u32 %s23, 1
          %s420 = scalar_lea.sflag [#allocation6], %s419
          %s421 = sand.u32 %s85, 1
          %s422 = smul.addr %s421, 64
          %s423 = scalar_lea.vmem [#allocation5], %s422
          %s424 = smul.u32 16, %s23
          %s426 = ssub.s32 1024, 1024
          %427 = vsyncadd %s420, %s426
          %s428 = smul.addr %s424, 64
          %s429 = scalar_lea.hbm %s2, %s428
          %s430 = sshll.u32 %s423, 4
          %s431 = int_to_ptr.vmem [resolvable:$true] %s430
          %436 = dma.hbm_to_vmem [thread:$0]  %s429, 1024, %s431, %s420, 64, 64, 4
        $region86: #{smpl_regressor_forward.2} parent=39 // pred_fallthru
          _
        // Predicated region
        $region87: #{smpl_regressor_forward.2} parent=39 // pred_check
          %p437 = pneg %p142
        $region88: #{smpl_regressor_forward.2} parent=39 // pred_check_branch
          %439 = sbr.rel (%p437) target = $region90
        $region89: #{smpl_regressor_forward.2} parent=39 // pred_region
          %s440 = sand.u32 %s23, 1
          %s441 = scalar_lea.sflag [#allocation6], %s440
          %s442 = sand.u32 %s132, 1
          %s443 = smul.addr %s442, 64
          %s444 = scalar_lea.vmem [#allocation9], %s443
          %s445 = smul.u32 16, %s23
          %s447 = ssub.s32 1024, 1024
          %448 = vsyncadd %s441, %s447
          %s449 = smul.addr %s445, 64
          %s450 = scalar_lea.hbm %s4, %s449
          %s451 = sshll.u32 %s444, 4
          %s452 = int_to_ptr.vmem [resolvable:$true] %s451
          %457 = dma.hbm_to_vmem [thread:$0]  %s450, 1024, %s452, %s441, 64, 64, 4
        $region90: #{smpl_regressor_forward.2} parent=39 // pred_fallthru
          _
      $region40: #{smpl_regressor_forward.2} parent=5 // pred_fallthru
        _
      %p458 = scmp.le.s32.totalorder 1, %s23
      %p459 = scmp.lt.s32.totalorder %s23, 6
      %p460 = pnand %p458, %p459
      %p461 = pneg %p460
      // Predicated region
      $region91: #{smpl_regressor_forward.2} parent=5 // pred_check
        _
      $region92: #{smpl_regressor_forward.2} parent=5 // pred_check_branch
        %463 = sbr.rel (%p460) target = $region94
      $region93: #{smpl_regressor_forward.2} parent=5 // pred_region
        %s464 = ssub.s32 %s23, 1
        %s465 = sand.u32 %s36, 1
        %s466 = sand.u32 %s36, 1
        %s467 = smul.addr %s466, 16
        %s468 = scalar_lea.vmem [#allocation4], %s467
        // Predicated region
        $region95: #{smpl_regressor_forward.2} parent=93 // pred_check
          %p469 = pneg %p49
        $region96: #{smpl_regressor_forward.2} parent=93 // pred_check_branch
          %471 = sbr.rel (%p469) target = $region98
        $region97: #{smpl_regressor_forward.2} parent=93 // pred_region
          _
        $region98: #{smpl_regressor_forward.2} parent=93 // pred_fallthru
          _
        %s472 = sand.u32 %s28, 1
        %s473 = scalar_lea.sflag [#allocation6], %s472
        %s474 = sand.u32 %s88, 1
        %s475 = smul.addr %s474, 64
        %s476 = scalar_lea.vmem [#allocation5], %s475
        // Predicated region
        $region99: #{smpl_regressor_forward.2} parent=93 // pred_check
          %p477 = pneg %p101
        $region100: #{smpl_regressor_forward.2} parent=93 // pred_check_branch
          %479 = sbr.rel (%p477) target = $region102
        $region101: #{smpl_regressor_forward.2} parent=93 // pred_region
          %480 = dma.done %s473, 1024
        $region102: #{smpl_regressor_forward.2} parent=93 // pred_fallthru
          _
        // Predicated region
        $region103: #{smpl_regressor_forward.2} parent=93 // pred_check
          %p481 = pneg %p122
        $region104: #{smpl_regressor_forward.2} parent=93 // pred_check_branch
          %483 = sbr.rel (%p481) target = $region106
        $region105: #{smpl_regressor_forward.2} parent=93 // pred_region
          %484 = dma.done [#allocation8], 16
        $region106: #{smpl_regressor_forward.2} parent=93 // pred_fallthru
          _
        %s485 = sand.u32 %s28, 1
        %s486 = scalar_lea.sflag [#allocation6], %s485
        %s487 = sand.u32 %s135, 1
        %s488 = smul.addr %s487, 64
        %s489 = scalar_lea.vmem [#allocation9], %s488
        // Predicated region
        $region107: #{smpl_regressor_forward.2} parent=93 // pred_check
          %p490 = pneg %p148
        $region108: #{smpl_regressor_forward.2} parent=93 // pred_check_branch
          %492 = sbr.rel (%p490) target = $region110
        $region109: #{smpl_regressor_forward.2} parent=93 // pred_region
          %493 = dma.done %s486, 1024
        $region110: #{smpl_regressor_forward.2} parent=93 // pred_fallthru
          _
        // Predicated region
        $region111: #{smpl_regressor_forward.2} parent=93 // pred_check
          %p494 = pneg %p169
        $region112: #{smpl_regressor_forward.2} parent=93 // pred_check_branch
          %496 = sbr.rel (%p494) target = $region114
        $region113: #{smpl_regressor_forward.2} parent=93 // pred_region
          %497 = dma.done [#allocation8], 16
        $region114: #{smpl_regressor_forward.2} parent=93 // pred_fallthru
          _
        // Predicated region
        $region115: #{smpl_regressor_forward.2} parent=93 // pred_check
          %p498 = pneg %p211
        $region116: #{smpl_regressor_forward.2} parent=93 // pred_check_branch
          %500 = sbr.rel (%p498) target = $region118
        $region117: #{smpl_regressor_forward.2} parent=93 // pred_region
          %501 = dma.done [#allocation12], 32
        $region118: #{smpl_regressor_forward.2} parent=93 // pred_fallthru
          _
        // Predicated region
        $region119: #{smpl_regressor_forward.2} parent=93 // pred_check
          %p502 = pneg %p253
        $region120: #{smpl_regressor_forward.2} parent=93 // pred_check_branch
          %504 = sbr.rel (%p502) target = $region122
        $region121: #{smpl_regressor_forward.2} parent=93 // pred_region
          %505 = dma.done [#allocation12], 16
        $region122: #{smpl_regressor_forward.2} parent=93 // pred_fallthru
          _
        %s506 = sand.u32 %s36, 1
        %s507 = sand.u32 %s36, 1
        %s508 = smul.addr %s507, 16
        %s509 = scalar_lea.vmem [#allocation4], %s508
        %p510 = pneg %p49
        %p511 = pneg %p46
        %p512 = scmp.lt.s32.totalorder %s28, 4
        %s513 = scalar_select %p512, %s28, 4
        %s514 = smul.addr %s513, 2
        %s515 = scalar_lea.vmem %s1, %s514
        %p516 = pneg %p75
        %p517 = pneg %p72
        %s518 = sand.u32 %s28, 1
        %s519 = scalar_lea.sflag [#allocation6], %s518
        %s520 = sand.u32 %s88, 1
        %s521 = smul.addr %s520, 64
        %s522 = scalar_lea.vmem [#allocation5], %s521
        %p523 = pneg %p101
        %p524 = pneg %p98
        %p525 = pneg %p122
        %p526 = pneg %p119
        %s527 = sand.u32 %s28, 1
        %s528 = scalar_lea.sflag [#allocation6], %s527
        %s529 = sand.u32 %s135, 1
        %s530 = smul.addr %s529, 64
        %s531 = scalar_lea.vmem [#allocation9], %s530
        %p532 = pneg %p148
        %p533 = pneg %p145
        %p534 = pneg %p169
        %p535 = pneg %p166
        %p536 = pneg %p190
        %p537 = pneg %p187
        %p538 = pneg %p211
        %p539 = pneg %p208
        %p540 = pneg %p232
        %p541 = pneg %p229
        %p542 = pneg %p253
        %p543 = pneg %p250
        %p544 = pneg %p274
        %p545 = pneg %p271
        %p546 = pneg %p295
        %p547 = pneg %p292
        %p548 = scmp.lt.s32.totalorder %s28, 4
        %s549 = scalar_select %p548, %s28, 4
        %s550 = smul.addr %s549, 2
        %s551 = scalar_lea.vmem %s1, %s550
        %s552 = smul.u32 16, %s28
        %s553 = smul.u32 16, %s28
        %p555 = scmp.eq.s32.totalorder %s28, 0
        // Predicated region
        $region123: #{smpl_regressor_forward.2} parent=93 // pred_check
          %p556 = pneg %p555
        $region124: #{smpl_regressor_forward.2} parent=93 // pred_check_branch
          %558 = sbr.rel (%p556) target = $region126
        $region125: #{smpl_regressor_forward.2} parent=93 // pred_region
          %559 = vst [vmem:[#allocation2] sm:$0xff] 0.0
          %560 = vst [vmem:[#allocation2 + $0x8] sm:$0xff] 0.0
          %561 = vst [vmem:[#allocation3] sm:$0x3] 0.0
        $region126: #{smpl_regressor_forward.2} parent=93 // pred_fallthru
          _
        %v562 = vld [vmem:[#allocation2] sm:$0xff]
        %v563 = vld [vmem:[#allocation2 + $0x8] sm:$0xff]
        %v564 = vld [vmem:[%s468] sm:$0xff]
        %v565 = vld [vmem:[%s468 + $0x8] sm:$0xff]
        %v566 = vpack.c.bf16 %v565, %v564
        %v567 = vld [vmem:[%s476] sm:$0xf]
        %v568 = vld [vmem:[%s476 + $0x4] sm:$0xf]
        %v569 = vld [vmem:[%s476 + $0x8] sm:$0xf]
        %v570 = vld [vmem:[%s476 + $0xc] sm:$0xf]
        %v571 = vld [vmem:[%s476 + $0x10] sm:$0xf]
        %v572 = vld [vmem:[%s476 + $0x14] sm:$0xf]
        %v573 = vld [vmem:[%s476 + $0x18] sm:$0xf]
        %v574 = vld [vmem:[%s476 + $0x1c] sm:$0xf]
        %v575 = vld [vmem:[%s476 + $0x20] sm:$0xf]
        %v576 = vld [vmem:[%s476 + $0x24] sm:$0xf]
        %v577 = vld [vmem:[%s476 + $0x28] sm:$0xf]
        %v578 = vld [vmem:[%s476 + $0x2c] sm:$0xf]
        %v579 = vld [vmem:[%s476 + $0x30] sm:$0xf]
        %v580 = vld [vmem:[%s476 + $0x34] sm:$0xf]
        %v581 = vld [vmem:[%s476 + $0x38] sm:$0xf]
        %v582 = vld [vmem:[%s476 + $0x3c] sm:$0xf]
        %v599 = vunpack.c.l.b16 %v567
        %v600 = vunpack.c.l.b16 %v568
        %v601 = vunpack.c.l.b16 %v569
        %v602 = vunpack.c.l.b16 %v570
        %v603 = vunpack.c.l.b16 %v571
        %v604 = vunpack.c.l.b16 %v572
        %v605 = vunpack.c.l.b16 %v573
        %v606 = vunpack.c.l.b16 %v574
        %v607 = vunpack.c.l.b16 %v575
        %v608 = vunpack.c.l.b16 %v576
        %v609 = vunpack.c.l.b16 %v577
        %v610 = vunpack.c.l.b16 %v578
        %v611 = vunpack.c.l.b16 %v579
        %v612 = vunpack.c.l.b16 %v580
        %v613 = vunpack.c.l.b16 %v581
        %v614 = vunpack.c.l.b16 %v582
        %v615 = vpack.c.b16 %v600, %v599
        %v616 = vpack.c.b16 %v602, %v601
        %v617 = vpack.c.b16 %v604, %v603
        %v618 = vpack.c.b16 %v606, %v605
        %v619 = vpack.c.b16 %v608, %v607
        %v620 = vpack.c.b16 %v610, %v609
        %v621 = vpack.c.b16 %v612, %v611
        %v622 = vpack.c.b16 %v614, %v613
        %631 = vmatprep.subr.bf16.mxu0 0
        %632 = vmatpush1.bf16.msra.mxu0 %v615
        %633 = vmatprep.subr.bf16.mxu0 0
        %634 = vmatpush1.bf16.msra.mxu0 %v616
        %635 = vmatprep.subr.bf16.mxu0 0
        %636 = vmatpush1.bf16.msra.mxu0 %v617
        %637 = vmatprep.subr.bf16.mxu0 0
        %638 = vmatpush1.bf16.msra.mxu0 %v618
        %639 = vmatprep.subr.bf16.mxu0 0
        %640 = vmatpush1.bf16.msra.mxu0 %v619
        %641 = vmatprep.subr.bf16.mxu0 0
        %642 = vmatpush1.bf16.msra.mxu0 %v620
        %643 = vmatprep.subr.bf16.mxu0 0
        %644 = vmatpush1.bf16.msra.mxu0 %v621
        %645 = vmatprep.subr.bf16.mxu0 0
        %646 = vmatpush1.bf16.msra.mxu0 %v622
        %647 = vmatprep.subr.bf16.mxu0 0
        %648 = vmatpush1.bf16.msra.mxu0 0
        %649 = vmatprep.subr.bf16.mxu0 0
        %650 = vmatpush1.bf16.msra.mxu0 0
        %651 = vmatprep.subr.bf16.mxu0 0
        %652 = vmatpush1.bf16.msra.mxu0 0
        %653 = vmatprep.subr.bf16.mxu0 0
        %654 = vmatpush1.bf16.msra.mxu0 0
        %655 = vmatprep.subr.bf16.mxu0 0
        %656 = vmatpush1.bf16.msra.mxu0 0
        %657 = vmatprep.subr.bf16.mxu0 0
        %658 = vmatpush1.bf16.msra.mxu0 0
        %659 = vmatprep.subr.bf16.mxu0 0
        %660 = vmatpush1.bf16.msra.mxu0 0
        %661 = vmatprep.subr.bf16.mxu0 0
        %662 = vmatpush1.bf16.msra.mxu0 0
        %663 = vmatprep.mubr.bf16.mxu0 0
        %664 = vmatmul.mubr.bf16.gmra.mrb[0].mxu0 %v566
        %v665 = vpop.f32.mrb[0].mxu0
        %v666 = vadd.f32 0.0, %v665
        %v667 = vpop.f32.mrb[0].mxu0
        %v668 = vpop.f32.mrb[0].mxu0
        %v669 = vadd.f32 0.0, %v668
        %v670 = vpop.f32.mrb[0].mxu0
        %671 = vdwg.mxu0
        %v672 = vadd.f32 %v562, %v666
        %v673 = vadd.f32 %v563, %v669
        %674 = vst [vmem:[#allocation2] sm:$0xff] %v672
        %675 = vst [vmem:[#allocation2 + $0x8] sm:$0xff] %v673
        %v676 = vld [vmem:[#allocation3] sm:$0x3]
        %v677 = vld [vmem:[%s551] sm:$0x3]
        %v678 = vpack.c.bf16 %v677, %v677
        %v679 = vld [vmem:[%s489] sm:$0xf]
        %v680 = vld [vmem:[%s489 + $0x4] sm:$0xf]
        %v681 = vld [vmem:[%s489 + $0x8] sm:$0xf]
        %v682 = vld [vmem:[%s489 + $0xc] sm:$0xf]
        %v683 = vld [vmem:[%s489 + $0x10] sm:$0xf]
        %v684 = vld [vmem:[%s489 + $0x14] sm:$0xf]
        %v685 = vld [vmem:[%s489 + $0x18] sm:$0xf]
        %v686 = vld [vmem:[%s489 + $0x1c] sm:$0xf]
        %v687 = vld [vmem:[%s489 + $0x20] sm:$0xf]
        %v688 = vld [vmem:[%s489 + $0x24] sm:$0xf]
        %v689 = vld [vmem:[%s489 + $0x28] sm:$0xf]
        %v690 = vld [vmem:[%s489 + $0x2c] sm:$0xf]
        %v691 = vld [vmem:[%s489 + $0x30] sm:$0xf]
        %v692 = vld [vmem:[%s489 + $0x34] sm:$0xf]
        %v693 = vld [vmem:[%s489 + $0x38] sm:$0xf]
        %v694 = vld [vmem:[%s489 + $0x3c] sm:$0xf]
        %v711 = vunpack.c.l.b16 %v679
        %v712 = vunpack.c.l.b16 %v680
        %v713 = vunpack.c.l.b16 %v681
        %v714 = vunpack.c.l.b16 %v682
        %v715 = vunpack.c.l.b16 %v683
        %v716 = vunpack.c.l.b16 %v684
        %v717 = vunpack.c.l.b16 %v685
        %v718 = vunpack.c.l.b16 %v686
        %v719 = vunpack.c.l.b16 %v687
        %v720 = vunpack.c.l.b16 %v688
        %v721 = vunpack.c.l.b16 %v689
        %v722 = vunpack.c.l.b16 %v690
        %v723 = vunpack.c.l.b16 %v691
        %v724 = vunpack.c.l.b16 %v692
        %v725 = vunpack.c.l.b16 %v693
        %v726 = vunpack.c.l.b16 %v694
        %v727 = vpack.c.b16 %v712, %v711
        %v728 = vpack.c.b16 %v714, %v713
        %v729 = vpack.c.b16 %v716, %v715
        %v730 = vpack.c.b16 %v718, %v717
        %v731 = vpack.c.b16 %v720, %v719
        %v732 = vpack.c.b16 %v722, %v721
        %v733 = vpack.c.b16 %v724, %v723
        %v734 = vpack.c.b16 %v726, %v725
        %743 = vmatprep.subr.bf16.mxu0 0
        %744 = vmatpush1.bf16.msra.mxu0 %v727
        %745 = vmatprep.subr.bf16.mxu0 0
        %746 = vmatpush1.bf16.msra.mxu0 %v728
        %747 = vmatprep.subr.bf16.mxu0 0
        %748 = vmatpush1.bf16.msra.mxu0 %v729
        %749 = vmatprep.subr.bf16.mxu0 0
        %750 = vmatpush1.bf16.msra.mxu0 %v730
        %751 = vmatprep.subr.bf16.mxu0 0
        %752 = vmatpush1.bf16.msra.mxu0 %v731
        %753 = vmatprep.subr.bf16.mxu0 0
        %754 = vmatpush1.bf16.msra.mxu0 %v732
        %755 = vmatprep.subr.bf16.mxu0 0
        %756 = vmatpush1.bf16.msra.mxu0 %v733
        %757 = vmatprep.subr.bf16.mxu0 0
        %758 = vmatpush1.bf16.msra.mxu0 %v734
        %759 = vmatprep.subr.bf16.mxu0 0
        %760 = vmatpush1.bf16.msra.mxu0 0
        %761 = vmatprep.subr.bf16.mxu0 0
        %762 = vmatpush1.bf16.msra.mxu0 0
        %763 = vmatprep.subr.bf16.mxu0 0
        %764 = vmatpush1.bf16.msra.mxu0 0
        %765 = vmatprep.subr.bf16.mxu0 0
        %766 = vmatpush1.bf16.msra.mxu0 0
        %767 = vmatprep.subr.bf16.mxu0 0
        %768 = vmatpush1.bf16.msra.mxu0 0
        %769 = vmatprep.subr.bf16.mxu0 0
        %770 = vmatpush1.bf16.msra.mxu0 0
        %771 = vmatprep.subr.bf16.mxu0 0
        %772 = vmatpush1.bf16.msra.mxu0 0
        %773 = vmatprep.subr.bf16.mxu0 0
        %774 = vmatpush1.bf16.msra.mxu0 0
        %775 = vmatprep.mubr.bf16.mxu0 0
        %776 = vmatmul.mubr.bf16.gmra.mrb[0].mxu0 %v678
        %v777 = vpop.f32.mrb[0].mxu0
        %v778 = vadd.f32 0.0, %v777
        %v779 = vpop.f32.mrb[0].mxu0
        %v780 = vpop.f32.mrb[0].mxu0
        %v781 = vpop.f32.mrb[0].mxu0
        %782 = vdwg.mxu0
        %v783 = vadd.f32 %v676, %v778
        %784 = vst [vmem:[#allocation3] sm:$0x3] %v783
        %p785 = scmp.eq.s32.totalorder %s28, 4
        // Predicated region
        $region127: #{smpl_regressor_forward.2} parent=93 // pred_check
          %p786 = pneg %p785
        $region128: #{smpl_regressor_forward.2} parent=93 // pred_check_branch
          %788 = sbr.rel (%p786) target = $region130
        $region129: #{smpl_regressor_forward.2} parent=93 // pred_region
          %v789 = vld [vmem:[#allocation2] sm:$0xff]
          %v790 = vld [vmem:[#allocation2 + $0x8] sm:$0xff]
          %v791 = vld [vmem:[#allocation7] sm:$0x1]
          %v793 = vlaneseq
          %v794 = vshrl.u32 %v793, 7
          %v795 = vsub.s32 0, %v794
          %v796 = vrot.slane %v791, %v795
          %v798 = vadd.f32 %v789, %v796
          %v799 = vadd.f32 %v790, %v796
          %v800 = vmax.f32 %v798, 0.0
          %v801 = vmax.f32 %v799, 0.0
          %v802 = vpack.c.bf16 %v801, %v800
          %v803 = vld [vmem:[%s6] sm:$0xff]
          %v804 = vld [vmem:[%s6 + $0x8] sm:$0xff]
          %v805 = vld [vmem:[%s6 + $0x10] sm:$0xff]
          %v806 = vld [vmem:[%s6 + $0x18] sm:$0xff]
          %v807 = vld [vmem:[%s6 + $0x20] sm:$0xff]
          %v808 = vld [vmem:[%s6 + $0x28] sm:$0xff]
          %v809 = vld [vmem:[%s6 + $0x30] sm:$0xff]
          %v810 = vld [vmem:[%s6 + $0x38] sm:$0xff]
          %v811 = vld [vmem:[%s6 + $0x40] sm:$0xff]
          %v812 = vld [vmem:[%s6 + $0x48] sm:$0xff]
          %v813 = vld [vmem:[%s6 + $0x50] sm:$0xff]
          %v814 = vld [vmem:[%s6 + $0x58] sm:$0xff]
          %v815 = vld [vmem:[%s6 + $0x60] sm:$0xff]
          %v816 = vld [vmem:[%s6 + $0x68] sm:$0xff]
          %v817 = vld [vmem:[%s6 + $0x70] sm:$0xff]
          %v818 = vld [vmem:[%s6 + $0x78] sm:$0xff]
          %v819 = vld [vmem:[#allocation11] sm:$0x3]
          %v821 = vlaneseq
          %v822 = vshrl.u32 %v821, 7
          %v823 = vsub.s32 0, %v822
          %v824 = vrot.slane %v819, %v823
          %v825 = vlaneseq
          %v826 = vshrl.u32 %v825, 7
          %v827 = vsub.s32 1, %v826
          %v828 = vrot.slane %v819, %v827
          %v847 = vunpack.c.l.b16 %v803
          %v848 = vunpack.c.h.b16 %v803
          %v849 = vunpack.c.l.b16 %v804
          %v850 = vunpack.c.h.b16 %v804
          %v851 = vunpack.c.l.b16 %v805
          %v852 = vunpack.c.h.b16 %v805
          %v853 = vunpack.c.l.b16 %v806
          %v854 = vunpack.c.h.b16 %v806
          %v855 = vunpack.c.l.b16 %v807
          %v856 = vunpack.c.h.b16 %v807
          %v857 = vunpack.c.l.b16 %v808
          %v858 = vunpack.c.h.b16 %v808
          %v859 = vunpack.c.l.b16 %v809
          %v860 = vunpack.c.h.b16 %v809
          %v861 = vunpack.c.l.b16 %v810
          %v862 = vunpack.c.h.b16 %v810
          %v863 = vunpack.c.l.b16 %v811
          %v864 = vunpack.c.h.b16 %v811
          %v865 = vunpack.c.l.b16 %v812
          %v866 = vunpack.c.h.b16 %v812
          %v867 = vunpack.c.l.b16 %v813
          %v868 = vunpack.c.h.b16 %v813
          %v869 = vunpack.c.l.b16 %v814
          %v870 = vunpack.c.h.b16 %v814
          %v871 = vunpack.c.l.b16 %v815
          %v872 = vunpack.c.h.b16 %v815
          %v873 = vunpack.c.l.b16 %v816
          %v874 = vunpack.c.h.b16 %v816
          %v875 = vunpack.c.l.b16 %v817
          %v876 = vunpack.c.h.b16 %v817
          %v877 = vunpack.c.l.b16 %v818
          %v878 = vunpack.c.h.b16 %v818
          %v879 = vpack.c.b16 %v849, %v847
          %v880 = vpack.c.b16 %v850, %v848
          %v881 = vpack.c.b16 %v853, %v851
          %v882 = vpack.c.b16 %v854, %v852
          %v883 = vpack.c.b16 %v857, %v855
          %v884 = vpack.c.b16 %v858, %v856
          %v885 = vpack.c.b16 %v861, %v859
          %v886 = vpack.c.b16 %v862, %v860
          %v887 = vpack.c.b16 %v865, %v863
          %v888 = vpack.c.b16 %v866, %v864
          %v889 = vpack.c.b16 %v869, %v867
          %v890 = vpack.c.b16 %v870, %v868
          %v891 = vpack.c.b16 %v873, %v871
          %v892 = vpack.c.b16 %v874, %v872
          %v893 = vpack.c.b16 %v877, %v875
          %v894 = vpack.c.b16 %v878, %v876
          %911 = vmatprep.subr.bf16.mxu0 %v880
          %912 = vmatpush1.bf16.msra.mxu0 %v879
          %913 = vmatprep.subr.bf16.mxu0 %v882
          %914 = vmatpush1.bf16.msra.mxu0 %v881
          %915 = vmatprep.subr.bf16.mxu0 %v884
          %916 = vmatpush1.bf16.msra.mxu0 %v883
          %917 = vmatprep.subr.bf16.mxu0 %v886
          %918 = vmatpush1.bf16.msra.mxu0 %v885
          %919 = vmatprep.subr.bf16.mxu0 %v888
          %920 = vmatpush1.bf16.msra.mxu0 %v887
          %921 = vmatprep.subr.bf16.mxu0 %v890
          %922 = vmatpush1.bf16.msra.mxu0 %v889
          %923 = vmatprep.subr.bf16.mxu0 %v892
          %924 = vmatpush1.bf16.msra.mxu0 %v891
          %925 = vmatprep.subr.bf16.mxu0 %v894
          %926 = vmatpush1.bf16.msra.mxu0 %v893
          %927 = vmatprep.subr.bf16.mxu0 0
          %928 = vmatpush1.bf16.msra.mxu0 0
          %929 = vmatprep.subr.bf16.mxu0 0
          %930 = vmatpush1.bf16.msra.mxu0 0
          %931 = vmatprep.subr.bf16.mxu0 0
          %932 = vmatpush1.bf16.msra.mxu0 0
          %933 = vmatprep.subr.bf16.mxu0 0
          %934 = vmatpush1.bf16.msra.mxu0 0
          %935 = vmatprep.subr.bf16.mxu0 0
          %936 = vmatpush1.bf16.msra.mxu0 0
          %937 = vmatprep.subr.bf16.mxu0 0
          %938 = vmatpush1.bf16.msra.mxu0 0
          %939 = vmatprep.subr.bf16.mxu0 0
          %940 = vmatpush1.bf16.msra.mxu0 0
          %941 = vmatprep.subr.bf16.mxu0 0
          %942 = vmatpush1.bf16.msra.mxu0 0
          %943 = vmatprep.mubr.bf16.mxu0 0
          %944 = vmatmul.mubr.bf16.gmra.mrb[0].mxu0 %v802
          %v945 = vpop.f32.mrb[0].mxu0
          %v946 = vadd.f32 %v824, %v945
          %v947 = vpop.f32.mrb[0].mxu0
          %v948 = vadd.f32 %v828, %v947
          %v949 = vpop.f32.mrb[0].mxu0
          %v950 = vadd.f32 %v824, %v949
          %v951 = vpop.f32.mrb[0].mxu0
          %v952 = vadd.f32 %v828, %v951
          %953 = vdwg.mxu0
          %954 = vst [vmem:[%s10] sm:$0xff] %v946
          %vm955 = vcmask 130048
          %956 = vst.msk [vmem:[%s10 + $0x8] sm:$0xff] %vm955, %v948
          %957 = vst [vmem:[%s10 + $0x10] sm:$0xff] %v950
          %958 = vst.msk [vmem:[%s10 + $0x18] sm:$0xff] %vm955, %v952
          %v959 = vld [vmem:[#allocation3] sm:$0x3]
          %v960 = vld [vmem:[#allocation10] sm:$0x1]
          %v962 = vlaneseq
          %v963 = vshrl.u32 %v962, 7
          %v964 = vsub.s32 0, %v963
          %v965 = vrot.slane %v960, %v964
          %v967 = vadd.f32 %v959, %v965
          %v968 = vmax.f32 %v967, 0.0
          %v969 = vpack.c.bf16 %v968, %v968
          %v970 = vld [vmem:[%s8] sm:$0xf]
          %v971 = vld [vmem:[%s8 + $0x4] sm:$0xf]
          %v972 = vld [vmem:[%s8 + $0x8] sm:$0xf]
          %v973 = vld [vmem:[%s8 + $0xc] sm:$0xf]
          %v974 = vld [vmem:[%s8 + $0x10] sm:$0xf]
          %v975 = vld [vmem:[%s8 + $0x14] sm:$0xf]
          %v976 = vld [vmem:[%s8 + $0x18] sm:$0xf]
          %v977 = vld [vmem:[%s8 + $0x1c] sm:$0xf]
          %v978 = vld [vmem:[%s8 + $0x20] sm:$0xf]
          %v979 = vld [vmem:[%s8 + $0x24] sm:$0xf]
          %v980 = vld [vmem:[%s8 + $0x28] sm:$0xf]
          %v981 = vld [vmem:[%s8 + $0x2c] sm:$0xf]
          %v982 = vld [vmem:[%s8 + $0x30] sm:$0xf]
          %v983 = vld [vmem:[%s8 + $0x34] sm:$0xf]
          %v984 = vld [vmem:[%s8 + $0x38] sm:$0xf]
          %v985 = vld [vmem:[%s8 + $0x3c] sm:$0xf]
          %v986 = vld [vmem:[#allocation13] sm:$0x1]
          %v988 = vlaneseq
          %v989 = vshrl.u32 %v988, 7
          %v990 = vsub.s32 0, %v989
          %v991 = vrot.slane %v986, %v990
          %v1009 = vunpack.c.l.b16 %v970
          %v1010 = vunpack.c.l.b16 %v971
          %v1011 = vunpack.c.l.b16 %v972
          %v1012 = vunpack.c.l.b16 %v973
          %v1013 = vunpack.c.l.b16 %v974
          %v1014 = vunpack.c.l.b16 %v975
          %v1015 = vunpack.c.l.b16 %v976
          %v1016 = vunpack.c.l.b16 %v977
          %v1017 = vunpack.c.l.b16 %v978
          %v1018 = vunpack.c.l.b16 %v979
          %v1019 = vunpack.c.l.b16 %v980
          %v1020 = vunpack.c.l.b16 %v981
          %v1021 = vunpack.c.l.b16 %v982
          %v1022 = vunpack.c.l.b16 %v983
          %v1023 = vunpack.c.l.b16 %v984
          %v1024 = vunpack.c.l.b16 %v985
          %v1025 = vpack.c.b16 %v1010, %v1009
          %v1026 = vpack.c.b16 %v1012, %v1011
          %v1027 = vpack.c.b16 %v1014, %v1013
          %v1028 = vpack.c.b16 %v1016, %v1015
          %v1029 = vpack.c.b16 %v1018, %v1017
          %v1030 = vpack.c.b16 %v1020, %v1019
          %v1031 = vpack.c.b16 %v1022, %v1021
          %v1032 = vpack.c.b16 %v1024, %v1023
          %1041 = vmatprep.subr.bf16.mxu0 0
          %1042 = vmatpush1.bf16.msra.mxu0 %v1025
          %1043 = vmatprep.subr.bf16.mxu0 0
          %1044 = vmatpush1.bf16.msra.mxu0 %v1026
          %1045 = vmatprep.subr.bf16.mxu0 0
          %1046 = vmatpush1.bf16.msra.mxu0 %v1027
          %1047 = vmatprep.subr.bf16.mxu0 0
          %1048 = vmatpush1.bf16.msra.mxu0 %v1028
          %1049 = vmatprep.subr.bf16.mxu0 0
          %1050 = vmatpush1.bf16.msra.mxu0 %v1029
          %1051 = vmatprep.subr.bf16.mxu0 0
          %1052 = vmatpush1.bf16.msra.mxu0 %v1030
          %1053 = vmatprep.subr.bf16.mxu0 0
          %1054 = vmatpush1.bf16.msra.mxu0 %v1031
          %1055 = vmatprep.subr.bf16.mxu0 0
          %1056 = vmatpush1.bf16.msra.mxu0 %v1032
          %1057 = vmatprep.subr.bf16.mxu0 0
          %1058 = vmatpush1.bf16.msra.mxu0 0
          %1059 = vmatprep.subr.bf16.mxu0 0
          %1060 = vmatpush1.bf16.msra.mxu0 0
          %1061 = vmatprep.subr.bf16.mxu0 0
          %1062 = vmatpush1.bf16.msra.mxu0 0
          %1063 = vmatprep.subr.bf16.mxu0 0
          %1064 = vmatpush1.bf16.msra.mxu0 0
          %1065 = vmatprep.subr.bf16.mxu0 0
          %1066 = vmatpush1.bf16.msra.mxu0 0
          %1067 = vmatprep.subr.bf16.mxu0 0
          %1068 = vmatpush1.bf16.msra.mxu0 0
          %1069 = vmatprep.subr.bf16.mxu0 0
          %1070 = vmatpush1.bf16.msra.mxu0 0
          %1071 = vmatprep.subr.bf16.mxu0 0
          %1072 = vmatpush1.bf16.msra.mxu0 0
          %1073 = vmatprep.mubr.bf16.mxu0 0
          %1074 = vmatmul.mubr.bf16.gmra.mrb[0].mxu0 %v969
          %v1075 = vpop.f32.mrb[0].mxu0
          %v1076 = vadd.f32 %v991, %v1075
          %v1077 = vpop.f32.mrb[0].mxu0
          %v1078 = vpop.f32.mrb[0].mxu0
          %v1079 = vpop.f32.mrb[0].mxu0
          %1080 = vdwg.mxu0
          %vm1081 = vcmask 74752
          %1082 = vst.msk [vmem:[%s11] sm:$0x3] %vm1081, %v1076
        $region130: #{smpl_regressor_forward.2} parent=93 // pred_fallthru
          _
        // Predicated region
        $region131: #{smpl_regressor_forward.2} parent=93 // pred_check
          %p1083 = pneg %p271
        $region132: #{smpl_regressor_forward.2} parent=93 // pred_check_branch
          %1085 = sbr.rel (%p1083) target = $region134
        $region133: #{smpl_regressor_forward.2} parent=93 // pred_region
          _
        $region134: #{smpl_regressor_forward.2} parent=93 // pred_fallthru
          _
        // Predicated region
        $region135: #{smpl_regressor_forward.2} parent=93 // pred_check
          %p1086 = pneg %p292
        $region136: #{smpl_regressor_forward.2} parent=93 // pred_check_branch
          %1088 = sbr.rel (%p1086) target = $region138
        $region137: #{smpl_regressor_forward.2} parent=93 // pred_region
          _
        $region138: #{smpl_regressor_forward.2} parent=93 // pred_fallthru
          _
        // Predicated region
        $region139: #{smpl_regressor_forward.2} parent=93 // pred_check
          %p1089 = pneg %p271
        $region140: #{smpl_regressor_forward.2} parent=93 // pred_check_branch
          %1091 = sbr.rel (%p1089) target = $region142
        $region141: #{smpl_regressor_forward.2} parent=93 // pred_region
          _
        $region142: #{smpl_regressor_forward.2} parent=93 // pred_fallthru
          _
        // Predicated region
        $region143: #{smpl_regressor_forward.2} parent=93 // pred_check
          %p1092 = pneg %p292
        $region144: #{smpl_regressor_forward.2} parent=93 // pred_check_branch
          %1094 = sbr.rel (%p1092) target = $region146
        $region145: #{smpl_regressor_forward.2} parent=93 // pred_region
          _
        $region146: #{smpl_regressor_forward.2} parent=93 // pred_fallthru
          _
      $region94: #{smpl_regressor_forward.2} parent=5 // pred_fallthru
        _
      %p1095 = scmp.le.s32.totalorder 2, %s23
      // Predicated region
      $region147: #{smpl_regressor_forward.2} parent=5 // pred_check
        %p1096 = pneg %p1095
      $region148: #{smpl_regressor_forward.2} parent=5 // pred_check_branch
        %1098 = sbr.rel (%p1096) target = $region150
      $region149: #{smpl_regressor_forward.2} parent=5 // pred_region
        %s1099 = ssub.s32 %s23, 2
      $region150: #{smpl_regressor_forward.2} parent=5 // pred_fallthru
        _
    $region6: #{smpl_regressor_forward.2} parent=1 // loop_footer
      %s27 = sadd.s32 1, %s23
    $region7: #{smpl_regressor_forward.2} parent=1 // loop_footer_branch
      %22 = sbr.rel target = $region3
    $region8: #{smpl_regressor_forward.2} parent=1 // loop_exit
      _
    %1100 = vsyncpa [#allocation6], 1
    %s1101 = scalar_lea.sflag [#allocation6], 1
    %1102 = vsyncpa %s1101, 1
    %1103 = vsyncpa [#allocation8], 1
    %1104 = vsyncpa [#allocation12], 1

// kernel: smpl_regressor_forward.3
$region0: #{smpl_regressor_forward.3}
  #allocation0 [shape = 'u32[]', space=smem, size = 0x4, offset = 0x4, fixed_abs, tag = 'smem constant byte address 0x4 - core index']
  #allocation1 [shape = 'u32[144,128]{1,0:T(1,128)}', space=vmem, size = 0x12000, scoped, tag = 'internal scratch']
  #allocation2 [shape = 'f32[3,16,128]{2,1,0:T(8,128)}', space=vmem, size = 0x6000, scoped, tag = 'scratch operand']
  %s0 = inlined_call_operand.vmem [shape: f32[16,218], index: 0, kind: input, shape index: {}]
  %s1 = inlined_call_operand.vmem [shape: f32[192,24], index: 1, kind: input, shape index: {}]
  %s2 = inlined_call_operand.vmem [shape: bf16[218,6144], index: 2, kind: input, shape index: {}]
  %s3 = inlined_call_operand.vmem [shape: bf16[24,2048], index: 3, kind: input, shape index: {}]
  %s4 = inlined_call_operand.vmem [shape: bf16[2048,128], index: 4, kind: input, shape index: {}]
  %s5 = inlined_call_operand.vmem [shape: f32[3,16,2048], index: 5, kind: output, shape index: {0}]
  %s6 = inlined_call_operand.vmem [shape: f32[2,3,16,128], index: 6, kind: output, shape index: {1}]
  %7 = xla_tuple %s5, %s6
  %s8 = sld [smem:[#allocation0]]
  $region134: #{smpl_regressor_forward.3} parent=0
    _
  %s10 = ssub.s32 1, %s8
  %s11 = scalar_select 0, %s10, %s8
  $region1: #{smpl_regressor_forward.3} parent=0
    #allocation3 [shape = 'u8[1376256]{0}', space=vmem, size = 0x150000, scoped, tag = 'input window, operand 2']
    #allocation4 [shape = 'u8[49152]{0}', space=vmem, size = 0xc000, scoped, tag = 'input window, operand 3']
    #allocation5 [shape = 'u8[196608]{0}', space=vmem, size = 0x30000, scoped, tag = 'output window, operand 0']
    loop: start=0, step=1, limit=6
    $region2: #{smpl_regressor_forward.3} parent=1 // loop_pre_header
      _
    $region3: #{smpl_regressor_forward.3} parent=1 // loop_header
      %s13 = sphi 0, %s17
      %p14 = scmp.ge.s32.totalorder %s13, 6
      %s20 = sphi 0, %s32
      %s21 = sphi 0, %s28
      %s22 = sphi 0, %s20
      %s23 = sphi 0, %s21
      %s24 = sphi 0, %s22
      %s25 = sphi 0, %s23
      %s33 = sphi 0, %s33
      %s35 = sphi 0, %s33
      %s36 = sphi 0, %s35
      %s50 = sphi 0, %s36
      %s54 = sphi 0, %s54
      %s56 = sphi 0, %s54
      %s57 = sphi 0, %s56
      %s71 = sphi 0, %s57
      %s81 = sphi 0, %s83
      %s84 = sphi 0, %s81
      %s85 = sphi 0, %s84
      %s101 = sphi 0, %s85
      %s111 = sphi 0, %s113
      %s114 = sphi 0, %s111
      %s115 = sphi 0, %s114
      %s131 = sphi 0, %s115
      %s141 = sphi 0, %s143
      %s144 = sphi 0, %s141
      %s145 = sphi 0, %s144
      %s161 = sphi 0, %s145
      %s171 = sphi 0, %s173
      %s174 = sphi 0, %s171
      %s175 = sphi 0, %s174
      %s191 = sphi 0, %s175
      %s197 = sphi 0, %s199
      %s200 = sphi 0, %s197
      %s201 = sphi 0, %s200
      %s217 = sphi 0, %s201
    $region4: #{smpl_regressor_forward.3} parent=1 // loop_header_branch
      %16 = sbr.rel (%p14) target = $region8
    $region5: #{smpl_regressor_forward.3} parent=1 // loop_body
      %s18 = ssub.s32 %s13, 1
      %s19 = ssub.s32 %s13, 2
      %s26 = sadd.s32 1, %s21
      %p27 = scmp.ge.s32.totalorder %s26, 2
      %s28 = scalar_select %p27, 0, %s26
      %s29 = sadd.s32 1, %s20
      %s30 = scalar_select %p27, %s29, %s20
      %p31 = scmp.ge.s32.totalorder %s30, 2
      %s32 = scalar_select %p31, 0, %s30
      %s34 = sadd.s32 %s33, 1
      %p37 = scmp.eq.s32.totalorder %s13, 3
      %p38 = scmp.ne.s32.totalorder %s33, %s35
      %p39 = scmp.eq.s32.totalorder %s13, 0
      %p40 = por %p38, %p39
      %p41 = scmp.ne.s32.totalorder %s33, %s35
      %p42 = scmp.eq.s32.totalorder %s18, 3
      %p43 = por %p41, %p42
      %p44 = scmp.ne.s32.totalorder %s35, %s36
      %p45 = scmp.eq.s32.totalorder %s18, 0
      %p46 = por %p44, %p45
      %p47 = scmp.ne.s32.totalorder %s35, %s36
      %p48 = scmp.eq.s32.totalorder %s19, 3
      %p49 = por %p47, %p48
      %p51 = scmp.ne.s32.totalorder %s36, %s50
      %p52 = scmp.eq.s32.totalorder %s19, 0
      %p53 = por %p51, %p52
      %s55 = sadd.s32 %s54, 1
      %p58 = scmp.eq.s32.totalorder %s13, 3
      %p59 = scmp.ne.s32.totalorder %s54, %s56
      %p60 = scmp.eq.s32.totalorder %s13, 0
      %p61 = por %p59, %p60
      %p62 = scmp.ne.s32.totalorder %s54, %s56
      %p63 = scmp.eq.s32.totalorder %s18, 3
      %p64 = por %p62, %p63
      %p65 = scmp.ne.s32.totalorder %s56, %s57
      %p66 = scmp.eq.s32.totalorder %s18, 0
      %p67 = por %p65, %p66
      %p68 = scmp.ne.s32.totalorder %s56, %s57
      %p69 = scmp.eq.s32.totalorder %s19, 3
      %p70 = por %p68, %p69
      %p72 = scmp.ne.s32.totalorder %s57, %s71
      %p73 = scmp.eq.s32.totalorder %s19, 0
      %p74 = por %p72, %p73
      %s75 = smul.u32 %s20, 2
      %s76 = sadd.s32 %s75, %s21
      %s77 = smul.u32 %s32, 2
      %s78 = sadd.s32 %s77, %s28
      %s79 = ssub.s32 %s76, %s78
      %p80 = scmp.eq.s32.totalorder %s79, 0
      %s82 = sadd.s32 %s81, 1
      %s83 = scalar_select %p80, %s81, %s82
      %p86 = pneg %p80
      %p87 = scmp.eq.s32.totalorder %s13, 3
      %p88 = por %p86, %p87
      %p89 = scmp.ne.s32.totalorder %s81, %s84
      %p90 = scmp.eq.s32.totalorder %s13, 0
      %p91 = por %p89, %p90
      %p92 = scmp.ne.s32.totalorder %s81, %s84
      %p93 = scmp.eq.s32.totalorder %s18, 3
      %p94 = por %p92, %p93
      %p95 = scmp.ne.s32.totalorder %s84, %s85
      %p96 = scmp.eq.s32.totalorder %s18, 0
      %p97 = por %p95, %p96
      %p98 = scmp.ne.s32.totalorder %s84, %s85
      %p99 = scmp.eq.s32.totalorder %s19, 3
      %p100 = por %p98, %p99
      %p102 = scmp.ne.s32.totalorder %s85, %s101
      %p103 = scmp.eq.s32.totalorder %s19, 0
      %p104 = por %p102, %p103
      %s105 = smul.u32 %s20, 2
      %s106 = sadd.s32 %s105, %s21
      %s107 = smul.u32 %s32, 2
      %s108 = sadd.s32 %s107, %s28
      %s109 = ssub.s32 %s106, %s108
      %p110 = scmp.eq.s32.totalorder %s109, 0
      %s112 = sadd.s32 %s111, 1
      %s113 = scalar_select %p110, %s111, %s112
      %p116 = pneg %p110
      %p117 = scmp.eq.s32.totalorder %s13, 3
      %p118 = por %p116, %p117
      %p119 = scmp.ne.s32.totalorder %s111, %s114
      %p120 = scmp.eq.s32.totalorder %s13, 0
      %p121 = por %p119, %p120
      %p122 = scmp.ne.s32.totalorder %s111, %s114
      %p123 = scmp.eq.s32.totalorder %s18, 3
      %p124 = por %p122, %p123
      %p125 = scmp.ne.s32.totalorder %s114, %s115
      %p126 = scmp.eq.s32.totalorder %s18, 0
      %p127 = por %p125, %p126
      %p128 = scmp.ne.s32.totalorder %s114, %s115
      %p129 = scmp.eq.s32.totalorder %s19, 3
      %p130 = por %p128, %p129
      %p132 = scmp.ne.s32.totalorder %s115, %s131
      %p133 = scmp.eq.s32.totalorder %s19, 0
      %p134 = por %p132, %p133
      %s135 = smul.u32 %s20, 2
      %s136 = sadd.s32 %s135, %s21
      %s137 = smul.u32 %s32, 2
      %s138 = sadd.s32 %s137, %s28
      %s139 = ssub.s32 %s136, %s138
      %p140 = scmp.eq.s32.totalorder %s139, 0
      %s142 = sadd.s32 %s141, 1
      %s143 = scalar_select %p140, %s141, %s142
      %p146 = pneg %p140
      %p147 = scmp.eq.s32.totalorder %s13, 3
      %p148 = por %p146, %p147
      %p149 = scmp.ne.s32.totalorder %s141, %s144
      %p150 = scmp.eq.s32.totalorder %s13, 0
      %p151 = por %p149, %p150
      %p152 = scmp.ne.s32.totalorder %s141, %s144
      %p153 = scmp.eq.s32.totalorder %s18, 3
      %p154 = por %p152, %p153
      %p155 = scmp.ne.s32.totalorder %s144, %s145
      %p156 = scmp.eq.s32.totalorder %s18, 0
      %p157 = por %p155, %p156
      %p158 = scmp.ne.s32.totalorder %s144, %s145
      %p159 = scmp.eq.s32.totalorder %s19, 3
      %p160 = por %p158, %p159
      %p162 = scmp.ne.s32.totalorder %s145, %s161
      %p163 = scmp.eq.s32.totalorder %s19, 0
      %p164 = por %p162, %p163
      %s165 = smul.u32 %s20, 2
      %s166 = sadd.s32 %s165, %s21
      %s167 = smul.u32 %s32, 2
      %s168 = sadd.s32 %s167, %s28
      %s169 = ssub.s32 %s166, %s168
      %p170 = scmp.eq.s32.totalorder %s169, 0
      %s172 = sadd.s32 %s171, 1
      %s173 = scalar_select %p170, %s171, %s172
      %p176 = pneg %p170
      %p177 = scmp.eq.s32.totalorder %s13, 3
      %p178 = por %p176, %p177
      %p179 = scmp.ne.s32.totalorder %s171, %s174
      %p180 = scmp.eq.s32.totalorder %s13, 0
      %p181 = por %p179, %p180
      %p182 = scmp.ne.s32.totalorder %s171, %s174
      %p183 = scmp.eq.s32.totalorder %s18, 3
      %p184 = por %p182, %p183
      %p185 = scmp.ne.s32.totalorder %s174, %s175
      %p186 = scmp.eq.s32.totalorder %s18, 0
      %p187 = por %p185, %p186
      %p188 = scmp.ne.s32.totalorder %s174, %s175
      %p189 = scmp.eq.s32.totalorder %s19, 3
      %p190 = por %p188, %p189
      %p192 = scmp.ne.s32.totalorder %s175, %s191
      %p193 = scmp.eq.s32.totalorder %s19, 0
      %p194 = por %p192, %p193
      %s195 = ssub.s32 %s20, %s32
      %p196 = scmp.eq.s32.totalorder %s195, 0
      %s198 = sadd.s32 %s197, 1
      %s199 = scalar_select %p196, %s197, %s198
      %p202 = pneg %p196
      %p203 = scmp.eq.s32.totalorder %s13, 3
      %p204 = por %p202, %p203
      %p205 = scmp.ne.s32.totalorder %s197, %s200
      %p206 = scmp.eq.s32.totalorder %s13, 0
      %p207 = por %p205, %p206
      %p208 = scmp.ne.s32.totalorder %s197, %s200
      %p209 = scmp.eq.s32.totalorder %s18, 3
      %p210 = por %p208, %p209
      %p211 = scmp.ne.s32.totalorder %s200, %s201
      %p212 = scmp.eq.s32.totalorder %s18, 0
      %p213 = por %p211, %p212
      %p214 = scmp.ne.s32.totalorder %s200, %s201
      %p215 = scmp.eq.s32.totalorder %s19, 3
      %p216 = por %p214, %p215
      %p218 = scmp.ne.s32.totalorder %s201, %s217
      %p219 = scmp.eq.s32.totalorder %s19, 0
      %p220 = por %p218, %p219
      %p221 = scmp.le.s32.totalorder 1, %s13
      %p222 = scmp.lt.s32.totalorder %s13, 5
      %p223 = pnand %p221, %p222
      %p224 = pneg %p223
      // Predicated region
      $region9: #{smpl_regressor_forward.3} parent=5 // pred_check
        _
      $region10: #{smpl_regressor_forward.3} parent=5 // pred_check_branch
        %226 = sbr.rel (%p223) target = $region12
      $region11: #{smpl_regressor_forward.3} parent=5 // pred_region
        %s227 = ssub.s32 %s13, 1
        // Predicated region
        $region13: #{smpl_regressor_forward.3} parent=11 // pred_check
          %p228 = pneg %p46
        $region14: #{smpl_regressor_forward.3} parent=11 // pred_check_branch
          %230 = sbr.rel (%p228) target = $region16
        $region15: #{smpl_regressor_forward.3} parent=11 // pred_region
          _
        $region16: #{smpl_regressor_forward.3} parent=11 // pred_fallthru
          _
        // Predicated region
        $region17: #{smpl_regressor_forward.3} parent=11 // pred_check
          %p231 = pneg %p67
        $region18: #{smpl_regressor_forward.3} parent=11 // pred_check_branch
          %233 = sbr.rel (%p231) target = $region20
        $region19: #{smpl_regressor_forward.3} parent=11 // pred_region
          _
        $region20: #{smpl_regressor_forward.3} parent=11 // pred_fallthru
          _
      $region12: #{smpl_regressor_forward.3} parent=5 // pred_fallthru
        _
      %p234 = scmp.lt.s32.totalorder %s13, 4
      // Predicated region
      $region21: #{smpl_regressor_forward.3} parent=5 // pred_check
        %p235 = pneg %p234
      $region22: #{smpl_regressor_forward.3} parent=5 // pred_check_branch
        %237 = sbr.rel (%p235) target = $region24
      $region23: #{smpl_regressor_forward.3} parent=5 // pred_region
        // Predicated region
        $region25: #{smpl_regressor_forward.3} parent=23 // pred_check
          %p238 = pneg %p91
        $region26: #{smpl_regressor_forward.3} parent=23 // pred_check_branch
          %240 = sbr.rel (%p238) target = $region28
        $region27: #{smpl_regressor_forward.3} parent=23 // pred_region
          %s241 = sand.u32 %s81, 1
          %s242 = sand.u32 %s81, 1
          %s243 = smul.addr %s242, 1344
          %s244 = scalar_lea.vmem [#allocation3], %s243
          %s245 = smul.u32 %s20, 2
          %s246 = sadd.s32 %s245, %s21
          %s247 = smul.u32 12, %s246
          %s248 = smul.addr %s247, 4
          %s249 = scalar_lea.vmem %s2, %s248
          // Predicated region
          $region29: #{smpl_regressor_forward.3} parent=27 // pred_check
            _
          $region30: #{smpl_regressor_forward.3} parent=27 // pred_check_branch
            %251 = sbr.rel (0) target = $region32
          $region31: #{smpl_regressor_forward.3} parent=27 // pred_region
            // Predicated region
            $region33: #{smpl_regressor_forward.3} parent=31 // pred_check
              _
            $region34: #{smpl_regressor_forward.3} parent=31 // pred_check_branch
              %253 = sbr.rel (0) target = $region36
            $region35: #{smpl_regressor_forward.3} parent=31 // pred_region
              loop: start=0, step=1, limit=1
              $region37: #{smpl_regressor_forward.3} parent=35 // loop_pre_header
                _
              $region38: #{smpl_regressor_forward.3} parent=35 // loop_header
                %s255 = sphi 0, %s259
                %p256 = scmp.ge.s32.totalorder %s255, 1
                %s260 = sphi %s249, %s249
                %s261 = sphi %s244, %s244
              $region39: #{smpl_regressor_forward.3} parent=35 // loop_header_branch
                %258 = sbr.rel (%p256) target = $region43
              $region40: #{smpl_regressor_forward.3} parent=35 // loop_body
                %v262 = vld [vmem:[%s260] sm:$0xff]
                %263 = vst [vmem:[%s261] sm:$0xff] %v262
                %v264 = vld [vmem:[%s260 + $0x8] sm:$0xff]
                %265 = vst [vmem:[%s261 + $0x8] sm:$0xff] %v264
                %v266 = vld [vmem:[%s260 + $0x10] sm:$0xff]
                %267 = vst [vmem:[%s261 + $0x10] sm:$0xff] %v266
                %v268 = vld [vmem:[%s260 + $0x18] sm:$0xff]
                %269 = vst [vmem:[%s261 + $0x18] sm:$0xff] %v268
                %v270 = vld [vmem:[%s260 + $0x20] sm:$0xff]
                %271 = vst [vmem:[%s261 + $0x20] sm:$0xff] %v270
                %v272 = vld [vmem:[%s260 + $0x28] sm:$0xff]
                %273 = vst [vmem:[%s261 + $0x28] sm:$0xff] %v272
                %v274 = vld [vmem:[%s260 + $0xc0] sm:$0xff]
                %275 = vst [vmem:[%s261 + $0x30] sm:$0xff] %v274
                %v276 = vld [vmem:[%s260 + $0xc8] sm:$0xff]
                %277 = vst [vmem:[%s261 + $0x38] sm:$0xff] %v276
                %v278 = vld [vmem:[%s260 + $0xd0] sm:$0xff]
                %279 = vst [vmem:[%s261 + $0x40] sm:$0xff] %v278
                %v280 = vld [vmem:[%s260 + $0xd8] sm:$0xff]
                %281 = vst [vmem:[%s261 + $0x48] sm:$0xff] %v280
                %v282 = vld [vmem:[%s260 + $0xe0] sm:$0xff]
                %283 = vst [vmem:[%s261 + $0x50] sm:$0xff] %v282
                %v284 = vld [vmem:[%s260 + $0xe8] sm:$0xff]
                %285 = vst [vmem:[%s261 + $0x58] sm:$0xff] %v284
                %v286 = vld [vmem:[%s260 + $0x180] sm:$0xff]
                %287 = vst [vmem:[%s261 + $0x60] sm:$0xff] %v286
                %v288 = vld [vmem:[%s260 + $0x188] sm:$0xff]
                %289 = vst [vmem:[%s261 + $0x68] sm:$0xff] %v288
                %v290 = vld [vmem:[%s260 + $0x190] sm:$0xff]
                %291 = vst [vmem:[%s261 + $0x70] sm:$0xff] %v290
                %v292 = vld [vmem:[%s260 + $0x198] sm:$0xff]
                %293 = vst [vmem:[%s261 + $0x78] sm:$0xff] %v292
                %v294 = vld [vmem:[%s260 + $0x1a0] sm:$0xff]
                %295 = vst [vmem:[%s261 + $0x80] sm:$0xff] %v294
                %v296 = vld [vmem:[%s260 + $0x1a8] sm:$0xff]
                %297 = vst [vmem:[%s261 + $0x88] sm:$0xff] %v296
                %v298 = vld [vmem:[%s260 + $0x240] sm:$0xff]
                %299 = vst [vmem:[%s261 + $0x90] sm:$0xff] %v298
                %v300 = vld [vmem:[%s260 + $0x248] sm:$0xff]
                %301 = vst [vmem:[%s261 + $0x98] sm:$0xff] %v300
                %v302 = vld [vmem:[%s260 + $0x250] sm:$0xff]
                %303 = vst [vmem:[%s261 + $0xa0] sm:$0xff] %v302
                %v304 = vld [vmem:[%s260 + $0x258] sm:$0xff]
                %305 = vst [vmem:[%s261 + $0xa8] sm:$0xff] %v304
                %v306 = vld [vmem:[%s260 + $0x260] sm:$0xff]
                %307 = vst [vmem:[%s261 + $0xb0] sm:$0xff] %v306
                %v308 = vld [vmem:[%s260 + $0x268] sm:$0xff]
                %309 = vst [vmem:[%s261 + $0xb8] sm:$0xff] %v308
                %v310 = vld [vmem:[%s260 + $0x300] sm:$0xff]
                %311 = vst [vmem:[%s261 + $0xc0] sm:$0xff] %v310
                %v312 = vld [vmem:[%s260 + $0x308] sm:$0xff]
                %313 = vst [vmem:[%s261 + $0xc8] sm:$0xff] %v312
                %v314 = vld [vmem:[%s260 + $0x310] sm:$0xff]
                %315 = vst [vmem:[%s261 + $0xd0] sm:$0xff] %v314
                %v316 = vld [vmem:[%s260 + $0x318] sm:$0xff]
                %317 = vst [vmem:[%s261 + $0xd8] sm:$0xff] %v316
                %v318 = vld [vmem:[%s260 + $0x320] sm:$0xff]
                %319 = vst [vmem:[%s261 + $0xe0] sm:$0xff] %v318
                %v320 = vld [vmem:[%s260 + $0x328] sm:$0xff]
                %321 = vst [vmem:[%s261 + $0xe8] sm:$0xff] %v320
                %v322 = vld [vmem:[%s260 + $0x3c0] sm:$0xff]
                %323 = vst [vmem:[%s261 + $0xf0] sm:$0xff] %v322
                %v324 = vld [vmem:[%s260 + $0x3c8] sm:$0xff]
                %325 = vst [vmem:[%s261 + $0xf8] sm:$0xff] %v324
                %v326 = vld [vmem:[%s260 + $0x3d0] sm:$0xff]
                %327 = vst [vmem:[%s261 + $0x100] sm:$0xff] %v326
                %v328 = vld [vmem:[%s260 + $0x3d8] sm:$0xff]
                %329 = vst [vmem:[%s261 + $0x108] sm:$0xff] %v328
                %v330 = vld [vmem:[%s260 + $0x3e0] sm:$0xff]
                %331 = vst [vmem:[%s261 + $0x110] sm:$0xff] %v330
                %v332 = vld [vmem:[%s260 + $0x3e8] sm:$0xff]
                %333 = vst [vmem:[%s261 + $0x118] sm:$0xff] %v332
                %v334 = vld [vmem:[%s260 + $0x480] sm:$0xff]
                %335 = vst [vmem:[%s261 + $0x120] sm:$0xff] %v334
                %v336 = vld [vmem:[%s260 + $0x488] sm:$0xff]
                %337 = vst [vmem:[%s261 + $0x128] sm:$0xff] %v336
                %v338 = vld [vmem:[%s260 + $0x490] sm:$0xff]
                %339 = vst [vmem:[%s261 + $0x130] sm:$0xff] %v338
                %v340 = vld [vmem:[%s260 + $0x498] sm:$0xff]
                %341 = vst [vmem:[%s261 + $0x138] sm:$0xff] %v340
                %v342 = vld [vmem:[%s260 + $0x4a0] sm:$0xff]
                %343 = vst [vmem:[%s261 + $0x140] sm:$0xff] %v342
                %v344 = vld [vmem:[%s260 + $0x4a8] sm:$0xff]
                %345 = vst [vmem:[%s261 + $0x148] sm:$0xff] %v344
                %v346 = vld [vmem:[%s260 + $0x540] sm:$0xff]
                %347 = vst [vmem:[%s261 + $0x150] sm:$0xff] %v346
                %v348 = vld [vmem:[%s260 + $0x548] sm:$0xff]
                %349 = vst [vmem:[%s261 + $0x158] sm:$0xff] %v348
                %v350 = vld [vmem:[%s260 + $0x550] sm:$0xff]
                %351 = vst [vmem:[%s261 + $0x160] sm:$0xff] %v350
                %v352 = vld [vmem:[%s260 + $0x558] sm:$0xff]
                %353 = vst [vmem:[%s261 + $0x168] sm:$0xff] %v352
                %v354 = vld [vmem:[%s260 + $0x560] sm:$0xff]
                %355 = vst [vmem:[%s261 + $0x170] sm:$0xff] %v354
                %v356 = vld [vmem:[%s260 + $0x568] sm:$0xff]
                %357 = vst [vmem:[%s261 + $0x178] sm:$0xff] %v356
                %v358 = vld [vmem:[%s260 + $0x600] sm:$0xff]
                %359 = vst [vmem:[%s261 + $0x180] sm:$0xff] %v358
                %v360 = vld [vmem:[%s260 + $0x608] sm:$0xff]
                %361 = vst [vmem:[%s261 + $0x188] sm:$0xff] %v360
                %v362 = vld [vmem:[%s260 + $0x610] sm:$0xff]
                %363 = vst [vmem:[%s261 + $0x190] sm:$0xff] %v362
                %v364 = vld [vmem:[%s260 + $0x618] sm:$0xff]
                %365 = vst [vmem:[%s261 + $0x198] sm:$0xff] %v364
                %v366 = vld [vmem:[%s260 + $0x620] sm:$0xff]
                %367 = vst [vmem:[%s261 + $0x1a0] sm:$0xff] %v366
                %v368 = vld [vmem:[%s260 + $0x628] sm:$0xff]
                %369 = vst [vmem:[%s261 + $0x1a8] sm:$0xff] %v368
                %v370 = vld [vmem:[%s260 + $0x6c0] sm:$0xff]
                %371 = vst [vmem:[%s261 + $0x1b0] sm:$0xff] %v370
                %v372 = vld [vmem:[%s260 + $0x6c8] sm:$0xff]
                %373 = vst [vmem:[%s261 + $0x1b8] sm:$0xff] %v372
                %v374 = vld [vmem:[%s260 + $0x6d0] sm:$0xff]
                %375 = vst [vmem:[%s261 + $0x1c0] sm:$0xff] %v374
                %v376 = vld [vmem:[%s260 + $0x6d8] sm:$0xff]
                %377 = vst [vmem:[%s261 + $0x1c8] sm:$0xff] %v376
                %v378 = vld [vmem:[%s260 + $0x6e0] sm:$0xff]
                %379 = vst [vmem:[%s261 + $0x1d0] sm:$0xff] %v378
                %v380 = vld [vmem:[%s260 + $0x6e8] sm:$0xff]
                %381 = vst [vmem:[%s261 + $0x1d8] sm:$0xff] %v380
                %v382 = vld [vmem:[%s260 + $0x780] sm:$0xff]
                %383 = vst [vmem:[%s261 + $0x1e0] sm:$0xff] %v382
                %v384 = vld [vmem:[%s260 + $0x788] sm:$0xff]
                %385 = vst [vmem:[%s261 + $0x1e8] sm:$0xff] %v384
                %v386 = vld [vmem:[%s260 + $0x790] sm:$0xff]
                %387 = vst [vmem:[%s261 + $0x1f0] sm:$0xff] %v386
                %v388 = vld [vmem:[%s260 + $0x798] sm:$0xff]
                %389 = vst [vmem:[%s261 + $0x1f8] sm:$0xff] %v388
                %v390 = vld [vmem:[%s260 + $0x7a0] sm:$0xff]
                %391 = vst [vmem:[%s261 + $0x200] sm:$0xff] %v390
                %v392 = vld [vmem:[%s260 + $0x7a8] sm:$0xff]
                %393 = vst [vmem:[%s261 + $0x208] sm:$0xff] %v392
                %v394 = vld [vmem:[%s260 + $0x840] sm:$0xff]
                %395 = vst [vmem:[%s261 + $0x210] sm:$0xff] %v394
                %v396 = vld [vmem:[%s260 + $0x848] sm:$0xff]
                %397 = vst [vmem:[%s261 + $0x218] sm:$0xff] %v396
                %v398 = vld [vmem:[%s260 + $0x850] sm:$0xff]
                %399 = vst [vmem:[%s261 + $0x220] sm:$0xff] %v398
                %v400 = vld [vmem:[%s260 + $0x858] sm:$0xff]
                %401 = vst [vmem:[%s261 + $0x228] sm:$0xff] %v400
                %v402 = vld [vmem:[%s260 + $0x860] sm:$0xff]
                %403 = vst [vmem:[%s261 + $0x230] sm:$0xff] %v402
                %v404 = vld [vmem:[%s260 + $0x868] sm:$0xff]
                %405 = vst [vmem:[%s261 + $0x238] sm:$0xff] %v404
                %v406 = vld [vmem:[%s260 + $0x900] sm:$0xff]
                %407 = vst [vmem:[%s261 + $0x240] sm:$0xff] %v406
                %v408 = vld [vmem:[%s260 + $0x908] sm:$0xff]
                %409 = vst [vmem:[%s261 + $0x248] sm:$0xff] %v408
                %v410 = vld [vmem:[%s260 + $0x910] sm:$0xff]
                %411 = vst [vmem:[%s261 + $0x250] sm:$0xff] %v410
                %v412 = vld [vmem:[%s260 + $0x918] sm:$0xff]
                %413 = vst [vmem:[%s261 + $0x258] sm:$0xff] %v412
                %v414 = vld [vmem:[%s260 + $0x920] sm:$0xff]
                %415 = vst [vmem:[%s261 + $0x260] sm:$0xff] %v414
                %v416 = vld [vmem:[%s260 + $0x928] sm:$0xff]
                %417 = vst [vmem:[%s261 + $0x268] sm:$0xff] %v416
                %v418 = vld [vmem:[%s260 + $0x9c0] sm:$0xff]
                %419 = vst [vmem:[%s261 + $0x270] sm:$0xff] %v418
                %v420 = vld [vmem:[%s260 + $0x9c8] sm:$0xff]
                %421 = vst [vmem:[%s261 + $0x278] sm:$0xff] %v420
                %v422 = vld [vmem:[%s260 + $0x9d0] sm:$0xff]
                %423 = vst [vmem:[%s261 + $0x280] sm:$0xff] %v422
                %v424 = vld [vmem:[%s260 + $0x9d8] sm:$0xff]
                %425 = vst [vmem:[%s261 + $0x288] sm:$0xff] %v424
                %v426 = vld [vmem:[%s260 + $0x9e0] sm:$0xff]
                %427 = vst [vmem:[%s261 + $0x290] sm:$0xff] %v426
                %v428 = vld [vmem:[%s260 + $0x9e8] sm:$0xff]
                %429 = vst [vmem:[%s261 + $0x298] sm:$0xff] %v428
                %v430 = vld [vmem:[%s260 + $0xa80] sm:$0xff]
                %431 = vst [vmem:[%s261 + $0x2a0] sm:$0xff] %v430
                %v432 = vld [vmem:[%s260 + $0xa88] sm:$0xff]
                %433 = vst [vmem:[%s261 + $0x2a8] sm:$0xff] %v432
                %v434 = vld [vmem:[%s260 + $0xa90] sm:$0xff]
                %435 = vst [vmem:[%s261 + $0x2b0] sm:$0xff] %v434
                %v436 = vld [vmem:[%s260 + $0xa98] sm:$0xff]
                %437 = vst [vmem:[%s261 + $0x2b8] sm:$0xff] %v436
                %v438 = vld [vmem:[%s260 + $0xaa0] sm:$0xff]
                %439 = vst [vmem:[%s261 + $0x2c0] sm:$0xff] %v438
                %v440 = vld [vmem:[%s260 + $0xaa8] sm:$0xff]
                %441 = vst [vmem:[%s261 + $0x2c8] sm:$0xff] %v440
                %v442 = vld [vmem:[%s260 + $0xb40] sm:$0xff]
                %443 = vst [vmem:[%s261 + $0x2d0] sm:$0xff] %v442
                %v444 = vld [vmem:[%s260 + $0xb48] sm:$0xff]
                %445 = vst [vmem:[%s261 + $0x2d8] sm:$0xff] %v444
                %v446 = vld [vmem:[%s260 + $0xb50] sm:$0xff]
                %447 = vst [vmem:[%s261 + $0x2e0] sm:$0xff] %v446
                %v448 = vld [vmem:[%s260 + $0xb58] sm:$0xff]
                %449 = vst [vmem:[%s261 + $0x2e8] sm:$0xff] %v448
                %v450 = vld [vmem:[%s260 + $0xb60] sm:$0xff]
                %451 = vst [vmem:[%s261 + $0x2f0] sm:$0xff] %v450
                %v452 = vld [vmem:[%s260 + $0xb68] sm:$0xff]
                %453 = vst [vmem:[%s261 + $0x2f8] sm:$0xff] %v452
                %v454 = vld [vmem:[%s260 + $0xc00] sm:$0xff]
                %455 = vst [vmem:[%s261 + $0x300] sm:$0xff] %v454
                %v456 = vld [vmem:[%s260 + $0xc08] sm:$0xff]
                %457 = vst [vmem:[%s261 + $0x308] sm:$0xff] %v456
                %v458 = vld [vmem:[%s260 + $0xc10] sm:$0xff]
                %459 = vst [vmem:[%s261 + $0x310] sm:$0xff] %v458
                %v460 = vld [vmem:[%s260 + $0xc18] sm:$0xff]
                %461 = vst [vmem:[%s261 + $0x318] sm:$0xff] %v460
                %v462 = vld [vmem:[%s260 + $0xc20] sm:$0xff]
                %463 = vst [vmem:[%s261 + $0x320] sm:$0xff] %v462
                %v464 = vld [vmem:[%s260 + $0xc28] sm:$0xff]
                %465 = vst [vmem:[%s261 + $0x328] sm:$0xff] %v464
                %v466 = vld [vmem:[%s260 + $0xcc0] sm:$0xff]
                %467 = vst [vmem:[%s261 + $0x330] sm:$0xff] %v466
                %v468 = vld [vmem:[%s260 + $0xcc8] sm:$0xff]
                %469 = vst [vmem:[%s261 + $0x338] sm:$0xff] %v468
                %v470 = vld [vmem:[%s260 + $0xcd0] sm:$0xff]
                %471 = vst [vmem:[%s261 + $0x340] sm:$0xff] %v470
                %v472 = vld [vmem:[%s260 + $0xcd8] sm:$0xff]
                %473 = vst [vmem:[%s261 + $0x348] sm:$0xff] %v472
                %v474 = vld [vmem:[%s260 + $0xce0] sm:$0xff]
                %475 = vst [vmem:[%s261 + $0x350] sm:$0xff] %v474
                %v476 = vld [vmem:[%s260 + $0xce8] sm:$0xff]
                %477 = vst [vmem:[%s261 + $0x358] sm:$0xff] %v476
                %v478 = vld [vmem:[%s260 + $0xd80] sm:$0xff]
                %479 = vst [vmem:[%s261 + $0x360] sm:$0xff] %v478
                %v480 = vld [vmem:[%s260 + $0xd88] sm:$0xff]
                %481 = vst [vmem:[%s261 + $0x368] sm:$0xff] %v480
                %v482 = vld [vmem:[%s260 + $0xd90] sm:$0xff]
                %483 = vst [vmem:[%s261 + $0x370] sm:$0xff] %v482
                %v484 = vld [vmem:[%s260 + $0xd98] sm:$0xff]
                %485 = vst [vmem:[%s261 + $0x378] sm:$0xff] %v484
                %v486 = vld [vmem:[%s260 + $0xda0] sm:$0xff]
                %487 = vst [vmem:[%s261 + $0x380] sm:$0xff] %v486
                %v488 = vld [vmem:[%s260 + $0xda8] sm:$0xff]
                %489 = vst [vmem:[%s261 + $0x388] sm:$0xff] %v488
                %v490 = vld [vmem:[%s260 + $0xe40] sm:$0xff]
                %491 = vst [vmem:[%s261 + $0x390] sm:$0xff] %v490
                %v492 = vld [vmem:[%s260 + $0xe48] sm:$0xff]
                %493 = vst [vmem:[%s261 + $0x398] sm:$0xff] %v492
                %v494 = vld [vmem:[%s260 + $0xe50] sm:$0xff]
                %495 = vst [vmem:[%s261 + $0x3a0] sm:$0xff] %v494
                %v496 = vld [vmem:[%s260 + $0xe58] sm:$0xff]
                %497 = vst [vmem:[%s261 + $0x3a8] sm:$0xff] %v496
                %v498 = vld [vmem:[%s260 + $0xe60] sm:$0xff]
                %499 = vst [vmem:[%s261 + $0x3b0] sm:$0xff] %v498
                %v500 = vld [vmem:[%s260 + $0xe68] sm:$0xff]
                %501 = vst [vmem:[%s261 + $0x3b8] sm:$0xff] %v500
                %v502 = vld [vmem:[%s260 + $0xf00] sm:$0xff]
                %503 = vst [vmem:[%s261 + $0x3c0] sm:$0xff] %v502
                %v504 = vld [vmem:[%s260 + $0xf08] sm:$0xff]
                %505 = vst [vmem:[%s261 + $0x3c8] sm:$0xff] %v504
                %v506 = vld [vmem:[%s260 + $0xf10] sm:$0xff]
                %507 = vst [vmem:[%s261 + $0x3d0] sm:$0xff] %v506
                %v508 = vld [vmem:[%s260 + $0xf18] sm:$0xff]
                %509 = vst [vmem:[%s261 + $0x3d8] sm:$0xff] %v508
                %v510 = vld [vmem:[%s260 + $0xf20] sm:$0xff]
                %511 = vst [vmem:[%s261 + $0x3e0] sm:$0xff] %v510
                %v512 = vld [vmem:[%s260 + $0xf28] sm:$0xff]
                %513 = vst [vmem:[%s261 + $0x3e8] sm:$0xff] %v512
                %v514 = vld [vmem:[%s260 + $0xfc0] sm:$0xff]
                %515 = vst [vmem:[%s261 + $0x3f0] sm:$0xff] %v514
                %v516 = vld [vmem:[%s260 + $0xfc8] sm:$0xff]
                %517 = vst [vmem:[%s261 + $0x3f8] sm:$0xff] %v516
                %v518 = vld [vmem:[%s260 + $0xfd0] sm:$0xff]
                %519 = vst [vmem:[%s261 + $0x400] sm:$0xff] %v518
                %v520 = vld [vmem:[%s260 + $0xfd8] sm:$0xff]
                %521 = vst [vmem:[%s261 + $0x408] sm:$0xff] %v520
                %v522 = vld [vmem:[%s260 + $0xfe0] sm:$0xff]
                %523 = vst [vmem:[%s261 + $0x410] sm:$0xff] %v522
                %v524 = vld [vmem:[%s260 + $0xfe8] sm:$0xff]
                %525 = vst [vmem:[%s261 + $0x418] sm:$0xff] %v524
                %v526 = vld [vmem:[%s260 + $0x1080] sm:$0xff]
                %527 = vst [vmem:[%s261 + $0x420] sm:$0xff] %v526
                %v528 = vld [vmem:[%s260 + $0x1088] sm:$0xff]
                %529 = vst [vmem:[%s261 + $0x428] sm:$0xff] %v528
                %v530 = vld [vmem:[%s260 + $0x1090] sm:$0xff]
                %531 = vst [vmem:[%s261 + $0x430] sm:$0xff] %v530
                %v532 = vld [vmem:[%s260 + $0x1098] sm:$0xff]
                %533 = vst [vmem:[%s261 + $0x438] sm:$0xff] %v532
                %v534 = vld [vmem:[%s260 + $0x10a0] sm:$0xff]
                %535 = vst [vmem:[%s261 + $0x440] sm:$0xff] %v534
                %v536 = vld [vmem:[%s260 + $0x10a8] sm:$0xff]
                %537 = vst [vmem:[%s261 + $0x448] sm:$0xff] %v536
                %v538 = vld [vmem:[%s260 + $0x1140] sm:$0xff]
                %539 = vst [vmem:[%s261 + $0x450] sm:$0xff] %v538
                %v540 = vld [vmem:[%s260 + $0x1148] sm:$0xff]
                %541 = vst [vmem:[%s261 + $0x458] sm:$0xff] %v540
                %v542 = vld [vmem:[%s260 + $0x1150] sm:$0xff]
                %543 = vst [vmem:[%s261 + $0x460] sm:$0xff] %v542
                %v544 = vld [vmem:[%s260 + $0x1158] sm:$0xff]
                %545 = vst [vmem:[%s261 + $0x468] sm:$0xff] %v544
                %v546 = vld [vmem:[%s260 + $0x1160] sm:$0xff]
                %547 = vst [vmem:[%s261 + $0x470] sm:$0xff] %v546
                %v548 = vld [vmem:[%s260 + $0x1168] sm:$0xff]
                %549 = vst [vmem:[%s261 + $0x478] sm:$0xff] %v548
                %v550 = vld [vmem:[%s260 + $0x1200] sm:$0xff]
                %551 = vst [vmem:[%s261 + $0x480] sm:$0xff] %v550
                %v552 = vld [vmem:[%s260 + $0x1208] sm:$0xff]
                %553 = vst [vmem:[%s261 + $0x488] sm:$0xff] %v552
                %v554 = vld [vmem:[%s260 + $0x1210] sm:$0xff]
                %555 = vst [vmem:[%s261 + $0x490] sm:$0xff] %v554
                %v556 = vld [vmem:[%s260 + $0x1218] sm:$0xff]
                %557 = vst [vmem:[%s261 + $0x498] sm:$0xff] %v556
                %v558 = vld [vmem:[%s260 + $0x1220] sm:$0xff]
                %559 = vst [vmem:[%s261 + $0x4a0] sm:$0xff] %v558
                %v560 = vld [vmem:[%s260 + $0x1228] sm:$0xff]
                %561 = vst [vmem:[%s261 + $0x4a8] sm:$0xff] %v560
                %v562 = vld [vmem:[%s260 + $0x12c0] sm:$0xff]
                %563 = vst [vmem:[%s261 + $0x4b0] sm:$0xff] %v562
                %v564 = vld [vmem:[%s260 + $0x12c8] sm:$0xff]
                %565 = vst [vmem:[%s261 + $0x4b8] sm:$0xff] %v564
                %v566 = vld [vmem:[%s260 + $0x12d0] sm:$0xff]
                %567 = vst [vmem:[%s261 + $0x4c0] sm:$0xff] %v566
                %v568 = vld [vmem:[%s260 + $0x12d8] sm:$0xff]
                %569 = vst [vmem:[%s261 + $0x4c8] sm:$0xff] %v568
                %v570 = vld [vmem:[%s260 + $0x12e0] sm:$0xff]
                %571 = vst [vmem:[%s261 + $0x4d0] sm:$0xff] %v570
                %v572 = vld [vmem:[%s260 + $0x12e8] sm:$0xff]
                %573 = vst [vmem:[%s261 + $0x4d8] sm:$0xff] %v572
                %v574 = vld [vmem:[%s260 + $0x1380] sm:$0xff]
                %575 = vst [vmem:[%s261 + $0x4e0] sm:$0xff] %v574
                %v576 = vld [vmem:[%s260 + $0x1388] sm:$0xff]
                %577 = vst [vmem:[%s261 + $0x4e8] sm:$0xff] %v576
                %v578 = vld [vmem:[%s260 + $0x1390] sm:$0xff]
                %579 = vst [vmem:[%s261 + $0x4f0] sm:$0xff] %v578
                %v580 = vld [vmem:[%s260 + $0x1398] sm:$0xff]
                %581 = vst [vmem:[%s261 + $0x4f8] sm:$0xff] %v580
                %v582 = vld [vmem:[%s260 + $0x13a0] sm:$0xff]
                %583 = vst [vmem:[%s261 + $0x500] sm:$0xff] %v582
                %v584 = vld [vmem:[%s260 + $0x13a8] sm:$0xff]
                %585 = vst [vmem:[%s261 + $0x508] sm:$0xff] %v584
                %v586 = vld [vmem:[%s260 + $0x1440] sm:$0xff]
                %587 = vst [vmem:[%s261 + $0x510] sm:$0xff] %v586
                %v588 = vld [vmem:[%s260 + $0x1448] sm:$0xff]
                %589 = vst [vmem:[%s261 + $0x518] sm:$0xff] %v588
                %v590 = vld [vmem:[%s260 + $0x1450] sm:$0xff]
                %591 = vst [vmem:[%s261 + $0x520] sm:$0xff] %v590
                %v592 = vld [vmem:[%s260 + $0x1458] sm:$0xff]
                %593 = vst [vmem:[%s261 + $0x528] sm:$0xff] %v592
                %v594 = vld [vmem:[%s260 + $0x1460] sm:$0xff]
                %595 = vst [vmem:[%s261 + $0x530] sm:$0xff] %v594
                %v596 = vld [vmem:[%s260 + $0x1468] sm:$0xff]
                %597 = vst [vmem:[%s261 + $0x538] sm:$0xff] %v596
              $region41: #{smpl_regressor_forward.3} parent=35 // loop_footer
                %s259 = sadd.s32 1, %s255
              $region42: #{smpl_regressor_forward.3} parent=35 // loop_footer_branch
                %254 = sbr.rel target = $region38
              $region43: #{smpl_regressor_forward.3} parent=35 // loop_exit
                _
            $region36: #{smpl_regressor_forward.3} parent=31 // pred_fallthru
              _
            // Predicated region
            $region44: #{smpl_regressor_forward.3} parent=31 // pred_check
              _
            $region45: #{smpl_regressor_forward.3} parent=31 // pred_check_branch
              %599 = sbr.rel target = $region47
            $region46: #{smpl_regressor_forward.3} parent=31 // pred_region
              _
            $region47: #{smpl_regressor_forward.3} parent=31 // pred_fallthru
              _
          $region32: #{smpl_regressor_forward.3} parent=27 // pred_fallthru
            _
          %600 = vnop
        $region28: #{smpl_regressor_forward.3} parent=23 // pred_fallthru
          _
        // Predicated region
        $region48: #{smpl_regressor_forward.3} parent=23 // pred_check
          %p601 = pneg %p121
        $region49: #{smpl_regressor_forward.3} parent=23 // pred_check_branch
          %603 = sbr.rel (%p601) target = $region51
        $region50: #{smpl_regressor_forward.3} parent=23 // pred_region
          %s604 = sand.u32 %s111, 1
          %s605 = sand.u32 %s111, 1
          %s606 = smul.addr %s605, 48
          %s607 = scalar_lea.vmem [#allocation4], %s606
          %s608 = smul.u32 %s20, 2
          %s609 = sadd.s32 %s608, %s21
          %s610 = smul.u32 4, %s609
          %s611 = smul.addr %s610, 4
          %s612 = scalar_lea.vmem %s3, %s611
          // Predicated region
          $region52: #{smpl_regressor_forward.3} parent=50 // pred_check
            _
          $region53: #{smpl_regressor_forward.3} parent=50 // pred_check_branch
            %614 = sbr.rel (0) target = $region55
          $region54: #{smpl_regressor_forward.3} parent=50 // pred_region
            // Predicated region
            $region56: #{smpl_regressor_forward.3} parent=54 // pred_check
              _
            $region57: #{smpl_regressor_forward.3} parent=54 // pred_check_branch
              %616 = sbr.rel (0) target = $region59
            $region58: #{smpl_regressor_forward.3} parent=54 // pred_region
              loop: start=0, step=1, limit=1
              $region60: #{smpl_regressor_forward.3} parent=58 // loop_pre_header
                _
              $region61: #{smpl_regressor_forward.3} parent=58 // loop_header
                %s618 = sphi 0, %s622
                %p619 = scmp.ge.s32.totalorder %s618, 1
                %s623 = sphi %s612, %s612
                %s624 = sphi %s607, %s607
              $region62: #{smpl_regressor_forward.3} parent=58 // loop_header_branch
                %621 = sbr.rel (%p619) target = $region66
              $region63: #{smpl_regressor_forward.3} parent=58 // loop_body
                %v625 = vld [vmem:[%s623] sm:$0xff]
                %626 = vst [vmem:[%s624] sm:$0xff] %v625
                %v627 = vld [vmem:[%s623 + $0x8] sm:$0xff]
                %628 = vst [vmem:[%s624 + $0x8] sm:$0xff] %v627
                %v629 = vld [vmem:[%s623 + $0x40] sm:$0xff]
                %630 = vst [vmem:[%s624 + $0x10] sm:$0xff] %v629
                %v631 = vld [vmem:[%s623 + $0x48] sm:$0xff]
                %632 = vst [vmem:[%s624 + $0x18] sm:$0xff] %v631
                %v633 = vld [vmem:[%s623 + $0x80] sm:$0xff]
                %634 = vst [vmem:[%s624 + $0x20] sm:$0xff] %v633
                %v635 = vld [vmem:[%s623 + $0x88] sm:$0xff]
                %636 = vst [vmem:[%s624 + $0x28] sm:$0xff] %v635
              $region64: #{smpl_regressor_forward.3} parent=58 // loop_footer
                %s622 = sadd.s32 1, %s618
              $region65: #{smpl_regressor_forward.3} parent=58 // loop_footer_branch
                %617 = sbr.rel target = $region61
              $region66: #{smpl_regressor_forward.3} parent=58 // loop_exit
                _
            $region59: #{smpl_regressor_forward.3} parent=54 // pred_fallthru
              _
            // Predicated region
            $region67: #{smpl_regressor_forward.3} parent=54 // pred_check
              _
            $region68: #{smpl_regressor_forward.3} parent=54 // pred_check_branch
              %638 = sbr.rel target = $region70
            $region69: #{smpl_regressor_forward.3} parent=54 // pred_region
              _
            $region70: #{smpl_regressor_forward.3} parent=54 // pred_fallthru
              _
          $region55: #{smpl_regressor_forward.3} parent=50 // pred_fallthru
            _
          %639 = vnop
        $region51: #{smpl_regressor_forward.3} parent=23 // pred_fallthru
          _
        // Predicated region
        $region71: #{smpl_regressor_forward.3} parent=23 // pred_check
          %p640 = pneg %p151
        $region72: #{smpl_regressor_forward.3} parent=23 // pred_check_branch
          %642 = sbr.rel (%p640) target = $region74
        $region73: #{smpl_regressor_forward.3} parent=23 // pred_region
          %s643 = smul.u32 %s20, 2
          %s644 = sadd.s32 %s643, %s21
          %s645 = smul.u32 64, %s644
          %p646 = scmp.lt.s32.totalorder %s645, 255
          %s647 = scalar_select %p646, %s645, 255
          %s648 = smul.addr %s647, 4
          %s649 = scalar_lea.vmem %s4, %s648
          %s650 = smul.u32 %s20, 2
          %s651 = sadd.s32 %s650, %s21
          %s652 = smul.u32 64, %s651
        $region74: #{smpl_regressor_forward.3} parent=23 // pred_fallthru
          _
      $region24: #{smpl_regressor_forward.3} parent=5 // pred_fallthru
        _
      %p653 = scmp.le.s32.totalorder 1, %s13
      %p654 = scmp.lt.s32.totalorder %s13, 5
      %p655 = pnand %p653, %p654
      %p656 = pneg %p655
      // Predicated region
      $region75: #{smpl_regressor_forward.3} parent=5 // pred_check
        _
      $region76: #{smpl_regressor_forward.3} parent=5 // pred_check_branch
        %658 = sbr.rel (%p655) target = $region78
      $region77: #{smpl_regressor_forward.3} parent=5 // pred_region
        %s659 = ssub.s32 %s13, 1
        %s660 = sand.u32 %s84, 1
        %s661 = sand.u32 %s84, 1
        %s662 = smul.addr %s661, 1344
        %s663 = scalar_lea.vmem [#allocation3], %s662
        // Predicated region
        $region79: #{smpl_regressor_forward.3} parent=77 // pred_check
          %p664 = pneg %p97
        $region80: #{smpl_regressor_forward.3} parent=77 // pred_check_branch
          %666 = sbr.rel (%p664) target = $region82
        $region81: #{smpl_regressor_forward.3} parent=77 // pred_region
          _
        $region82: #{smpl_regressor_forward.3} parent=77 // pred_fallthru
          _
        %s667 = sand.u32 %s114, 1
        %s668 = sand.u32 %s114, 1
        %s669 = smul.addr %s668, 48
        %s670 = scalar_lea.vmem [#allocation4], %s669
        // Predicated region
        $region83: #{smpl_regressor_forward.3} parent=77 // pred_check
          %p671 = pneg %p127
        $region84: #{smpl_regressor_forward.3} parent=77 // pred_check_branch
          %673 = sbr.rel (%p671) target = $region86
        $region85: #{smpl_regressor_forward.3} parent=77 // pred_region
          _
        $region86: #{smpl_regressor_forward.3} parent=77 // pred_fallthru
          _
        %p674 = pneg %p46
        %p675 = pneg %p43
        %p676 = pneg %p67
        %p677 = pneg %p64
        %s678 = sand.u32 %s84, 1
        %s679 = sand.u32 %s84, 1
        %s680 = smul.addr %s679, 1344
        %s681 = scalar_lea.vmem [#allocation3], %s680
        %p682 = pneg %p97
        %p683 = pneg %p94
        %s684 = sand.u32 %s114, 1
        %s685 = sand.u32 %s114, 1
        %s686 = smul.addr %s685, 48
        %s687 = scalar_lea.vmem [#allocation4], %s686
        %p688 = pneg %p127
        %p689 = pneg %p124
        %s690 = smul.u32 %s22, 2
        %s691 = sadd.s32 %s690, %s23
        %s692 = smul.u32 64, %s691
        %p693 = scmp.lt.s32.totalorder %s692, 255
        %s694 = scalar_select %p693, %s692, 255
        %s695 = smul.addr %s694, 4
        %s696 = scalar_lea.vmem %s4, %s695
        %p697 = pneg %p157
        %p698 = pneg %p154
        %p699 = pneg %p187
        %p700 = pneg %p184
        %s701 = sand.u32 %s174, 1
        %s702 = sand.u32 %s174, 1
        %s703 = smul.addr %s702, 192
        %s704 = scalar_lea.vmem [#allocation5], %s703
        %p705 = pneg %p213
        %p706 = pneg %p210
        %p707 = scmp.lt.s32.totalorder %s22, 1
        %s708 = scalar_select %p707, %s22, 1
        %s709 = smul.addr %s708, 6
        %s710 = smul.addr %s709, 8
        %s711 = scalar_lea.vmem %s6, %s710
        %s712 = smul.u32 %s22, 2
        %s713 = sadd.s32 %s712, %s23
        %s714 = smul.u32 12, %s713
        %s715 = smul.u32 %s22, 2
        %s716 = sadd.s32 %s715, %s23
        %s717 = smul.u32 4, %s716
        %s718 = smul.u32 %s22, 2
        %s719 = sadd.s32 %s718, %s23
        %s720 = smul.u32 64, %s719
        %p721 = scmp.lt.s32.totalorder %s720, 255
        %s722 = scalar_select %p721, %s720, 255
        %s723 = smul.addr %s722, 4
        %s724 = scalar_lea.vmem %s4, %s723
        %s725 = smul.u32 %s22, 2
        %s726 = sadd.s32 %s725, %s23
        %s727 = smul.u32 64, %s726
        %s728 = smul.u32 %s22, 2
        %s729 = sadd.s32 %s728, %s23
        %s730 = smul.u32 4, %s729
        %p731 = scmp.lt.s32.totalorder %s22, 1
        %s732 = scalar_select %p731, %s22, 1
        %s733 = smul.addr %s732, 6
        %s734 = smul.addr %s733, 8
        %s735 = scalar_lea.vmem %s6, %s734
        %p737 = scmp.eq.s32.totalorder %s23, 0
        // Predicated region
        $region87: #{smpl_regressor_forward.3} parent=77 // pred_check
          %p738 = pneg %p737
        $region88: #{smpl_regressor_forward.3} parent=77 // pred_check_branch
          %740 = sbr.rel (%p738) target = $region90
        $region89: #{smpl_regressor_forward.3} parent=77 // pred_region
          %741 = vst [vmem:[#allocation2] sm:$0xff] 0.0
          %742 = vst [vmem:[#allocation2 + $0x8] sm:$0xff] 0.0
          %743 = vst [vmem:[#allocation2 + $0x10] sm:$0xff] 0.0
          %744 = vst [vmem:[#allocation2 + $0x18] sm:$0xff] 0.0
          %745 = vst [vmem:[#allocation2 + $0x20] sm:$0xff] 0.0
          %746 = vst [vmem:[#allocation2 + $0x28] sm:$0xff] 0.0
        $region90: #{smpl_regressor_forward.3} parent=77 // pred_fallthru
          _
        %v747 = vld [vmem:[%s0] sm:$0xff]
        %v748 = vld [vmem:[%s0 + $0x8] sm:$0xff]
        %v749 = vld [vmem:[%s0 + $0x10] sm:$0xff]
        %v750 = vld [vmem:[%s0 + $0x18] sm:$0xff]
        %v751 = vpack.c.bf16 %v749, %v747
        %v752 = vpack.c.bf16 %v750, %v748
        %v753 = vld [vmem:[%s1] sm:$0xff]
        %v754 = vld [vmem:[%s1 + $0x8] sm:$0xff]
        %v755 = vld [vmem:[%s1 + $0x10] sm:$0xff]
        %v756 = vld [vmem:[%s1 + $0x18] sm:$0xff]
        %v757 = vld [vmem:[%s1 + $0x20] sm:$0xff]
        %v758 = vld [vmem:[%s1 + $0x28] sm:$0xff]
        %v759 = vld [vmem:[%s1 + $0x30] sm:$0xff]
        %v760 = vld [vmem:[%s1 + $0x38] sm:$0xff]
        %v761 = vld [vmem:[%s1 + $0x40] sm:$0xff]
        %v762 = vld [vmem:[%s1 + $0x48] sm:$0xff]
        %v763 = vld [vmem:[%s1 + $0x50] sm:$0xff]
        %v764 = vld [vmem:[%s1 + $0x58] sm:$0xff]
        %v765 = vld [vmem:[%s1 + $0x60] sm:$0xff]
        %v766 = vld [vmem:[%s1 + $0x68] sm:$0xff]
        %v767 = vld [vmem:[%s1 + $0x70] sm:$0xff]
        %v768 = vld [vmem:[%s1 + $0x78] sm:$0xff]
        %v769 = vld [vmem:[%s1 + $0x80] sm:$0xff]
        %v770 = vld [vmem:[%s1 + $0x88] sm:$0xff]
        %v771 = vld [vmem:[%s1 + $0x90] sm:$0xff]
        %v772 = vld [vmem:[%s1 + $0x98] sm:$0xff]
        %v773 = vld [vmem:[%s1 + $0xa0] sm:$0xff]
        %v774 = vld [vmem:[%s1 + $0xa8] sm:$0xff]
        %v775 = vld [vmem:[%s1 + $0xb0] sm:$0xff]
        %v776 = vld [vmem:[%s1 + $0xb8] sm:$0xff]
        %v777 = vpack.c.bf16 %v754, %v753
        %v778 = vpack.c.bf16 %v756, %v755
        %v779 = vpack.c.bf16 %v758, %v757
        %v780 = vpack.c.bf16 %v760, %v759
        %v781 = vpack.c.bf16 %v762, %v761
        %v782 = vpack.c.bf16 %v764, %v763
        %v783 = vpack.c.bf16 %v766, %v765
        %v784 = vpack.c.bf16 %v768, %v767
        %v785 = vpack.c.bf16 %v770, %v769
        %v786 = vpack.c.bf16 %v772, %v771
        %v787 = vpack.c.bf16 %v774, %v773
        %v788 = vpack.c.bf16 %v776, %v775
        %v789 = vld [vmem:[%s663] sm:$0xff]
        %v790 = vld [vmem:[%s663 + $0x8] sm:$0xff]
        %v791 = vld [vmem:[%s663 + $0x10] sm:$0xff]
        %v792 = vld [vmem:[%s663 + $0x18] sm:$0xff]
        %v793 = vld [vmem:[%s663 + $0x20] sm:$0xff]
        %v794 = vld [vmem:[%s663 + $0x28] sm:$0xff]
        %v795 = vld [vmem:[%s663 + $0x30] sm:$0xff]
        %v796 = vld [vmem:[%s663 + $0x38] sm:$0xff]
        %v797 = vld [vmem:[%s663 + $0x40] sm:$0xff]
        %v798 = vld [vmem:[%s663 + $0x48] sm:$0xff]
        %v799 = vld [vmem:[%s663 + $0x50] sm:$0xff]
        %v800 = vld [vmem:[%s663 + $0x58] sm:$0xff]
        %v801 = vld [vmem:[%s663 + $0x60] sm:$0xff]
        %v802 = vld [vmem:[%s663 + $0x68] sm:$0xff]
        %v803 = vld [vmem:[%s663 + $0x70] sm:$0xff]
        %v804 = vld [vmem:[%s663 + $0x78] sm:$0xff]
        %v805 = vld [vmem:[%s663 + $0x80] sm:$0xff]
        %v806 = vld [vmem:[%s663 + $0x88] sm:$0xff]
        %v807 = vld [vmem:[%s663 + $0x90] sm:$0xff]
        %v808 = vld [vmem:[%s663 + $0x98] sm:$0xff]
        %v809 = vld [vmem:[%s663 + $0xa0] sm:$0xff]
        %v810 = vld [vmem:[%s663 + $0xa8] sm:$0xff]
        %v811 = vld [vmem:[%s663 + $0xb0] sm:$0xff]
        %v812 = vld [vmem:[%s663 + $0xb8] sm:$0xff]
        %v813 = vld [vmem:[%s663 + $0xc0] sm:$0xff]
        %v814 = vld [vmem:[%s663 + $0xc8] sm:$0xff]
        %v815 = vld [vmem:[%s663 + $0xd0] sm:$0xff]
        %v816 = vld [vmem:[%s663 + $0xd8] sm:$0xff]
        %v817 = vld [vmem:[%s663 + $0xe0] sm:$0xff]
        %v818 = vld [vmem:[%s663 + $0xe8] sm:$0xff]
        %v819 = vld [vmem:[%s663 + $0xf0] sm:$0xff]
        %v820 = vld [vmem:[%s663 + $0xf8] sm:$0xff]
        %v821 = vld [vmem:[%s663 + $0x100] sm:$0xff]
        %v822 = vld [vmem:[%s663 + $0x108] sm:$0xff]
        %v823 = vld [vmem:[%s663 + $0x110] sm:$0xff]
        %v824 = vld [vmem:[%s663 + $0x118] sm:$0xff]
        %v825 = vld [vmem:[%s663 + $0x120] sm:$0xff]
        %v826 = vld [vmem:[%s663 + $0x128] sm:$0xff]
        %v827 = vld [vmem:[%s663 + $0x130] sm:$0xff]
        %v828 = vld [vmem:[%s663 + $0x138] sm:$0xff]
        %v829 = vld [vmem:[%s663 + $0x140] sm:$0xff]
        %v830 = vld [vmem:[%s663 + $0x148] sm:$0xff]
        %v831 = vld [vmem:[%s663 + $0x150] sm:$0xff]
        %v832 = vld [vmem:[%s663 + $0x158] sm:$0xff]
        %v833 = vld [vmem:[%s663 + $0x160] sm:$0xff]
        %v834 = vld [vmem:[%s663 + $0x168] sm:$0xff]
        %v835 = vld [vmem:[%s663 + $0x170] sm:$0xff]
        %v836 = vld [vmem:[%s663 + $0x178] sm:$0xff]
        %v837 = vld [vmem:[%s663 + $0x180] sm:$0xff]
        %v838 = vld [vmem:[%s663 + $0x188] sm:$0xff]
        %v839 = vld [vmem:[%s663 + $0x190] sm:$0xff]
        %v840 = vld [vmem:[%s663 + $0x198] sm:$0xff]
        %v841 = vld [vmem:[%s663 + $0x1a0] sm:$0xff]
        %v842 = vld [vmem:[%s663 + $0x1a8] sm:$0xff]
        %v843 = vld [vmem:[%s663 + $0x1b0] sm:$0xff]
        %v844 = vld [vmem:[%s663 + $0x1b8] sm:$0xff]
        %v845 = vld [vmem:[%s663 + $0x1c0] sm:$0xff]
        %v846 = vld [vmem:[%s663 + $0x1c8] sm:$0xff]
        %v847 = vld [vmem:[%s663 + $0x1d0] sm:$0xff]
        %v848 = vld [vmem:[%s663 + $0x1d8] sm:$0xff]
        %v849 = vld [vmem:[%s663 + $0x1e0] sm:$0xff]
        %v850 = vld [vmem:[%s663 + $0x1e8] sm:$0xff]
        %v851 = vld [vmem:[%s663 + $0x1f0] sm:$0xff]
        %v852 = vld [vmem:[%s663 + $0x1f8] sm:$0xff]
        %v853 = vld [vmem:[%s663 + $0x200] sm:$0xff]
        %v854 = vld [vmem:[%s663 + $0x208] sm:$0xff]
        %v855 = vld [vmem:[%s663 + $0x210] sm:$0xff]
        %v856 = vld [vmem:[%s663 + $0x218] sm:$0xff]
        %v857 = vld [vmem:[%s663 + $0x220] sm:$0xff]
        %v858 = vld [vmem:[%s663 + $0x228] sm:$0xff]
        %v859 = vld [vmem:[%s663 + $0x230] sm:$0xff]
        %v860 = vld [vmem:[%s663 + $0x238] sm:$0xff]
        %v861 = vld [vmem:[%s663 + $0x240] sm:$0xff]
        %v862 = vld [vmem:[%s663 + $0x248] sm:$0xff]
        %v863 = vld [vmem:[%s663 + $0x250] sm:$0xff]
        %v864 = vld [vmem:[%s663 + $0x258] sm:$0xff]
        %v865 = vld [vmem:[%s663 + $0x260] sm:$0xff]
        %v866 = vld [vmem:[%s663 + $0x268] sm:$0xff]
        %v867 = vld [vmem:[%s663 + $0x270] sm:$0xff]
        %v868 = vld [vmem:[%s663 + $0x278] sm:$0xff]
        %v869 = vld [vmem:[%s663 + $0x280] sm:$0xff]
        %v870 = vld [vmem:[%s663 + $0x288] sm:$0xff]
        %v871 = vld [vmem:[%s663 + $0x290] sm:$0xff]
        %v872 = vld [vmem:[%s663 + $0x298] sm:$0xff]
        %v873 = vld [vmem:[%s663 + $0x2a0] sm:$0xff]
        %v874 = vld [vmem:[%s663 + $0x2a8] sm:$0xff]
        %v875 = vld [vmem:[%s663 + $0x2b0] sm:$0xff]
        %v876 = vld [vmem:[%s663 + $0x2b8] sm:$0xff]
        %v877 = vld [vmem:[%s663 + $0x2c0] sm:$0xff]
        %v878 = vld [vmem:[%s663 + $0x2c8] sm:$0xff]
        %v879 = vld [vmem:[%s663 + $0x2d0] sm:$0xff]
        %v880 = vld [vmem:[%s663 + $0x2d8] sm:$0xff]
        %v881 = vld [vmem:[%s663 + $0x2e0] sm:$0xff]
        %v882 = vld [vmem:[%s663 + $0x2e8] sm:$0xff]
        %v883 = vld [vmem:[%s663 + $0x2f0] sm:$0xff]
        %v884 = vld [vmem:[%s663 + $0x2f8] sm:$0xff]
        %v885 = vld [vmem:[%s663 + $0x300] sm:$0xff]
        %v886 = vld [vmem:[%s663 + $0x308] sm:$0xff]
        %v887 = vld [vmem:[%s663 + $0x310] sm:$0xff]
        %v888 = vld [vmem:[%s663 + $0x318] sm:$0xff]
        %v889 = vld [vmem:[%s663 + $0x320] sm:$0xff]
        %v890 = vld [vmem:[%s663 + $0x328] sm:$0xff]
        %v891 = vld [vmem:[%s663 + $0x330] sm:$0xff]
        %v892 = vld [vmem:[%s663 + $0x338] sm:$0xff]
        %v893 = vld [vmem:[%s663 + $0x340] sm:$0xff]
        %v894 = vld [vmem:[%s663 + $0x348] sm:$0xff]
        %v895 = vld [vmem:[%s663 + $0x350] sm:$0xff]
        %v896 = vld [vmem:[%s663 + $0x358] sm:$0xff]
        %v897 = vld [vmem:[%s663 + $0x360] sm:$0xff]
        %v898 = vld [vmem:[%s663 + $0x368] sm:$0xff]
        %v899 = vld [vmem:[%s663 + $0x370] sm:$0xff]
        %v900 = vld [vmem:[%s663 + $0x378] sm:$0xff]
        %v901 = vld [vmem:[%s663 + $0x380] sm:$0xff]
        %v902 = vld [vmem:[%s663 + $0x388] sm:$0xff]
        %v903 = vld [vmem:[%s663 + $0x390] sm:$0xff]
        %v904 = vld [vmem:[%s663 + $0x398] sm:$0xff]
        %v905 = vld [vmem:[%s663 + $0x3a0] sm:$0xff]
        %v906 = vld [vmem:[%s663 + $0x3a8] sm:$0xff]
        %v907 = vld [vmem:[%s663 + $0x3b0] sm:$0xff]
        %v908 = vld [vmem:[%s663 + $0x3b8] sm:$0xff]
        %v909 = vld [vmem:[%s663 + $0x3c0] sm:$0xff]
        %v910 = vld [vmem:[%s663 + $0x3c8] sm:$0xff]
        %v911 = vld [vmem:[%s663 + $0x3d0] sm:$0xff]
        %v912 = vld [vmem:[%s663 + $0x3d8] sm:$0xff]
        %v913 = vld [vmem:[%s663 + $0x3e0] sm:$0xff]
        %v914 = vld [vmem:[%s663 + $0x3e8] sm:$0xff]
        %v915 = vld [vmem:[%s663 + $0x3f0] sm:$0xff]
        %v916 = vld [vmem:[%s663 + $0x3f8] sm:$0xff]
        %v917 = vld [vmem:[%s663 + $0x400] sm:$0xff]
        %v918 = vld [vmem:[%s663 + $0x408] sm:$0xff]
        %v919 = vld [vmem:[%s663 + $0x410] sm:$0xff]
        %v920 = vld [vmem:[%s663 + $0x418] sm:$0xff]
        %v921 = vld [vmem:[%s663 + $0x420] sm:$0xff]
        %v922 = vld [vmem:[%s663 + $0x428] sm:$0xff]
        %v923 = vld [vmem:[%s663 + $0x430] sm:$0xff]
        %v924 = vld [vmem:[%s663 + $0x438] sm:$0xff]
        %v925 = vld [vmem:[%s663 + $0x440] sm:$0xff]
        %v926 = vld [vmem:[%s663 + $0x448] sm:$0xff]
        %v927 = vld [vmem:[%s663 + $0x450] sm:$0xff]
        %v928 = vld [vmem:[%s663 + $0x458] sm:$0xff]
        %v929 = vld [vmem:[%s663 + $0x460] sm:$0xff]
        %v930 = vld [vmem:[%s663 + $0x468] sm:$0xff]
        %v931 = vld [vmem:[%s663 + $0x470] sm:$0xff]
        %v932 = vld [vmem:[%s663 + $0x478] sm:$0xff]
        %v933 = vld [vmem:[%s663 + $0x480] sm:$0xff]
        %v934 = vld [vmem:[%s663 + $0x488] sm:$0xff]
        %v935 = vld [vmem:[%s663 + $0x490] sm:$0xff]
        %v936 = vld [vmem:[%s663 + $0x498] sm:$0xff]
        %v937 = vld [vmem:[%s663 + $0x4a0] sm:$0xff]
        %v938 = vld [vmem:[%s663 + $0x4a8] sm:$0xff]
        %v939 = vld [vmem:[%s663 + $0x4b0] sm:$0xff]
        %v940 = vld [vmem:[%s663 + $0x4b8] sm:$0xff]
        %v941 = vld [vmem:[%s663 + $0x4c0] sm:$0xff]
        %v942 = vld [vmem:[%s663 + $0x4c8] sm:$0xff]
        %v943 = vld [vmem:[%s663 + $0x4d0] sm:$0xff]
        %v944 = vld [vmem:[%s663 + $0x4d8] sm:$0xff]
        %v945 = vld [vmem:[%s663 + $0x4e0] sm:$0xff]
        %v946 = vld [vmem:[%s663 + $0x4e8] sm:$0xff]
        %v947 = vld [vmem:[%s663 + $0x4f0] sm:$0xff]
        %v948 = vld [vmem:[%s663 + $0x4f8] sm:$0xff]
        %v949 = vld [vmem:[%s663 + $0x500] sm:$0xff]
        %v950 = vld [vmem:[%s663 + $0x508] sm:$0xff]
        %v951 = vld [vmem:[%s663 + $0x510] sm:$0x11]
        %v952 = vld [vmem:[%s663 + $0x518] sm:$0x11]
        %v953 = vld [vmem:[%s663 + $0x520] sm:$0x11]
        %v954 = vld [vmem:[%s663 + $0x528] sm:$0x11]
        %v955 = vld [vmem:[%s663 + $0x530] sm:$0x11]
        %v956 = vld [vmem:[%s663 + $0x538] sm:$0x11]
        %v1125 = vunpack.c.l.b16 %v789
        %v1126 = vunpack.c.h.b16 %v789
        %v1127 = vunpack.c.l.b16 %v790
        %v1128 = vunpack.c.h.b16 %v790
        %v1129 = vunpack.c.l.b16 %v791
        %v1130 = vunpack.c.h.b16 %v791
        %v1131 = vunpack.c.l.b16 %v792
        %v1132 = vunpack.c.h.b16 %v792
        %v1133 = vunpack.c.l.b16 %v793
        %v1134 = vunpack.c.h.b16 %v793
        %v1135 = vunpack.c.l.b16 %v794
        %v1136 = vunpack.c.h.b16 %v794
        %v1137 = vunpack.c.l.b16 %v795
        %v1138 = vunpack.c.h.b16 %v795
        %v1139 = vunpack.c.l.b16 %v796
        %v1140 = vunpack.c.h.b16 %v796
        %v1141 = vunpack.c.l.b16 %v797
        %v1142 = vunpack.c.h.b16 %v797
        %v1143 = vunpack.c.l.b16 %v798
        %v1144 = vunpack.c.h.b16 %v798
        %v1145 = vunpack.c.l.b16 %v799
        %v1146 = vunpack.c.h.b16 %v799
        %v1147 = vunpack.c.l.b16 %v800
        %v1148 = vunpack.c.h.b16 %v800
        %v1149 = vunpack.c.l.b16 %v801
        %v1150 = vunpack.c.h.b16 %v801
        %v1151 = vunpack.c.l.b16 %v802
        %v1152 = vunpack.c.h.b16 %v802
        %v1153 = vunpack.c.l.b16 %v803
        %v1154 = vunpack.c.h.b16 %v803
        %v1155 = vunpack.c.l.b16 %v804
        %v1156 = vunpack.c.h.b16 %v804
        %v1157 = vunpack.c.l.b16 %v805
        %v1158 = vunpack.c.h.b16 %v805
        %v1159 = vunpack.c.l.b16 %v806
        %v1160 = vunpack.c.h.b16 %v806
        %v1161 = vunpack.c.l.b16 %v807
        %v1162 = vunpack.c.h.b16 %v807
        %v1163 = vunpack.c.l.b16 %v808
        %v1164 = vunpack.c.h.b16 %v808
        %v1165 = vunpack.c.l.b16 %v809
        %v1166 = vunpack.c.h.b16 %v809
        %v1167 = vunpack.c.l.b16 %v810
        %v1168 = vunpack.c.h.b16 %v810
        %v1169 = vunpack.c.l.b16 %v811
        %v1170 = vunpack.c.h.b16 %v811
        %v1171 = vunpack.c.l.b16 %v812
        %v1172 = vunpack.c.h.b16 %v812
        %v1173 = vunpack.c.l.b16 %v813
        %v1174 = vunpack.c.h.b16 %v813
        %v1175 = vunpack.c.l.b16 %v814
        %v1176 = vunpack.c.h.b16 %v814
        %v1177 = vunpack.c.l.b16 %v815
        %v1178 = vunpack.c.h.b16 %v815
        %v1179 = vunpack.c.l.b16 %v816
        %v1180 = vunpack.c.h.b16 %v816
        %v1181 = vunpack.c.l.b16 %v817
        %v1182 = vunpack.c.h.b16 %v817
        %v1183 = vunpack.c.l.b16 %v818
        %v1184 = vunpack.c.h.b16 %v818
        %v1185 = vunpack.c.l.b16 %v819
        %v1186 = vunpack.c.h.b16 %v819
        %v1187 = vunpack.c.l.b16 %v820
        %v1188 = vunpack.c.h.b16 %v820
        %v1189 = vunpack.c.l.b16 %v821
        %v1190 = vunpack.c.h.b16 %v821
        %v1191 = vunpack.c.l.b16 %v822
        %v1192 = vunpack.c.h.b16 %v822
        %v1193 = vunpack.c.l.b16 %v823
        %v1194 = vunpack.c.h.b16 %v823
        %v1195 = vunpack.c.l.b16 %v824
        %v1196 = vunpack.c.h.b16 %v824
        %v1197 = vunpack.c.l.b16 %v825
        %v1198 = vunpack.c.h.b16 %v825
        %v1199 = vunpack.c.l.b16 %v826
        %v1200 = vunpack.c.h.b16 %v826
        %v1201 = vunpack.c.l.b16 %v827
        %v1202 = vunpack.c.h.b16 %v827
        %v1203 = vunpack.c.l.b16 %v828
        %v1204 = vunpack.c.h.b16 %v828
        %v1205 = vunpack.c.l.b16 %v829
        %v1206 = vunpack.c.h.b16 %v829
        %v1207 = vunpack.c.l.b16 %v830
        %v1208 = vunpack.c.h.b16 %v830
        %v1209 = vunpack.c.l.b16 %v831
        %v1210 = vunpack.c.h.b16 %v831
        %v1211 = vunpack.c.l.b16 %v832
        %v1212 = vunpack.c.h.b16 %v832
        %v1213 = vunpack.c.l.b16 %v833
        %v1214 = vunpack.c.h.b16 %v833
        %v1215 = vunpack.c.l.b16 %v834
        %v1216 = vunpack.c.h.b16 %v834
        %v1217 = vunpack.c.l.b16 %v835
        %v1218 = vunpack.c.h.b16 %v835
        %v1219 = vunpack.c.l.b16 %v836
        %v1220 = vunpack.c.h.b16 %v836
        %v1221 = vunpack.c.l.b16 %v837
        %v1222 = vunpack.c.h.b16 %v837
        %v1223 = vunpack.c.l.b16 %v838
        %v1224 = vunpack.c.h.b16 %v838
        %v1225 = vunpack.c.l.b16 %v839
        %v1226 = vunpack.c.h.b16 %v839
        %v1227 = vunpack.c.l.b16 %v840
        %v1228 = vunpack.c.h.b16 %v840
        %v1229 = vunpack.c.l.b16 %v841
        %v1230 = vunpack.c.h.b16 %v841
        %v1231 = vunpack.c.l.b16 %v842
        %v1232 = vunpack.c.h.b16 %v842
        %v1233 = vunpack.c.l.b16 %v843
        %v1234 = vunpack.c.h.b16 %v843
        %v1235 = vunpack.c.l.b16 %v844
        %v1236 = vunpack.c.h.b16 %v844
        %v1237 = vunpack.c.l.b16 %v845
        %v1238 = vunpack.c.h.b16 %v845
        %v1239 = vunpack.c.l.b16 %v846
        %v1240 = vunpack.c.h.b16 %v846
        %v1241 = vunpack.c.l.b16 %v847
        %v1242 = vunpack.c.h.b16 %v847
        %v1243 = vunpack.c.l.b16 %v848
        %v1244 = vunpack.c.h.b16 %v848
        %v1245 = vunpack.c.l.b16 %v849
        %v1246 = vunpack.c.h.b16 %v849
        %v1247 = vunpack.c.l.b16 %v850
        %v1248 = vunpack.c.h.b16 %v850
        %v1249 = vunpack.c.l.b16 %v851
        %v1250 = vunpack.c.h.b16 %v851
        %v1251 = vunpack.c.l.b16 %v852
        %v1252 = vunpack.c.h.b16 %v852
        %v1253 = vunpack.c.l.b16 %v853
        %v1254 = vunpack.c.h.b16 %v853
        %v1255 = vunpack.c.l.b16 %v854
        %v1256 = vunpack.c.h.b16 %v854
        %v1257 = vunpack.c.l.b16 %v855
        %v1258 = vunpack.c.h.b16 %v855
        %v1259 = vunpack.c.l.b16 %v856
        %v1260 = vunpack.c.h.b16 %v856
        %v1261 = vunpack.c.l.b16 %v857
        %v1262 = vunpack.c.h.b16 %v857
        %v1263 = vunpack.c.l.b16 %v858
        %v1264 = vunpack.c.h.b16 %v858
        %v1265 = vunpack.c.l.b16 %v859
        %v1266 = vunpack.c.h.b16 %v859
        %v1267 = vunpack.c.l.b16 %v860
        %v1268 = vunpack.c.h.b16 %v860
        %v1269 = vunpack.c.l.b16 %v861
        %v1270 = vunpack.c.h.b16 %v861
        %v1271 = vunpack.c.l.b16 %v862
        %v1272 = vunpack.c.h.b16 %v862
        %v1273 = vunpack.c.l.b16 %v863
        %v1274 = vunpack.c.h.b16 %v863
        %v1275 = vunpack.c.l.b16 %v864
        %v1276 = vunpack.c.h.b16 %v864
        %v1277 = vunpack.c.l.b16 %v865
        %v1278 = vunpack.c.h.b16 %v865
        %v1279 = vunpack.c.l.b16 %v866
        %v1280 = vunpack.c.h.b16 %v866
        %v1281 = vunpack.c.l.b16 %v867
        %v1282 = vunpack.c.h.b16 %v867
        %v1283 = vunpack.c.l.b16 %v868
        %v1284 = vunpack.c.h.b16 %v868
        %v1285 = vunpack.c.l.b16 %v869
        %v1286 = vunpack.c.h.b16 %v869
        %v1287 = vunpack.c.l.b16 %v870
        %v1288 = vunpack.c.h.b16 %v870
        %v1289 = vunpack.c.l.b16 %v871
        %v1290 = vunpack.c.h.b16 %v871
        %v1291 = vunpack.c.l.b16 %v872
        %v1292 = vunpack.c.h.b16 %v872
        %v1293 = vunpack.c.l.b16 %v873
        %v1294 = vunpack.c.h.b16 %v873
        %v1295 = vunpack.c.l.b16 %v874
        %v1296 = vunpack.c.h.b16 %v874
        %v1297 = vunpack.c.l.b16 %v875
        %v1298 = vunpack.c.h.b16 %v875
        %v1299 = vunpack.c.l.b16 %v876
        %v1300 = vunpack.c.h.b16 %v876
        %v1301 = vunpack.c.l.b16 %v877
        %v1302 = vunpack.c.h.b16 %v877
        %v1303 = vunpack.c.l.b16 %v878
        %v1304 = vunpack.c.h.b16 %v878
        %v1305 = vunpack.c.l.b16 %v879
        %v1306 = vunpack.c.h.b16 %v879
        %v1307 = vunpack.c.l.b16 %v880
        %v1308 = vunpack.c.h.b16 %v880
        %v1309 = vunpack.c.l.b16 %v881
        %v1310 = vunpack.c.h.b16 %v881
        %v1311 = vunpack.c.l.b16 %v882
        %v1312 = vunpack.c.h.b16 %v882
        %v1313 = vunpack.c.l.b16 %v883
        %v1314 = vunpack.c.h.b16 %v883
        %v1315 = vunpack.c.l.b16 %v884
        %v1316 = vunpack.c.h.b16 %v884
        %v1317 = vunpack.c.l.b16 %v885
        %v1318 = vunpack.c.h.b16 %v885
        %v1319 = vunpack.c.l.b16 %v886
        %v1320 = vunpack.c.h.b16 %v886
        %v1321 = vunpack.c.l.b16 %v887
        %v1322 = vunpack.c.h.b16 %v887
        %v1323 = vunpack.c.l.b16 %v888
        %v1324 = vunpack.c.h.b16 %v888
        %v1325 = vunpack.c.l.b16 %v889
        %v1326 = vunpack.c.h.b16 %v889
        %v1327 = vunpack.c.l.b16 %v890
        %v1328 = vunpack.c.h.b16 %v890
        %v1329 = vunpack.c.l.b16 %v891
        %v1330 = vunpack.c.h.b16 %v891
        %v1331 = vunpack.c.l.b16 %v892
        %v1332 = vunpack.c.h.b16 %v892
        %v1333 = vunpack.c.l.b16 %v893
        %v1334 = vunpack.c.h.b16 %v893
        %v1335 = vunpack.c.l.b16 %v894
        %v1336 = vunpack.c.h.b16 %v894
        %v1337 = vunpack.c.l.b16 %v895
        %v1338 = vunpack.c.h.b16 %v895
        %v1339 = vunpack.c.l.b16 %v896
        %v1340 = vunpack.c.h.b16 %v896
        %v1341 = vunpack.c.l.b16 %v897
        %v1342 = vunpack.c.h.b16 %v897
        %v1343 = vunpack.c.l.b16 %v898
        %v1344 = vunpack.c.h.b16 %v898
        %v1345 = vunpack.c.l.b16 %v899
        %v1346 = vunpack.c.h.b16 %v899
        %v1347 = vunpack.c.l.b16 %v900
        %v1348 = vunpack.c.h.b16 %v900
        %v1349 = vunpack.c.l.b16 %v901
        %v1350 = vunpack.c.h.b16 %v901
        %v1351 = vunpack.c.l.b16 %v902
        %v1352 = vunpack.c.h.b16 %v902
        %v1353 = vunpack.c.l.b16 %v903
        %v1354 = vunpack.c.h.b16 %v903
        %v1355 = vunpack.c.l.b16 %v904
        %v1356 = vunpack.c.h.b16 %v904
        %v1357 = vunpack.c.l.b16 %v905
        %v1358 = vunpack.c.h.b16 %v905
        %v1359 = vunpack.c.l.b16 %v906
        %v1360 = vunpack.c.h.b16 %v906
        %v1361 = vunpack.c.l.b16 %v907
        %v1362 = vunpack.c.h.b16 %v907
        %v1363 = vunpack.c.l.b16 %v908
        %v1364 = vunpack.c.h.b16 %v908
        %v1365 = vunpack.c.l.b16 %v909
        %v1366 = vunpack.c.h.b16 %v909
        %v1367 = vunpack.c.l.b16 %v910
        %v1368 = vunpack.c.h.b16 %v910
        %v1369 = vunpack.c.l.b16 %v911
        %v1370 = vunpack.c.h.b16 %v911
        %v1371 = vunpack.c.l.b16 %v912
        %v1372 = vunpack.c.h.b16 %v912
        %v1373 = vunpack.c.l.b16 %v913
        %v1374 = vunpack.c.h.b16 %v913
        %v1375 = vunpack.c.l.b16 %v914
        %v1376 = vunpack.c.h.b16 %v914
        %v1377 = vunpack.c.l.b16 %v915
        %v1378 = vunpack.c.h.b16 %v915
        %v1379 = vunpack.c.l.b16 %v916
        %v1380 = vunpack.c.h.b16 %v916
        %v1381 = vunpack.c.l.b16 %v917
        %v1382 = vunpack.c.h.b16 %v917
        %v1383 = vunpack.c.l.b16 %v918
        %v1384 = vunpack.c.h.b16 %v918
        %v1385 = vunpack.c.l.b16 %v919
        %v1386 = vunpack.c.h.b16 %v919
        %v1387 = vunpack.c.l.b16 %v920
        %v1388 = vunpack.c.h.b16 %v920
        %v1389 = vunpack.c.l.b16 %v921
        %v1390 = vunpack.c.h.b16 %v921
        %v1391 = vunpack.c.l.b16 %v922
        %v1392 = vunpack.c.h.b16 %v922
        %v1393 = vunpack.c.l.b16 %v923
        %v1394 = vunpack.c.h.b16 %v923
        %v1395 = vunpack.c.l.b16 %v924
        %v1396 = vunpack.c.h.b16 %v924
        %v1397 = vunpack.c.l.b16 %v925
        %v1398 = vunpack.c.h.b16 %v925
        %v1399 = vunpack.c.l.b16 %v926
        %v1400 = vunpack.c.h.b16 %v926
        %v1401 = vunpack.c.l.b16 %v927
        %v1402 = vunpack.c.h.b16 %v927
        %v1403 = vunpack.c.l.b16 %v928
        %v1404 = vunpack.c.h.b16 %v928
        %v1405 = vunpack.c.l.b16 %v929
        %v1406 = vunpack.c.h.b16 %v929
        %v1407 = vunpack.c.l.b16 %v930
        %v1408 = vunpack.c.h.b16 %v930
        %v1409 = vunpack.c.l.b16 %v931
        %v1410 = vunpack.c.h.b16 %v931
        %v1411 = vunpack.c.l.b16 %v932
        %v1412 = vunpack.c.h.b16 %v932
        %v1413 = vunpack.c.l.b16 %v933
        %v1414 = vunpack.c.h.b16 %v933
        %v1415 = vunpack.c.l.b16 %v934
        %v1416 = vunpack.c.h.b16 %v934
        %v1417 = vunpack.c.l.b16 %v935
        %v1418 = vunpack.c.h.b16 %v935
        %v1419 = vunpack.c.l.b16 %v936
        %v1420 = vunpack.c.h.b16 %v936
        %v1421 = vunpack.c.l.b16 %v937
        %v1422 = vunpack.c.h.b16 %v937
        %v1423 = vunpack.c.l.b16 %v938
        %v1424 = vunpack.c.h.b16 %v938
        %v1425 = vunpack.c.l.b16 %v939
        %v1426 = vunpack.c.h.b16 %v939
        %v1427 = vunpack.c.l.b16 %v940
        %v1428 = vunpack.c.h.b16 %v940
        %v1429 = vunpack.c.l.b16 %v941
        %v1430 = vunpack.c.h.b16 %v941
        %v1431 = vunpack.c.l.b16 %v942
        %v1432 = vunpack.c.h.b16 %v942
        %v1433 = vunpack.c.l.b16 %v943
        %v1434 = vunpack.c.h.b16 %v943
        %v1435 = vunpack.c.l.b16 %v944
        %v1436 = vunpack.c.h.b16 %v944
        %v1437 = vunpack.c.l.b16 %v945
        %v1438 = vunpack.c.h.b16 %v945
        %v1439 = vunpack.c.l.b16 %v946
        %v1440 = vunpack.c.h.b16 %v946
        %v1441 = vunpack.c.l.b16 %v947
        %v1442 = vunpack.c.h.b16 %v947
        %v1443 = vunpack.c.l.b16 %v948
        %v1444 = vunpack.c.h.b16 %v948
        %v1445 = vunpack.c.l.b16 %v949
        %v1446 = vunpack.c.h.b16 %v949
        %v1447 = vunpack.c.l.b16 %v950
        %v1448 = vunpack.c.h.b16 %v950
        %v1449 = vunpack.c.l.b16 %v951
        %v1450 = vunpack.c.h.b16 %v951
        %v1451 = vunpack.c.l.b16 %v952
        %v1452 = vunpack.c.h.b16 %v952
        %v1453 = vunpack.c.l.b16 %v953
        %v1454 = vunpack.c.h.b16 %v953
        %v1455 = vunpack.c.l.b16 %v954
        %v1456 = vunpack.c.h.b16 %v954
        %v1457 = vunpack.c.l.b16 %v955
        %v1458 = vunpack.c.h.b16 %v955
        %v1459 = vunpack.c.l.b16 %v956
        %v1460 = vunpack.c.h.b16 %v956
        %v1461 = vpack.c.b16 %v1137, %v1125
        %v1462 = vpack.c.b16 %v1138, %v1126
        %v1463 = vpack.c.b16 %v1139, %v1127
        %v1464 = vpack.c.b16 %v1140, %v1128
        %v1465 = vpack.c.b16 %v1141, %v1129
        %v1466 = vpack.c.b16 %v1142, %v1130
        %v1467 = vpack.c.b16 %v1143, %v1131
        %v1468 = vpack.c.b16 %v1144, %v1132
        %v1469 = vpack.c.b16 %v1145, %v1133
        %v1470 = vpack.c.b16 %v1146, %v1134
        %v1471 = vpack.c.b16 %v1147, %v1135
        %v1472 = vpack.c.b16 %v1148, %v1136
        %v1473 = vpack.c.b16 %v1161, %v1149
        %v1474 = vpack.c.b16 %v1162, %v1150
        %v1475 = vpack.c.b16 %v1163, %v1151
        %v1476 = vpack.c.b16 %v1164, %v1152
        %v1477 = vpack.c.b16 %v1165, %v1153
        %v1478 = vpack.c.b16 %v1166, %v1154
        %v1479 = vpack.c.b16 %v1167, %v1155
        %v1480 = vpack.c.b16 %v1168, %v1156
        %v1481 = vpack.c.b16 %v1169, %v1157
        %v1482 = vpack.c.b16 %v1170, %v1158
        %v1483 = vpack.c.b16 %v1171, %v1159
        %v1484 = vpack.c.b16 %v1172, %v1160
        %v1485 = vpack.c.b16 %v1185, %v1173
        %v1486 = vpack.c.b16 %v1186, %v1174
        %v1487 = vpack.c.b16 %v1187, %v1175
        %v1488 = vpack.c.b16 %v1188, %v1176
        %v1489 = vpack.c.b16 %v1189, %v1177
        %v1490 = vpack.c.b16 %v1190, %v1178
        %v1491 = vpack.c.b16 %v1191, %v1179
        %v1492 = vpack.c.b16 %v1192, %v1180
        %v1493 = vpack.c.b16 %v1193, %v1181
        %v1494 = vpack.c.b16 %v1194, %v1182
        %v1495 = vpack.c.b16 %v1195, %v1183
        %v1496 = vpack.c.b16 %v1196, %v1184
        %v1497 = vpack.c.b16 %v1209, %v1197
        %v1498 = vpack.c.b16 %v1210, %v1198
        %v1499 = vpack.c.b16 %v1211, %v1199
        %v1500 = vpack.c.b16 %v1212, %v1200
        %v1501 = vpack.c.b16 %v1213, %v1201
        %v1502 = vpack.c.b16 %v1214, %v1202
        %v1503 = vpack.c.b16 %v1215, %v1203
        %v1504 = vpack.c.b16 %v1216, %v1204
        %v1505 = vpack.c.b16 %v1217, %v1205
        %v1506 = vpack.c.b16 %v1218, %v1206
        %v1507 = vpack.c.b16 %v1219, %v1207
        %v1508 = vpack.c.b16 %v1220, %v1208
        %v1509 = vpack.c.b16 %v1233, %v1221
        %v1510 = vpack.c.b16 %v1234, %v1222
        %v1511 = vpack.c.b16 %v1235, %v1223
        %v1512 = vpack.c.b16 %v1236, %v1224
        %v1513 = vpack.c.b16 %v1237, %v1225
        %v1514 = vpack.c.b16 %v1238, %v1226
        %v1515 = vpack.c.b16 %v1239, %v1227
        %v1516 = vpack.c.b16 %v1240, %v1228
        %v1517 = vpack.c.b16 %v1241, %v1229
        %v1518 = vpack.c.b16 %v1242, %v1230
        %v1519 = vpack.c.b16 %v1243, %v1231
        %v1520 = vpack.c.b16 %v1244, %v1232
        %v1521 = vpack.c.b16 %v1257, %v1245
        %v1522 = vpack.c.b16 %v1258, %v1246
        %v1523 = vpack.c.b16 %v1259, %v1247
        %v1524 = vpack.c.b16 %v1260, %v1248
        %v1525 = vpack.c.b16 %v1261, %v1249
        %v1526 = vpack.c.b16 %v1262, %v1250
        %v1527 = vpack.c.b16 %v1263, %v1251
        %v1528 = vpack.c.b16 %v1264, %v1252
        %v1529 = vpack.c.b16 %v1265, %v1253
        %v1530 = vpack.c.b16 %v1266, %v1254
        %v1531 = vpack.c.b16 %v1267, %v1255
        %v1532 = vpack.c.b16 %v1268, %v1256
        %v1533 = vpack.c.b16 %v1281, %v1269
        %v1534 = vpack.c.b16 %v1282, %v1270
        %v1535 = vpack.c.b16 %v1283, %v1271
        %v1536 = vpack.c.b16 %v1284, %v1272
        %v1537 = vpack.c.b16 %v1285, %v1273
        %v1538 = vpack.c.b16 %v1286, %v1274
        %v1539 = vpack.c.b16 %v1287, %v1275
        %v1540 = vpack.c.b16 %v1288, %v1276
        %v1541 = vpack.c.b16 %v1289, %v1277
        %v1542 = vpack.c.b16 %v1290, %v1278
        %v1543 = vpack.c.b16 %v1291, %v1279
        %v1544 = vpack.c.b16 %v1292, %v1280
        %v1545 = vpack.c.b16 %v1305, %v1293
        %v1546 = vpack.c.b16 %v1306, %v1294
        %v1547 = vpack.c.b16 %v1307, %v1295
        %v1548 = vpack.c.b16 %v1308, %v1296
        %v1549 = vpack.c.b16 %v1309, %v1297
        %v1550 = vpack.c.b16 %v1310, %v1298
        %v1551 = vpack.c.b16 %v1311, %v1299
        %v1552 = vpack.c.b16 %v1312, %v1300
        %v1553 = vpack.c.b16 %v1313, %v1301
        %v1554 = vpack.c.b16 %v1314, %v1302
        %v1555 = vpack.c.b16 %v1315, %v1303
        %v1556 = vpack.c.b16 %v1316, %v1304
        %v1557 = vpack.c.b16 %v1329, %v1317
        %v1558 = vpack.c.b16 %v1330, %v1318
        %v1559 = vpack.c.b16 %v1331, %v1319
        %v1560 = vpack.c.b16 %v1332, %v1320
        %v1561 = vpack.c.b16 %v1333, %v1321
        %v1562 = vpack.c.b16 %v1334, %v1322
        %v1563 = vpack.c.b16 %v1335, %v1323
        %v1564 = vpack.c.b16 %v1336, %v1324
        %v1565 = vpack.c.b16 %v1337, %v1325
        %v1566 = vpack.c.b16 %v1338, %v1326
        %v1567 = vpack.c.b16 %v1339, %v1327
        %v1568 = vpack.c.b16 %v1340, %v1328
        %v1569 = vpack.c.b16 %v1353, %v1341
        %v1570 = vpack.c.b16 %v1354, %v1342
        %v1571 = vpack.c.b16 %v1355, %v1343
        %v1572 = vpack.c.b16 %v1356, %v1344
        %v1573 = vpack.c.b16 %v1357, %v1345
        %v1574 = vpack.c.b16 %v1358, %v1346
        %v1575 = vpack.c.b16 %v1359, %v1347
        %v1576 = vpack.c.b16 %v1360, %v1348
        %v1577 = vpack.c.b16 %v1361, %v1349
        %v1578 = vpack.c.b16 %v1362, %v1350
        %v1579 = vpack.c.b16 %v1363, %v1351
        %v1580 = vpack.c.b16 %v1364, %v1352
        %v1581 = vpack.c.b16 %v1377, %v1365
        %v1582 = vpack.c.b16 %v1378, %v1366
        %v1583 = vpack.c.b16 %v1379, %v1367
        %v1584 = vpack.c.b16 %v1380, %v1368
        %v1585 = vpack.c.b16 %v1381, %v1369
        %v1586 = vpack.c.b16 %v1382, %v1370
        %v1587 = vpack.c.b16 %v1383, %v1371
        %v1588 = vpack.c.b16 %v1384, %v1372
        %v1589 = vpack.c.b16 %v1385, %v1373
        %v1590 = vpack.c.b16 %v1386, %v1374
        %v1591 = vpack.c.b16 %v1387, %v1375
        %v1592 = vpack.c.b16 %v1388, %v1376
        %v1593 = vpack.c.b16 %v1401, %v1389
        %v1594 = vpack.c.b16 %v1402, %v1390
        %v1595 = vpack.c.b16 %v1403, %v1391
        %v1596 = vpack.c.b16 %v1404, %v1392
        %v1597 = vpack.c.b16 %v1405, %v1393
        %v1598 = vpack.c.b16 %v1406, %v1394
        %v1599 = vpack.c.b16 %v1407, %v1395
        %v1600 = vpack.c.b16 %v1408, %v1396
        %v1601 = vpack.c.b16 %v1409, %v1397
        %v1602 = vpack.c.b16 %v1410, %v1398
        %v1603 = vpack.c.b16 %v1411, %v1399
        %v1604 = vpack.c.b16 %v1412, %v1400
        %v1605 = vpack.c.b16 %v1425, %v1413
        %v1606 = vpack.c.b16 %v1426, %v1414
        %v1607 = vpack.c.b16 %v1427, %v1415
        %v1608 = vpack.c.b16 %v1428, %v1416
        %v1609 = vpack.c.b16 %v1429, %v1417
        %v1610 = vpack.c.b16 %v1430, %v1418
        %v1611 = vpack.c.b16 %v1431, %v1419
        %v1612 = vpack.c.b16 %v1432, %v1420
        %v1613 = vpack.c.b16 %v1433, %v1421
        %v1614 = vpack.c.b16 %v1434, %v1422
        %v1615 = vpack.c.b16 %v1435, %v1423
        %v1616 = vpack.c.b16 %v1436, %v1424
        %v1617 = vpack.c.b16 %v1449, %v1437
        %v1618 = vpack.c.b16 %v1450, %v1438
        %v1619 = vpack.c.b16 %v1451, %v1439
        %v1620 = vpack.c.b16 %v1452, %v1440
        %v1621 = vpack.c.b16 %v1453, %v1441
        %v1622 = vpack.c.b16 %v1454, %v1442
        %v1623 = vpack.c.b16 %v1455, %v1443
        %v1624 = vpack.c.b16 %v1456, %v1444
        %v1625 = vpack.c.b16 %v1457, %v1445
        %v1626 = vpack.c.b16 %v1458, %v1446
        %v1627 = vpack.c.b16 %v1459, %v1447
        %v1628 = vpack.c.b16 %v1460, %v1448
        %vm1785 = vcmask 736256
        %v1787 = vsel %vm1785, %v752, 0
        %vm1789 = vcmask 1044480
        %v1791 = vsel %vm1789, %v1617, 0
        %v1794 = vsel %vm1789, %v1618, 0
        %v1797 = vsel %vm1789, %v1619, 0
        %v1800 = vsel %vm1789, %v1620, 0
        %v1803 = vsel %vm1789, %v1621, 0
        %v1806 = vsel %vm1789, %v1622, 0
        %v1809 = vsel %vm1789, %v1623, 0
        %v1812 = vsel %vm1789, %v1624, 0
        %v1815 = vsel %vm1789, %v1625, 0
        %v1818 = vsel %vm1789, %v1626, 0
        %v1821 = vsel %vm1789, %v1627, 0
        %v1824 = vsel %vm1789, %v1628, 0
        %1826 = vmatprep.subr.bf16.mxu0 %v1462
        %1827 = vmatpush1.bf16.msra.mxu0 %v1461
        %1828 = vmatprep.subr.bf16.mxu0 %v1474
        %1829 = vmatpush1.bf16.msra.mxu0 %v1473
        %1830 = vmatprep.subr.bf16.mxu0 %v1486
        %1831 = vmatpush1.bf16.msra.mxu0 %v1485
        %1832 = vmatprep.subr.bf16.mxu0 %v1498
        %1833 = vmatpush1.bf16.msra.mxu0 %v1497
        %1834 = vmatprep.subr.bf16.mxu0 %v1510
        %1835 = vmatpush1.bf16.msra.mxu0 %v1509
        %1836 = vmatprep.subr.bf16.mxu0 %v1522
        %1837 = vmatpush1.bf16.msra.mxu0 %v1521
        %1838 = vmatprep.subr.bf16.mxu0 %v1534
        %1839 = vmatpush1.bf16.msra.mxu0 %v1533
        %1840 = vmatprep.subr.bf16.mxu0 %v1546
        %1841 = vmatpush1.bf16.msra.mxu0 %v1545
        %1842 = vmatprep.subr.bf16.mxu0 %v1558
        %1843 = vmatpush1.bf16.msra.mxu0 %v1557
        %1844 = vmatprep.subr.bf16.mxu0 %v1570
        %1845 = vmatpush1.bf16.msra.mxu0 %v1569
        %1846 = vmatprep.subr.bf16.mxu0 %v1582
        %1847 = vmatpush1.bf16.msra.mxu0 %v1581
        %1848 = vmatprep.subr.bf16.mxu0 %v1594
        %1849 = vmatpush1.bf16.msra.mxu0 %v1593
        %1850 = vmatprep.subr.bf16.mxu0 %v1606
        %1851 = vmatpush1.bf16.msra.mxu0 %v1605
        %1852 = vmatprep.subr.bf16.mxu0 %v1794
        %1853 = vmatpush1.bf16.msra.mxu0 %v1791
        %1854 = vmatprep.subr.bf16.mxu0 0
        %1855 = vmatpush1.bf16.msra.mxu0 0
        %1856 = vmatprep.subr.bf16.mxu0 0
        %1857 = vmatpush1.bf16.msra.mxu0 0
        %1858 = vmatprep.mubr.bf16.mxu0 %v1787
        %1859 = vmatmul.mubr.bf16.gmra.mrb[0].mxu0 %v751
        %v1860 = vpop.f32.mrb[0].mxu0
        %v1861 = vadd.f32 0.0, %v1860
        %v1862 = vpop.f32.mrb[0].mxu0
        %v1863 = vadd.f32 0.0, %v1862
        %v1864 = vpop.f32.mrb[0].mxu0
        %v1865 = vadd.f32 0.0, %v1864
        %v1866 = vpop.f32.mrb[0].mxu0
        %v1867 = vadd.f32 0.0, %v1866
        %1868 = vdwg.mxu0
        %1869 = vmatprep.subr.bf16.mxu0 %v1464
        %1870 = vmatpush1.bf16.msra.mxu0 %v1463
        %1871 = vmatprep.subr.bf16.mxu0 %v1476
        %1872 = vmatpush1.bf16.msra.mxu0 %v1475
        %1873 = vmatprep.subr.bf16.mxu0 %v1488
        %1874 = vmatpush1.bf16.msra.mxu0 %v1487
        %1875 = vmatprep.subr.bf16.mxu0 %v1500
        %1876 = vmatpush1.bf16.msra.mxu0 %v1499
        %1877 = vmatprep.subr.bf16.mxu0 %v1512
        %1878 = vmatpush1.bf16.msra.mxu0 %v1511
        %1879 = vmatprep.subr.bf16.mxu0 %v1524
        %1880 = vmatpush1.bf16.msra.mxu0 %v1523
        %1881 = vmatprep.subr.bf16.mxu0 %v1536
        %1882 = vmatpush1.bf16.msra.mxu0 %v1535
        %1883 = vmatprep.subr.bf16.mxu0 %v1548
        %1884 = vmatpush1.bf16.msra.mxu0 %v1547
        %1885 = vmatprep.subr.bf16.mxu0 %v1560
        %1886 = vmatpush1.bf16.msra.mxu0 %v1559
        %1887 = vmatprep.subr.bf16.mxu0 %v1572
        %1888 = vmatpush1.bf16.msra.mxu0 %v1571
        %1889 = vmatprep.subr.bf16.mxu0 %v1584
        %1890 = vmatpush1.bf16.msra.mxu0 %v1583
        %1891 = vmatprep.subr.bf16.mxu0 %v1596
        %1892 = vmatpush1.bf16.msra.mxu0 %v1595
        %1893 = vmatprep.subr.bf16.mxu0 %v1608
        %1894 = vmatpush1.bf16.msra.mxu0 %v1607
        %1895 = vmatprep.subr.bf16.mxu0 %v1800
        %1896 = vmatpush1.bf16.msra.mxu0 %v1797
        %1897 = vmatprep.subr.bf16.mxu0 0
        %1898 = vmatpush1.bf16.msra.mxu0 0
        %1899 = vmatprep.subr.bf16.mxu0 0
        %1900 = vmatpush1.bf16.msra.mxu0 0
        %1901 = vmatprep.mubr.bf16.mxu0 %v1787
        %1902 = vmatmul.mubr.bf16.gmra.mrb[0].mxu0 %v751
        %v1903 = vpop.f32.mrb[0].mxu0
        %v1904 = vadd.f32 0.0, %v1903
        %v1905 = vpop.f32.mrb[0].mxu0
        %v1906 = vadd.f32 0.0, %v1905
        %v1907 = vpop.f32.mrb[0].mxu0
        %v1908 = vadd.f32 0.0, %v1907
        %v1909 = vpop.f32.mrb[0].mxu0
        %v1910 = vadd.f32 0.0, %v1909
        %1911 = vdwg.mxu0
        %1912 = vmatprep.subr.bf16.mxu0 %v1466
        %1913 = vmatpush1.bf16.msra.mxu0 %v1465
        %1914 = vmatprep.subr.bf16.mxu0 %v1478
        %1915 = vmatpush1.bf16.msra.mxu0 %v1477
        %1916 = vmatprep.subr.bf16.mxu0 %v1490
        %1917 = vmatpush1.bf16.msra.mxu0 %v1489
        %1918 = vmatprep.subr.bf16.mxu0 %v1502
        %1919 = vmatpush1.bf16.msra.mxu0 %v1501
        %1920 = vmatprep.subr.bf16.mxu0 %v1514
        %1921 = vmatpush1.bf16.msra.mxu0 %v1513
        %1922 = vmatprep.subr.bf16.mxu0 %v1526
        %1923 = vmatpush1.bf16.msra.mxu0 %v1525
        %1924 = vmatprep.subr.bf16.mxu0 %v1538
        %1925 = vmatpush1.bf16.msra.mxu0 %v1537
        %1926 = vmatprep.subr.bf16.mxu0 %v1550
        %1927 = vmatpush1.bf16.msra.mxu0 %v1549
        %1928 = vmatprep.subr.bf16.mxu0 %v1562
        %1929 = vmatpush1.bf16.msra.mxu0 %v1561
        %1930 = vmatprep.subr.bf16.mxu0 %v1574
        %1931 = vmatpush1.bf16.msra.mxu0 %v1573
        %1932 = vmatprep.subr.bf16.mxu0 %v1586
        %1933 = vmatpush1.bf16.msra.mxu0 %v1585
        %1934 = vmatprep.subr.bf16.mxu0 %v1598
        %1935 = vmatpush1.bf16.msra.mxu0 %v1597
        %1936 = vmatprep.subr.bf16.mxu0 %v1610
        %1937 = vmatpush1.bf16.msra.mxu0 %v1609
        %1938 = vmatprep.subr.bf16.mxu0 %v1806
        %1939 = vmatpush1.bf16.msra.mxu0 %v1803
        %1940 = vmatprep.subr.bf16.mxu0 0
        %1941 = vmatpush1.bf16.msra.mxu0 0
        %1942 = vmatprep.subr.bf16.mxu0 0
        %1943 = vmatpush1.bf16.msra.mxu0 0
        %1944 = vmatprep.mubr.bf16.mxu0 %v1787
        %1945 = vmatmul.mubr.bf16.gmra.mrb[0].mxu0 %v751
        %v1946 = vpop.f32.mrb[0].mxu0
        %v1947 = vadd.f32 0.0, %v1946
        %v1948 = vpop.f32.mrb[0].mxu0
        %v1949 = vadd.f32 0.0, %v1948
        %v1950 = vpop.f32.mrb[0].mxu0
        %v1951 = vadd.f32 0.0, %v1950
        %v1952 = vpop.f32.mrb[0].mxu0
        %v1953 = vadd.f32 0.0, %v1952
        %1954 = vdwg.mxu0
        %1955 = vmatprep.subr.bf16.mxu0 %v1468
        %1956 = vmatpush1.bf16.msra.mxu0 %v1467
        %1957 = vmatprep.subr.bf16.mxu0 %v1480
        %1958 = vmatpush1.bf16.msra.mxu0 %v1479
        %1959 = vmatprep.subr.bf16.mxu0 %v1492
        %1960 = vmatpush1.bf16.msra.mxu0 %v1491
        %1961 = vmatprep.subr.bf16.mxu0 %v1504
        %1962 = vmatpush1.bf16.msra.mxu0 %v1503
        %1963 = vmatprep.subr.bf16.mxu0 %v1516
        %1964 = vmatpush1.bf16.msra.mxu0 %v1515
        %1965 = vmatprep.subr.bf16.mxu0 %v1528
        %1966 = vmatpush1.bf16.msra.mxu0 %v1527
        %1967 = vmatprep.subr.bf16.mxu0 %v1540
        %1968 = vmatpush1.bf16.msra.mxu0 %v1539
        %1969 = vmatprep.subr.bf16.mxu0 %v1552
        %1970 = vmatpush1.bf16.msra.mxu0 %v1551
        %1971 = vmatprep.subr.bf16.mxu0 %v1564
        %1972 = vmatpush1.bf16.msra.mxu0 %v1563
        %1973 = vmatprep.subr.bf16.mxu0 %v1576
        %1974 = vmatpush1.bf16.msra.mxu0 %v1575
        %1975 = vmatprep.subr.bf16.mxu0 %v1588
        %1976 = vmatpush1.bf16.msra.mxu0 %v1587
        %1977 = vmatprep.subr.bf16.mxu0 %v1600
        %1978 = vmatpush1.bf16.msra.mxu0 %v1599
        %1979 = vmatprep.subr.bf16.mxu0 %v1612
        %1980 = vmatpush1.bf16.msra.mxu0 %v1611
        %1981 = vmatprep.subr.bf16.mxu0 %v1812
        %1982 = vmatpush1.bf16.msra.mxu0 %v1809
        %1983 = vmatprep.subr.bf16.mxu0 0
        %1984 = vmatpush1.bf16.msra.mxu0 0
        %1985 = vmatprep.subr.bf16.mxu0 0
        %1986 = vmatpush1.bf16.msra.mxu0 0
        %1987 = vmatprep.mubr.bf16.mxu0 %v1787
        %1988 = vmatmul.mubr.bf16.gmra.mrb[0].mxu0 %v751
        %v1989 = vpop.f32.mrb[0].mxu0
        %v1990 = vadd.f32 0.0, %v1989
        %v1991 = vpop.f32.mrb[0].mxu0
        %v1992 = vadd.f32 0.0, %v1991
        %v1993 = vpop.f32.mrb[0].mxu0
        %v1994 = vadd.f32 0.0, %v1993
        %v1995 = vpop.f32.mrb[0].mxu0
        %v1996 = vadd.f32 0.0, %v1995
        %1997 = vdwg.mxu0
        %1998 = vmatprep.subr.bf16.mxu0 %v1470
        %1999 = vmatpush1.bf16.msra.mxu0 %v1469
        %2000 = vmatprep.subr.bf16.mxu0 %v1482
        %2001 = vmatpush1.bf16.msra.mxu0 %v1481
        %2002 = vmatprep.subr.bf16.mxu0 %v1494
        %2003 = vmatpush1.bf16.msra.mxu0 %v1493
        %2004 = vmatprep.subr.bf16.mxu0 %v1506
        %2005 = vmatpush1.bf16.msra.mxu0 %v1505
        %2006 = vmatprep.subr.bf16.mxu0 %v1518
        %2007 = vmatpush1.bf16.msra.mxu0 %v1517
        %2008 = vmatprep.subr.bf16.mxu0 %v1530
        %2009 = vmatpush1.bf16.msra.mxu0 %v1529
        %2010 = vmatprep.subr.bf16.mxu0 %v1542
        %2011 = vmatpush1.bf16.msra.mxu0 %v1541
        %2012 = vmatprep.subr.bf16.mxu0 %v1554
        %2013 = vmatpush1.bf16.msra.mxu0 %v1553
        %2014 = vmatprep.subr.bf16.mxu0 %v1566
        %2015 = vmatpush1.bf16.msra.mxu0 %v1565
        %2016 = vmatprep.subr.bf16.mxu0 %v1578
        %2017 = vmatpush1.bf16.msra.mxu0 %v1577
        %2018 = vmatprep.subr.bf16.mxu0 %v1590
        %2019 = vmatpush1.bf16.msra.mxu0 %v1589
        %2020 = vmatprep.subr.bf16.mxu0 %v1602
        %2021 = vmatpush1.bf16.msra.mxu0 %v1601
        %2022 = vmatprep.subr.bf16.mxu0 %v1614
        %2023 = vmatpush1.bf16.msra.mxu0 %v1613
        %2024 = vmatprep.subr.bf16.mxu0 %v1818
        %2025 = vmatpush1.bf16.msra.mxu0 %v1815
        %2026 = vmatprep.subr.bf16.mxu0 0
        %2027 = vmatpush1.bf16.msra.mxu0 0
        %2028 = vmatprep.subr.bf16.mxu0 0
        %2029 = vmatpush1.bf16.msra.mxu0 0
        %2030 = vmatprep.mubr.bf16.mxu0 %v1787
        %2031 = vmatmul.mubr.bf16.gmra.mrb[0].mxu0 %v751
        %v2032 = vpop.f32.mrb[0].mxu0
        %v2033 = vadd.f32 0.0, %v2032
        %v2034 = vpop.f32.mrb[0].mxu0
        %v2035 = vadd.f32 0.0, %v2034
        %v2036 = vpop.f32.mrb[0].mxu0
        %v2037 = vadd.f32 0.0, %v2036
        %v2038 = vpop.f32.mrb[0].mxu0
        %v2039 = vadd.f32 0.0, %v2038
        %2040 = vdwg.mxu0
        %2041 = vmatprep.subr.bf16.mxu0 %v1472
        %2042 = vmatpush1.bf16.msra.mxu0 %v1471
        %2043 = vmatprep.subr.bf16.mxu0 %v1484
        %2044 = vmatpush1.bf16.msra.mxu0 %v1483
        %2045 = vmatprep.subr.bf16.mxu0 %v1496
        %2046 = vmatpush1.bf16.msra.mxu0 %v1495
        %2047 = vmatprep.subr.bf16.mxu0 %v1508
        %2048 = vmatpush1.bf16.msra.mxu0 %v1507
        %2049 = vmatprep.subr.bf16.mxu0 %v1520
        %2050 = vmatpush1.bf16.msra.mxu0 %v1519
        %2051 = vmatprep.subr.bf16.mxu0 %v1532
        %2052 = vmatpush1.bf16.msra.mxu0 %v1531
        %2053 = vmatprep.subr.bf16.mxu0 %v1544
        %2054 = vmatpush1.bf16.msra.mxu0 %v1543
        %2055 = vmatprep.subr.bf16.mxu0 %v1556
        %2056 = vmatpush1.bf16.msra.mxu0 %v1555
        %2057 = vmatprep.subr.bf16.mxu0 %v1568
        %2058 = vmatpush1.bf16.msra.mxu0 %v1567
        %2059 = vmatprep.subr.bf16.mxu0 %v1580
        %2060 = vmatpush1.bf16.msra.mxu0 %v1579
        %2061 = vmatprep.subr.bf16.mxu0 %v1592
        %2062 = vmatpush1.bf16.msra.mxu0 %v1591
        %2063 = vmatprep.subr.bf16.mxu0 %v1604
        %2064 = vmatpush1.bf16.msra.mxu0 %v1603
        %2065 = vmatprep.subr.bf16.mxu0 %v1616
        %2066 = vmatpush1.bf16.msra.mxu0 %v1615
        %2067 = vmatprep.subr.bf16.mxu0 %v1824
        %2068 = vmatpush1.bf16.msra.mxu0 %v1821
        %2069 = vmatprep.subr.bf16.mxu0 0
        %2070 = vmatpush1.bf16.msra.mxu0 0
        %2071 = vmatprep.subr.bf16.mxu0 0
        %2072 = vmatpush1.bf16.msra.mxu0 0
        %2073 = vmatprep.mubr.bf16.mxu0 %v1787
        %2074 = vmatmul.mubr.bf16.gmra.mrb[0].mxu0 %v751
        %v2075 = vpop.f32.mrb[0].mxu0
        %v2076 = vadd.f32 0.0, %v2075
        %v2077 = vpop.f32.mrb[0].mxu0
        %v2078 = vadd.f32 0.0, %v2077
        %v2079 = vpop.f32.mrb[0].mxu0
        %v2080 = vadd.f32 0.0, %v2079
        %v2081 = vpop.f32.mrb[0].mxu0
        %v2082 = vadd.f32 0.0, %v2081
        %2083 = vdwg.mxu0
        %v2084 = vld [vmem:[%s670] sm:$0xff]
        %v2085 = vld [vmem:[%s670 + $0x8] sm:$0xff]
        %v2086 = vld [vmem:[%s670 + $0x10] sm:$0xff]
        %v2087 = vld [vmem:[%s670 + $0x18] sm:$0xff]
        %v2088 = vld [vmem:[%s670 + $0x20] sm:$0xff]
        %v2089 = vld [vmem:[%s670 + $0x28] sm:$0xff]
        %v2096 = vunpack.c.l.b16 %v2084
        %v2097 = vunpack.c.h.b16 %v2084
        %v2098 = vunpack.c.l.b16 %v2085
        %v2099 = vunpack.c.h.b16 %v2085
        %v2100 = vunpack.c.l.b16 %v2086
        %v2101 = vunpack.c.h.b16 %v2086
        %v2102 = vunpack.c.l.b16 %v2087
        %v2103 = vunpack.c.h.b16 %v2087
        %v2104 = vunpack.c.l.b16 %v2088
        %v2105 = vunpack.c.h.b16 %v2088
        %v2106 = vunpack.c.l.b16 %v2089
        %v2107 = vunpack.c.h.b16 %v2089
        %v2108 = vpack.c.b16 %v2100, %v2096
        %v2109 = vpack.c.b16 %v2101, %v2097
        %v2110 = vpack.c.b16 %v2102, %v2098
        %v2111 = vpack.c.b16 %v2103, %v2099
        %v2112 = vpack.c.b16 %v2104, %v2104
        %v2113 = vpack.c.b16 %v2105, %v2105
        %v2114 = vpack.c.b16 %v2106, %v2106
        %v2115 = vpack.c.b16 %v2107, %v2107
        %vm2120 = vcmask 195584
        %v2122 = vsel %vm2120, %v777, 0
        %v2125 = vsel %vm2120, %v778, 0
        %v2128 = vsel %vm2120, %v779, 0
        %v2131 = vsel %vm2120, %v780, 0
        %v2134 = vsel %vm2120, %v781, 0
        %v2137 = vsel %vm2120, %v782, 0
        %v2140 = vsel %vm2120, %v783, 0
        %v2143 = vsel %vm2120, %v784, 0
        %v2146 = vsel %vm2120, %v785, 0
        %v2149 = vsel %vm2120, %v786, 0
        %v2152 = vsel %vm2120, %v787, 0
        %v2155 = vsel %vm2120, %v788, 0
        %vm2157 = vcmask 1043456
        %v2159 = vsel %vm2157, %v2112, 0
        %v2162 = vsel %vm2157, %v2113, 0
        %v2165 = vsel %vm2157, %v2114, 0
        %v2168 = vsel %vm2157, %v2115, 0
        %2170 = vmatprep.subr.bf16.mxu0 %v2109
        %2171 = vmatpush1.bf16.msra.mxu0 %v2108
        %2172 = vmatprep.subr.bf16.mxu0 %v2162
        %2173 = vmatpush1.bf16.msra.mxu0 %v2159
        %2174 = vmatprep.subr.bf16.mxu0 0
        %2175 = vmatpush1.bf16.msra.mxu0 0
        %2176 = vmatprep.subr.bf16.mxu0 0
        %2177 = vmatpush1.bf16.msra.mxu0 0
        %2178 = vmatprep.subr.bf16.mxu0 0
        %2179 = vmatpush1.bf16.msra.mxu0 0
        %2180 = vmatprep.subr.bf16.mxu0 0
        %2181 = vmatpush1.bf16.msra.mxu0 0
        %2182 = vmatprep.subr.bf16.mxu0 0
        %2183 = vmatpush1.bf16.msra.mxu0 0
        %2184 = vmatprep.subr.bf16.mxu0 0
        %2185 = vmatpush1.bf16.msra.mxu0 0
        %2186 = vmatprep.subr.bf16.mxu0 0
        %2187 = vmatpush1.bf16.msra.mxu0 0
        %2188 = vmatprep.subr.bf16.mxu0 0
        %2189 = vmatpush1.bf16.msra.mxu0 0
        %2190 = vmatprep.subr.bf16.mxu0 0
        %2191 = vmatpush1.bf16.msra.mxu0 0
        %2192 = vmatprep.subr.bf16.mxu0 0
        %2193 = vmatpush1.bf16.msra.mxu0 0
        %2194 = vmatprep.subr.bf16.mxu0 0
        %2195 = vmatpush1.bf16.msra.mxu0 0
        %2196 = vmatprep.subr.bf16.mxu0 0
        %2197 = vmatpush1.bf16.msra.mxu0 0
        %2198 = vmatprep.subr.bf16.mxu0 0
        %2199 = vmatpush1.bf16.msra.mxu0 0
        %2200 = vmatprep.subr.bf16.mxu0 0
        %2201 = vmatpush1.bf16.msra.mxu0 0
        %2202 = vmatprep.mubr.bf16.mxu0 0
        %2203 = vmatmul.mubr.bf16.gmra.mrb[0].mxu0 %v2122
        %v2204 = vpop.f32.mrb[0].mxu0
        %v2205 = vadd.f32 0.0, %v2204
        %v2206 = vpop.f32.mrb[0].mxu0
        %v2207 = vadd.f32 0.0, %v2206
        %v2208 = vpop.f32.mrb[0].mxu0
        %v2209 = vadd.f32 0.0, %v2208
        %v2210 = vpop.f32.mrb[0].mxu0
        %v2211 = vadd.f32 0.0, %v2210
        %2212 = vmatprep.mubr.bf16.mxu0 0
        %2213 = vmatmul.mubr.bf16.gmra.mrb[0].mxu0 %v2125
        %v2214 = vpop.f32.mrb[0].mxu0
        %v2215 = vadd.f32 0.0, %v2214
        %v2216 = vpop.f32.mrb[0].mxu0
        %v2217 = vadd.f32 0.0, %v2216
        %v2218 = vpop.f32.mrb[0].mxu0
        %v2219 = vadd.f32 0.0, %v2218
        %v2220 = vpop.f32.mrb[0].mxu0
        %v2221 = vadd.f32 0.0, %v2220
        %2222 = vmatprep.mubr.bf16.mxu0 0
        %2223 = vmatmul.mubr.bf16.gmra.mrb[0].mxu0 %v2128
        %v2224 = vpop.f32.mrb[0].mxu0
        %v2225 = vadd.f32 0.0, %v2224
        %v2226 = vpop.f32.mrb[0].mxu0
        %v2227 = vadd.f32 0.0, %v2226
        %v2228 = vpop.f32.mrb[0].mxu0
        %v2229 = vadd.f32 0.0, %v2228
        %v2230 = vpop.f32.mrb[0].mxu0
        %v2231 = vadd.f32 0.0, %v2230
        %2232 = vmatprep.mubr.bf16.mxu0 0
        %2233 = vmatmul.mubr.bf16.gmra.mrb[0].mxu0 %v2131
        %v2234 = vpop.f32.mrb[0].mxu0
        %v2235 = vadd.f32 0.0, %v2234
        %v2236 = vpop.f32.mrb[0].mxu0
        %v2237 = vadd.f32 0.0, %v2236
        %v2238 = vpop.f32.mrb[0].mxu0
        %v2239 = vadd.f32 0.0, %v2238
        %v2240 = vpop.f32.mrb[0].mxu0
        %v2241 = vadd.f32 0.0, %v2240
        %2242 = vmatprep.mubr.bf16.mxu0 0
        %2243 = vmatmul.mubr.bf16.gmra.mrb[0].mxu0 %v2134
        %v2244 = vpop.f32.mrb[0].mxu0
        %v2245 = vadd.f32 0.0, %v2244
        %v2246 = vpop.f32.mrb[0].mxu0
        %v2247 = vadd.f32 0.0, %v2246
        %v2248 = vpop.f32.mrb[0].mxu0
        %v2249 = vadd.f32 0.0, %v2248
        %v2250 = vpop.f32.mrb[0].mxu0
        %v2251 = vadd.f32 0.0, %v2250
        %2252 = vmatprep.mubr.bf16.mxu0 0
        %2253 = vmatmul.mubr.bf16.gmra.mrb[0].mxu0 %v2137
        %v2254 = vpop.f32.mrb[0].mxu0
        %v2255 = vadd.f32 0.0, %v2254
        %v2256 = vpop.f32.mrb[0].mxu0
        %v2257 = vadd.f32 0.0, %v2256
        %v2258 = vpop.f32.mrb[0].mxu0
        %v2259 = vadd.f32 0.0, %v2258
        %v2260 = vpop.f32.mrb[0].mxu0
        %v2261 = vadd.f32 0.0, %v2260
        %2262 = vmatprep.mubr.bf16.mxu0 0
        %2263 = vmatmul.mubr.bf16.gmra.mrb[0].mxu0 %v2140
        %v2264 = vpop.f32.mrb[0].mxu0
        %v2265 = vadd.f32 0.0, %v2264
        %v2266 = vpop.f32.mrb[0].mxu0
        %v2267 = vadd.f32 0.0, %v2266
        %v2268 = vpop.f32.mrb[0].mxu0
        %v2269 = vadd.f32 0.0, %v2268
        %v2270 = vpop.f32.mrb[0].mxu0
        %v2271 = vadd.f32 0.0, %v2270
        %2272 = vmatprep.mubr.bf16.mxu0 0
        %2273 = vmatmul.mubr.bf16.gmra.mrb[0].mxu0 %v2143
        %v2274 = vpop.f32.mrb[0].mxu0
        %v2275 = vadd.f32 0.0, %v2274
        %v2276 = vpop.f32.mrb[0].mxu0
        %v2277 = vadd.f32 0.0, %v2276
        %v2278 = vpop.f32.mrb[0].mxu0
        %v2279 = vadd.f32 0.0, %v2278
        %v2280 = vpop.f32.mrb[0].mxu0
        %v2281 = vadd.f32 0.0, %v2280
        %2282 = vmatprep.mubr.bf16.mxu0 0
        %2283 = vmatmul.mubr.bf16.gmra.mrb[0].mxu0 %v2146
        %v2284 = vpop.f32.mrb[0].mxu0
        %v2285 = vadd.f32 0.0, %v2284
        %v2286 = vpop.f32.mrb[0].mxu0
        %v2287 = vadd.f32 0.0, %v2286
        %v2288 = vpop.f32.mrb[0].mxu0
        %v2289 = vadd.f32 0.0, %v2288
        %v2290 = vpop.f32.mrb[0].mxu0
        %v2291 = vadd.f32 0.0, %v2290
        %2292 = vmatprep.mubr.bf16.mxu0 0
        %2293 = vmatmul.mubr.bf16.gmra.mrb[0].mxu0 %v2149
        %v2294 = vpop.f32.mrb[0].mxu0
        %v2295 = vadd.f32 0.0, %v2294
        %v2296 = vpop.f32.mrb[0].mxu0
        %v2297 = vadd.f32 0.0, %v2296
        %v2298 = vpop.f32.mrb[0].mxu0
        %v2299 = vadd.f32 0.0, %v2298
        %v2300 = vpop.f32.mrb[0].mxu0
        %v2301 = vadd.f32 0.0, %v2300
        %2302 = vmatprep.mubr.bf16.mxu0 0
        %2303 = vmatmul.mubr.bf16.gmra.mrb[0].mxu0 %v2152
        %v2304 = vpop.f32.mrb[0].mxu0
        %v2305 = vadd.f32 0.0, %v2304
        %v2306 = vpop.f32.mrb[0].mxu0
        %v2307 = vadd.f32 0.0, %v2306
        %v2308 = vpop.f32.mrb[0].mxu0
        %v2309 = vadd.f32 0.0, %v2308
        %v2310 = vpop.f32.mrb[0].mxu0
        %v2311 = vadd.f32 0.0, %v2310
        %2312 = vmatprep.mubr.bf16.mxu0 0
        %2313 = vmatmul.mubr.bf16.gmra.mrb[0].mxu0 %v2155
        %v2314 = vpop.f32.mrb[0].mxu0
        %v2315 = vadd.f32 0.0, %v2314
        %v2316 = vpop.f32.mrb[0].mxu0
        %v2317 = vadd.f32 0.0, %v2316
        %v2318 = vpop.f32.mrb[0].mxu0
        %v2319 = vadd.f32 0.0, %v2318
        %v2320 = vpop.f32.mrb[0].mxu0
        %v2321 = vadd.f32 0.0, %v2320
        %2322 = vdwg.mxu0
        %2323 = vmatprep.subr.bf16.mxu0 %v2111
        %2324 = vmatpush1.bf16.msra.mxu0 %v2110
        %2325 = vmatprep.subr.bf16.mxu0 %v2168
        %2326 = vmatpush1.bf16.msra.mxu0 %v2165
        %2327 = vmatprep.subr.bf16.mxu0 0
        %2328 = vmatpush1.bf16.msra.mxu0 0
        %2329 = vmatprep.subr.bf16.mxu0 0
        %2330 = vmatpush1.bf16.msra.mxu0 0
        %2331 = vmatprep.subr.bf16.mxu0 0
        %2332 = vmatpush1.bf16.msra.mxu0 0
        %2333 = vmatprep.subr.bf16.mxu0 0
        %2334 = vmatpush1.bf16.msra.mxu0 0
        %2335 = vmatprep.subr.bf16.mxu0 0
        %2336 = vmatpush1.bf16.msra.mxu0 0
        %2337 = vmatprep.subr.bf16.mxu0 0
        %2338 = vmatpush1.bf16.msra.mxu0 0
        %2339 = vmatprep.subr.bf16.mxu0 0
        %2340 = vmatpush1.bf16.msra.mxu0 0
        %2341 = vmatprep.subr.bf16.mxu0 0
        %2342 = vmatpush1.bf16.msra.mxu0 0
        %2343 = vmatprep.subr.bf16.mxu0 0
        %2344 = vmatpush1.bf16.msra.mxu0 0
        %2345 = vmatprep.subr.bf16.mxu0 0
        %2346 = vmatpush1.bf16.msra.mxu0 0
        %2347 = vmatprep.subr.bf16.mxu0 0
        %2348 = vmatpush1.bf16.msra.mxu0 0
        %2349 = vmatprep.subr.bf16.mxu0 0
        %2350 = vmatpush1.bf16.msra.mxu0 0
        %2351 = vmatprep.subr.bf16.mxu0 0
        %2352 = vmatpush1.bf16.msra.mxu0 0
        %2353 = vmatprep.subr.bf16.mxu0 0
        %2354 = vmatpush1.bf16.msra.mxu0 0
        %2355 = vmatprep.mubr.bf16.mxu0 0
        %2356 = vmatmul.mubr.bf16.gmra.mrb[0].mxu0 %v2122
        %v2357 = vpop.f32.mrb[0].mxu0
        %v2358 = vadd.f32 0.0, %v2357
        %v2359 = vpop.f32.mrb[0].mxu0
        %v2360 = vadd.f32 0.0, %v2359
        %v2361 = vpop.f32.mrb[0].mxu0
        %v2362 = vadd.f32 0.0, %v2361
        %v2363 = vpop.f32.mrb[0].mxu0
        %v2364 = vadd.f32 0.0, %v2363
        %2365 = vmatprep.mubr.bf16.mxu0 0
        %2366 = vmatmul.mubr.bf16.gmra.mrb[0].mxu0 %v2125
        %v2367 = vpop.f32.mrb[0].mxu0
        %v2368 = vadd.f32 0.0, %v2367
        %v2369 = vpop.f32.mrb[0].mxu0
        %v2370 = vadd.f32 0.0, %v2369
        %v2371 = vpop.f32.mrb[0].mxu0
        %v2372 = vadd.f32 0.0, %v2371
        %v2373 = vpop.f32.mrb[0].mxu0
        %v2374 = vadd.f32 0.0, %v2373
        %2375 = vmatprep.mubr.bf16.mxu0 0
        %2376 = vmatmul.mubr.bf16.gmra.mrb[0].mxu0 %v2128
        %v2377 = vpop.f32.mrb[0].mxu0
        %v2378 = vadd.f32 0.0, %v2377
        %v2379 = vpop.f32.mrb[0].mxu0
        %v2380 = vadd.f32 0.0, %v2379
        %v2381 = vpop.f32.mrb[0].mxu0
        %v2382 = vadd.f32 0.0, %v2381
        %v2383 = vpop.f32.mrb[0].mxu0
        %v2384 = vadd.f32 0.0, %v2383
        %2385 = vmatprep.mubr.bf16.mxu0 0
        %2386 = vmatmul.mubr.bf16.gmra.mrb[0].mxu0 %v2131
        %v2387 = vpop.f32.mrb[0].mxu0
        %v2388 = vadd.f32 0.0, %v2387
        %v2389 = vpop.f32.mrb[0].mxu0
        %v2390 = vadd.f32 0.0, %v2389
        %v2391 = vpop.f32.mrb[0].mxu0
        %v2392 = vadd.f32 0.0, %v2391
        %v2393 = vpop.f32.mrb[0].mxu0
        %v2394 = vadd.f32 0.0, %v2393
        %2395 = vmatprep.mubr.bf16.mxu0 0
        %2396 = vmatmul.mubr.bf16.gmra.mrb[0].mxu0 %v2134
        %v2397 = vpop.f32.mrb[0].mxu0
        %v2398 = vadd.f32 0.0, %v2397
        %v2399 = vpop.f32.mrb[0].mxu0
        %v2400 = vadd.f32 0.0, %v2399
        %v2401 = vpop.f32.mrb[0].mxu0
        %v2402 = vadd.f32 0.0, %v2401
        %v2403 = vpop.f32.mrb[0].mxu0
        %v2404 = vadd.f32 0.0, %v2403
        %2405 = vmatprep.mubr.bf16.mxu0 0
        %2406 = vmatmul.mubr.bf16.gmra.mrb[0].mxu0 %v2137
        %v2407 = vpop.f32.mrb[0].mxu0
        %v2408 = vadd.f32 0.0, %v2407
        %v2409 = vpop.f32.mrb[0].mxu0
        %v2410 = vadd.f32 0.0, %v2409
        %v2411 = vpop.f32.mrb[0].mxu0
        %v2412 = vadd.f32 0.0, %v2411
        %v2413 = vpop.f32.mrb[0].mxu0
        %v2414 = vadd.f32 0.0, %v2413
        %2415 = vmatprep.mubr.bf16.mxu0 0
        %2416 = vmatmul.mubr.bf16.gmra.mrb[0].mxu0 %v2140
        %v2417 = vpop.f32.mrb[0].mxu0
        %v2418 = vadd.f32 0.0, %v2417
        %v2419 = vpop.f32.mrb[0].mxu0
        %v2420 = vadd.f32 0.0, %v2419
        %v2421 = vpop.f32.mrb[0].mxu0
        %v2422 = vadd.f32 0.0, %v2421
        %v2423 = vpop.f32.mrb[0].mxu0
        %v2424 = vadd.f32 0.0, %v2423
        %2425 = vmatprep.mubr.bf16.mxu0 0
        %2426 = vmatmul.mubr.bf16.gmra.mrb[0].mxu0 %v2143
        %v2427 = vpop.f32.mrb[0].mxu0
        %v2428 = vadd.f32 0.0, %v2427
        %v2429 = vpop.f32.mrb[0].mxu0
        %v2430 = vadd.f32 0.0, %v2429
        %v2431 = vpop.f32.mrb[0].mxu0
        %v2432 = vadd.f32 0.0, %v2431
        %v2433 = vpop.f32.mrb[0].mxu0
        %v2434 = vadd.f32 0.0, %v2433
        %2435 = vmatprep.mubr.bf16.mxu0 0
        %2436 = vmatmul.mubr.bf16.gmra.mrb[0].mxu0 %v2146
        %v2437 = vpop.f32.mrb[0].mxu0
        %v2438 = vadd.f32 0.0, %v2437
        %v2439 = vpop.f32.mrb[0].mxu0
        %v2440 = vadd.f32 0.0, %v2439
        %v2441 = vpop.f32.mrb[0].mxu0
        %v2442 = vadd.f32 0.0, %v2441
        %v2443 = vpop.f32.mrb[0].mxu0
        %v2444 = vadd.f32 0.0, %v2443
        %2445 = vmatprep.mubr.bf16.mxu0 0
        %2446 = vmatmul.mubr.bf16.gmra.mrb[0].mxu0 %v2149
        %v2447 = vpop.f32.mrb[0].mxu0
        %v2448 = vadd.f32 0.0, %v2447
        %v2449 = vpop.f32.mrb[0].mxu0
        %v2450 = vadd.f32 0.0, %v2449
        %v2451 = vpop.f32.mrb[0].mxu0
        %v2452 = vadd.f32 0.0, %v2451
        %v2453 = vpop.f32.mrb[0].mxu0
        %v2454 = vadd.f32 0.0, %v2453
        %2455 = vmatprep.mubr.bf16.mxu0 0
        %2456 = vmatmul.mubr.bf16.gmra.mrb[0].mxu0 %v2152
        %v2457 = vpop.f32.mrb[0].mxu0
        %v2458 = vadd.f32 0.0, %v2457
        %v2459 = vpop.f32.mrb[0].mxu0
        %v2460 = vadd.f32 0.0, %v2459
        %v2461 = vpop.f32.mrb[0].mxu0
        %v2462 = vadd.f32 0.0, %v2461
        %v2463 = vpop.f32.mrb[0].mxu0
        %v2464 = vadd.f32 0.0, %v2463
        %2465 = vmatprep.mubr.bf16.mxu0 0
        %2466 = vmatmul.mubr.bf16.gmra.mrb[0].mxu0 %v2155
        %v2467 = vpop.f32.mrb[0].mxu0
        %v2468 = vadd.f32 0.0, %v2467
        %v2469 = vpop.f32.mrb[0].mxu0
        %v2470 = vadd.f32 0.0, %v2469
        %v2471 = vpop.f32.mrb[0].mxu0
        %v2472 = vadd.f32 0.0, %v2471
        %v2473 = vpop.f32.mrb[0].mxu0
        %v2474 = vadd.f32 0.0, %v2473
        %2475 = vdwg.mxu0
        %v2476 = vld [vmem:[%s724] sm:$0xf]
        %v2477 = vld [vmem:[%s724 + $0x4] sm:$0xf]
        %v2478 = vld [vmem:[%s724 + $0x8] sm:$0xf]
        %v2479 = vld [vmem:[%s724 + $0xc] sm:$0xf]
        %v2480 = vld [vmem:[%s724 + $0x10] sm:$0xf]
        %v2481 = vld [vmem:[%s724 + $0x14] sm:$0xf]
        %v2482 = vld [vmem:[%s724 + $0x18] sm:$0xf]
        %v2483 = vld [vmem:[%s724 + $0x1c] sm:$0xf]
        %v2484 = vld [vmem:[%s724 + $0x20] sm:$0xf]
        %v2485 = vld [vmem:[%s724 + $0x24] sm:$0xf]
        %v2486 = vld [vmem:[%s724 + $0x28] sm:$0xf]
        %v2487 = vld [vmem:[%s724 + $0x2c] sm:$0xf]
        %v2488 = vld [vmem:[%s724 + $0x30] sm:$0xf]
        %v2489 = vld [vmem:[%s724 + $0x34] sm:$0xf]
        %v2490 = vld [vmem:[%s724 + $0x38] sm:$0xf]
        %v2491 = vld [vmem:[%s724 + $0x3c] sm:$0xf]
        %v2492 = vld [vmem:[%s724 + $0x40] sm:$0xf]
        %v2493 = vld [vmem:[%s724 + $0x44] sm:$0xf]
        %v2494 = vld [vmem:[%s724 + $0x48] sm:$0xf]
        %v2495 = vld [vmem:[%s724 + $0x4c] sm:$0xf]
        %v2496 = vld [vmem:[%s724 + $0x50] sm:$0xf]
        %v2497 = vld [vmem:[%s724 + $0x54] sm:$0xf]
        %v2498 = vld [vmem:[%s724 + $0x58] sm:$0xf]
        %v2499 = vld [vmem:[%s724 + $0x5c] sm:$0xf]
        %v2500 = vld [vmem:[%s724 + $0x60] sm:$0xf]
        %v2501 = vld [vmem:[%s724 + $0x64] sm:$0xf]
        %v2502 = vld [vmem:[%s724 + $0x68] sm:$0xf]
        %v2503 = vld [vmem:[%s724 + $0x6c] sm:$0xf]
        %v2504 = vld [vmem:[%s724 + $0x70] sm:$0xf]
        %v2505 = vld [vmem:[%s724 + $0x74] sm:$0xf]
        %v2506 = vld [vmem:[%s724 + $0x78] sm:$0xf]
        %v2507 = vld [vmem:[%s724 + $0x7c] sm:$0xf]
        %v2508 = vld [vmem:[%s724 + $0x80] sm:$0xf]
        %v2509 = vld [vmem:[%s724 + $0x84] sm:$0xf]
        %v2510 = vld [vmem:[%s724 + $0x88] sm:$0xf]
        %v2511 = vld [vmem:[%s724 + $0x8c] sm:$0xf]
        %v2512 = vld [vmem:[%s724 + $0x90] sm:$0xf]
        %v2513 = vld [vmem:[%s724 + $0x94] sm:$0xf]
        %v2514 = vld [vmem:[%s724 + $0x98] sm:$0xf]
        %v2515 = vld [vmem:[%s724 + $0x9c] sm:$0xf]
        %v2516 = vld [vmem:[%s724 + $0xa0] sm:$0xf]
        %v2517 = vld [vmem:[%s724 + $0xa4] sm:$0xf]
        %v2518 = vld [vmem:[%s724 + $0xa8] sm:$0xf]
        %v2519 = vld [vmem:[%s724 + $0xac] sm:$0xf]
        %v2520 = vld [vmem:[%s724 + $0xb0] sm:$0xf]
        %v2521 = vld [vmem:[%s724 + $0xb4] sm:$0xf]
        %v2522 = vld [vmem:[%s724 + $0xb8] sm:$0xf]
        %v2523 = vld [vmem:[%s724 + $0xbc] sm:$0xf]
        %v2524 = vld [vmem:[%s724 + $0xc0] sm:$0xf]
        %v2525 = vld [vmem:[%s724 + $0xc4] sm:$0xf]
        %v2526 = vld [vmem:[%s724 + $0xc8] sm:$0xf]
        %v2527 = vld [vmem:[%s724 + $0xcc] sm:$0xf]
        %v2528 = vld [vmem:[%s724 + $0xd0] sm:$0xf]
        %v2529 = vld [vmem:[%s724 + $0xd4] sm:$0xf]
        %v2530 = vld [vmem:[%s724 + $0xd8] sm:$0xf]
        %v2531 = vld [vmem:[%s724 + $0xdc] sm:$0xf]
        %v2532 = vld [vmem:[%s724 + $0xe0] sm:$0xf]
        %v2533 = vld [vmem:[%s724 + $0xe4] sm:$0xf]
        %v2534 = vld [vmem:[%s724 + $0xe8] sm:$0xf]
        %v2535 = vld [vmem:[%s724 + $0xec] sm:$0xf]
        %v2536 = vld [vmem:[%s724 + $0xf0] sm:$0xf]
        %v2537 = vld [vmem:[%s724 + $0xf4] sm:$0xf]
        %v2538 = vld [vmem:[%s724 + $0xf8] sm:$0xf]
        %v2539 = vld [vmem:[%s724 + $0xfc] sm:$0xf]
        %v2540 = vmul.f32 %v2205, %v1861
        %v2541 = vmul.f32 %v2207, %v1863
        %v2542 = vmul.f32 %v2358, %v1904
        %v2543 = vmul.f32 %v2360, %v1906
        %v2544 = vmul.f32 %v2209, %v1865
        %v2545 = vmul.f32 %v2211, %v1867
        %v2546 = vmul.f32 %v2362, %v1908
        %v2547 = vmul.f32 %v2364, %v1910
        %v2548 = vmul.f32 %v2215, %v1947
        %v2549 = vmul.f32 %v2217, %v1949
        %v2550 = vmul.f32 %v2368, %v1990
        %v2551 = vmul.f32 %v2370, %v1992
        %v2552 = vmul.f32 %v2219, %v1951
        %v2553 = vmul.f32 %v2221, %v1953
        %v2554 = vmul.f32 %v2372, %v1994
        %v2555 = vmul.f32 %v2374, %v1996
        %v2556 = vadd.f32 %v2540, %v2548
        %v2557 = vadd.f32 %v2541, %v2549
        %v2558 = vadd.f32 %v2542, %v2550
        %v2559 = vadd.f32 %v2543, %v2551
        %v2560 = vadd.f32 %v2544, %v2552
        %v2561 = vadd.f32 %v2545, %v2553
        %v2562 = vadd.f32 %v2546, %v2554
        %v2563 = vadd.f32 %v2547, %v2555
        %v2564 = vmul.f32 %v2225, %v2033
        %v2565 = vmul.f32 %v2227, %v2035
        %v2566 = vmul.f32 %v2378, %v2076
        %v2567 = vmul.f32 %v2380, %v2078
        %v2568 = vmul.f32 %v2229, %v2037
        %v2569 = vmul.f32 %v2231, %v2039
        %v2570 = vmul.f32 %v2382, %v2080
        %v2571 = vmul.f32 %v2384, %v2082
        %v2572 = vadd.f32 %v2556, %v2564
        %v2573 = vadd.f32 %v2557, %v2565
        %v2574 = vadd.f32 %v2558, %v2566
        %v2575 = vadd.f32 %v2559, %v2567
        %v2576 = vadd.f32 %v2560, %v2568
        %v2577 = vadd.f32 %v2561, %v2569
        %v2578 = vadd.f32 %v2562, %v2570
        %v2579 = vadd.f32 %v2563, %v2571
        %v2580 = vadd.f32 %v2572, %v2235
        %v2581 = vadd.f32 %v2573, %v2237
        %v2582 = vadd.f32 %v2574, %v2388
        %v2583 = vadd.f32 %v2575, %v2390
        %v2584 = vadd.f32 %v2576, %v2239
        %v2585 = vadd.f32 %v2577, %v2241
        %v2586 = vadd.f32 %v2578, %v2392
        %v2587 = vadd.f32 %v2579, %v2394
        %v2588 = vmul.f32 %v2580, 1000.0
        %v2589 = vmul.f32 %v2581, 1000.0
        %v2590 = vmul.f32 %v2582, 1000.0
        %v2591 = vmul.f32 %v2583, 1000.0
        %v2592 = vmul.f32 %v2584, 1000.0
        %v2593 = vmul.f32 %v2585, 1000.0
        %v2594 = vmul.f32 %v2586, 1000.0
        %v2595 = vmul.f32 %v2587, 1000.0
        %2596 = vst [vmem:[%s704] sm:$0xff] %v2588
        %2597 = vst [vmem:[%s704 + $0x8] sm:$0xff] %v2589
        %2598 = vst [vmem:[%s704 + $0x10] sm:$0xff] %v2590
        %2599 = vst [vmem:[%s704 + $0x18] sm:$0xff] %v2591
        %2600 = vst [vmem:[%s704 + $0x20] sm:$0xff] %v2592
        %2601 = vst [vmem:[%s704 + $0x28] sm:$0xff] %v2593
        %2602 = vst [vmem:[%s704 + $0x30] sm:$0xff] %v2594
        %2603 = vst [vmem:[%s704 + $0x38] sm:$0xff] %v2595
        %v2604 = vld [vmem:[#allocation2] sm:$0xff]
        %v2605 = vld [vmem:[#allocation2 + $0x8] sm:$0xff]
        %v2606 = vpack.c.bf16 %v2592, %v2588
        %v2607 = vpack.c.bf16 %v2593, %v2589
        %v2608 = vpack.c.bf16 %v2594, %v2590
        %v2609 = vpack.c.bf16 %v2595, %v2591
        %v2674 = vunpack.c.l.b16 %v2476
        %v2675 = vunpack.c.l.b16 %v2477
        %v2676 = vunpack.c.l.b16 %v2478
        %v2677 = vunpack.c.l.b16 %v2479
        %v2678 = vunpack.c.l.b16 %v2480
        %v2679 = vunpack.c.l.b16 %v2481
        %v2680 = vunpack.c.l.b16 %v2482
        %v2681 = vunpack.c.l.b16 %v2483
        %v2682 = vunpack.c.l.b16 %v2484
        %v2683 = vunpack.c.l.b16 %v2485
        %v2684 = vunpack.c.l.b16 %v2486
        %v2685 = vunpack.c.l.b16 %v2487
        %v2686 = vunpack.c.l.b16 %v2488
        %v2687 = vunpack.c.l.b16 %v2489
        %v2688 = vunpack.c.l.b16 %v2490
        %v2689 = vunpack.c.l.b16 %v2491
        %v2690 = vunpack.c.l.b16 %v2492
        %v2691 = vunpack.c.l.b16 %v2493
        %v2692 = vunpack.c.l.b16 %v2494
        %v2693 = vunpack.c.l.b16 %v2495
        %v2694 = vunpack.c.l.b16 %v2496
        %v2695 = vunpack.c.l.b16 %v2497
        %v2696 = vunpack.c.l.b16 %v2498
        %v2697 = vunpack.c.l.b16 %v2499
        %v2698 = vunpack.c.l.b16 %v2500
        %v2699 = vunpack.c.l.b16 %v2501
        %v2700 = vunpack.c.l.b16 %v2502
        %v2701 = vunpack.c.l.b16 %v2503
        %v2702 = vunpack.c.l.b16 %v2504
        %v2703 = vunpack.c.l.b16 %v2505
        %v2704 = vunpack.c.l.b16 %v2506
        %v2705 = vunpack.c.l.b16 %v2507
        %v2706 = vunpack.c.l.b16 %v2508
        %v2707 = vunpack.c.l.b16 %v2509
        %v2708 = vunpack.c.l.b16 %v2510
        %v2709 = vunpack.c.l.b16 %v2511
        %v2710 = vunpack.c.l.b16 %v2512
        %v2711 = vunpack.c.l.b16 %v2513
        %v2712 = vunpack.c.l.b16 %v2514
        %v2713 = vunpack.c.l.b16 %v2515
        %v2714 = vunpack.c.l.b16 %v2516
        %v2715 = vunpack.c.l.b16 %v2517
        %v2716 = vunpack.c.l.b16 %v2518
        %v2717 = vunpack.c.l.b16 %v2519
        %v2718 = vunpack.c.l.b16 %v2520
        %v2719 = vunpack.c.l.b16 %v2521
        %v2720 = vunpack.c.l.b16 %v2522
        %v2721 = vunpack.c.l.b16 %v2523
        %v2722 = vunpack.c.l.b16 %v2524
        %v2723 = vunpack.c.l.b16 %v2525
        %v2724 = vunpack.c.l.b16 %v2526
        %v2725 = vunpack.c.l.b16 %v2527
        %v2726 = vunpack.c.l.b16 %v2528
        %v2727 = vunpack.c.l.b16 %v2529
        %v2728 = vunpack.c.l.b16 %v2530
        %v2729 = vunpack.c.l.b16 %v2531
        %v2730 = vunpack.c.l.b16 %v2532
        %v2731 = vunpack.c.l.b16 %v2533
        %v2732 = vunpack.c.l.b16 %v2534
        %v2733 = vunpack.c.l.b16 %v2535
        %v2734 = vunpack.c.l.b16 %v2536
        %v2735 = vunpack.c.l.b16 %v2537
        %v2736 = vunpack.c.l.b16 %v2538
        %v2737 = vunpack.c.l.b16 %v2539
        %v2738 = vpack.c.b16 %v2675, %v2674
        %v2739 = vpack.c.b16 %v2677, %v2676
        %v2740 = vpack.c.b16 %v2679, %v2678
        %v2741 = vpack.c.b16 %v2681, %v2680
        %v2742 = vpack.c.b16 %v2683, %v2682
        %v2743 = vpack.c.b16 %v2685, %v2684
        %v2744 = vpack.c.b16 %v2687, %v2686
        %v2745 = vpack.c.b16 %v2689, %v2688
        %v2746 = vpack.c.b16 %v2691, %v2690
        %v2747 = vpack.c.b16 %v2693, %v2692
        %v2748 = vpack.c.b16 %v2695, %v2694
        %v2749 = vpack.c.b16 %v2697, %v2696
        %v2750 = vpack.c.b16 %v2699, %v2698
        %v2751 = vpack.c.b16 %v2701, %v2700
        %v2752 = vpack.c.b16 %v2703, %v2702
        %v2753 = vpack.c.b16 %v2705, %v2704
        %v2754 = vpack.c.b16 %v2707, %v2706
        %v2755 = vpack.c.b16 %v2709, %v2708
        %v2756 = vpack.c.b16 %v2711, %v2710
        %v2757 = vpack.c.b16 %v2713, %v2712
        %v2758 = vpack.c.b16 %v2715, %v2714
        %v2759 = vpack.c.b16 %v2717, %v2716
        %v2760 = vpack.c.b16 %v2719, %v2718
        %v2761 = vpack.c.b16 %v2721, %v2720
        %v2762 = vpack.c.b16 %v2723, %v2722
        %v2763 = vpack.c.b16 %v2725, %v2724
        %v2764 = vpack.c.b16 %v2727, %v2726
        %v2765 = vpack.c.b16 %v2729, %v2728
        %v2766 = vpack.c.b16 %v2731, %v2730
        %v2767 = vpack.c.b16 %v2733, %v2732
        %v2768 = vpack.c.b16 %v2735, %v2734
        %v2769 = vpack.c.b16 %v2737, %v2736
        %2802 = vmatprep.subr.bf16.mxu0 0
        %2803 = vmatpush1.bf16.msra.mxu0 %v2738
        %2804 = vmatprep.subr.bf16.mxu0 0
        %2805 = vmatpush1.bf16.msra.mxu0 %v2739
        %2806 = vmatprep.subr.bf16.mxu0 0
        %2807 = vmatpush1.bf16.msra.mxu0 %v2740
        %2808 = vmatprep.subr.bf16.mxu0 0
        %2809 = vmatpush1.bf16.msra.mxu0 %v2741
        %2810 = vmatprep.subr.bf16.mxu0 0
        %2811 = vmatpush1.bf16.msra.mxu0 %v2742
        %2812 = vmatprep.subr.bf16.mxu0 0
        %2813 = vmatpush1.bf16.msra.mxu0 %v2743
        %2814 = vmatprep.subr.bf16.mxu0 0
        %2815 = vmatpush1.bf16.msra.mxu0 %v2744
        %2816 = vmatprep.subr.bf16.mxu0 0
        %2817 = vmatpush1.bf16.msra.mxu0 %v2745
        %2818 = vmatprep.subr.bf16.mxu0 0
        %2819 = vmatpush1.bf16.msra.mxu0 %v2746
        %2820 = vmatprep.subr.bf16.mxu0 0
        %2821 = vmatpush1.bf16.msra.mxu0 %v2747
        %2822 = vmatprep.subr.bf16.mxu0 0
        %2823 = vmatpush1.bf16.msra.mxu0 %v2748
        %2824 = vmatprep.subr.bf16.mxu0 0
        %2825 = vmatpush1.bf16.msra.mxu0 %v2749
        %2826 = vmatprep.subr.bf16.mxu0 0
        %2827 = vmatpush1.bf16.msra.mxu0 %v2750
        %2828 = vmatprep.subr.bf16.mxu0 0
        %2829 = vmatpush1.bf16.msra.mxu0 %v2751
        %2830 = vmatprep.subr.bf16.mxu0 0
        %2831 = vmatpush1.bf16.msra.mxu0 %v2752
        %2832 = vmatprep.subr.bf16.mxu0 0
        %2833 = vmatpush1.bf16.msra.mxu0 %v2753
        %2834 = vmatprep.mubr.bf16.mxu0 %v2607
        %2835 = vmatmul.mubr.bf16.gmra.mrb[0].mxu0 %v2606
        %v2836 = vpop.f32.mrb[0].mxu0
        %v2837 = vadd.f32 0.0, %v2836
        %v2838 = vpop.f32.mrb[0].mxu0
        %v2839 = vpop.f32.mrb[0].mxu0
        %v2840 = vadd.f32 0.0, %v2839
        %v2841 = vpop.f32.mrb[0].mxu0
        %2842 = vdwg.mxu0
        %2843 = vmatprep.subr.bf16.mxu0 0
        %2844 = vmatpush1.bf16.msra.mxu0 %v2754
        %2845 = vmatprep.subr.bf16.mxu0 0
        %2846 = vmatpush1.bf16.msra.mxu0 %v2755
        %2847 = vmatprep.subr.bf16.mxu0 0
        %2848 = vmatpush1.bf16.msra.mxu0 %v2756
        %2849 = vmatprep.subr.bf16.mxu0 0
        %2850 = vmatpush1.bf16.msra.mxu0 %v2757
        %2851 = vmatprep.subr.bf16.mxu0 0
        %2852 = vmatpush1.bf16.msra.mxu0 %v2758
        %2853 = vmatprep.subr.bf16.mxu0 0
        %2854 = vmatpush1.bf16.msra.mxu0 %v2759
        %2855 = vmatprep.subr.bf16.mxu0 0
        %2856 = vmatpush1.bf16.msra.mxu0 %v2760
        %2857 = vmatprep.subr.bf16.mxu0 0
        %2858 = vmatpush1.bf16.msra.mxu0 %v2761
        %2859 = vmatprep.subr.bf16.mxu0 0
        %2860 = vmatpush1.bf16.msra.mxu0 %v2762
        %2861 = vmatprep.subr.bf16.mxu0 0
        %2862 = vmatpush1.bf16.msra.mxu0 %v2763
        %2863 = vmatprep.subr.bf16.mxu0 0
        %2864 = vmatpush1.bf16.msra.mxu0 %v2764
        %2865 = vmatprep.subr.bf16.mxu0 0
        %2866 = vmatpush1.bf16.msra.mxu0 %v2765
        %2867 = vmatprep.subr.bf16.mxu0 0
        %2868 = vmatpush1.bf16.msra.mxu0 %v2766
        %2869 = vmatprep.subr.bf16.mxu0 0
        %2870 = vmatpush1.bf16.msra.mxu0 %v2767
        %2871 = vmatprep.subr.bf16.mxu0 0
        %2872 = vmatpush1.bf16.msra.mxu0 %v2768
        %2873 = vmatprep.subr.bf16.mxu0 0
        %2874 = vmatpush1.bf16.msra.mxu0 %v2769
        %2875 = vmatprep.mubr.bf16.mxu0 %v2609
        %2876 = vmatmul.mubr.bf16.gmra.mrb[0].mxu0 %v2608
        %v2877 = vpop.f32.mrb[0].mxu0
        %v2878 = vadd.f32 %v2837, %v2877
        %v2879 = vpop.f32.mrb[0].mxu0
        %v2880 = vpop.f32.mrb[0].mxu0
        %v2881 = vadd.f32 %v2840, %v2880
        %v2882 = vpop.f32.mrb[0].mxu0
        %2883 = vdwg.mxu0
        %v2884 = vadd.f32 %v2604, %v2878
        %v2885 = vadd.f32 %v2605, %v2881
        %2886 = vst [vmem:[#allocation2] sm:$0xff] %v2884
        %2887 = vst [vmem:[#allocation2 + $0x8] sm:$0xff] %v2885
        %v2888 = vmul.f32 %v2245, %v1861
        %v2889 = vmul.f32 %v2247, %v1863
        %v2890 = vmul.f32 %v2398, %v1904
        %v2891 = vmul.f32 %v2400, %v1906
        %v2892 = vmul.f32 %v2249, %v1865
        %v2893 = vmul.f32 %v2251, %v1867
        %v2894 = vmul.f32 %v2402, %v1908
        %v2895 = vmul.f32 %v2404, %v1910
        %v2896 = vmul.f32 %v2255, %v1947
        %v2897 = vmul.f32 %v2257, %v1949
        %v2898 = vmul.f32 %v2408, %v1990
        %v2899 = vmul.f32 %v2410, %v1992
        %v2900 = vmul.f32 %v2259, %v1951
        %v2901 = vmul.f32 %v2261, %v1953
        %v2902 = vmul.f32 %v2412, %v1994
        %v2903 = vmul.f32 %v2414, %v1996
        %v2904 = vadd.f32 %v2888, %v2896
        %v2905 = vadd.f32 %v2889, %v2897
        %v2906 = vadd.f32 %v2890, %v2898
        %v2907 = vadd.f32 %v2891, %v2899
        %v2908 = vadd.f32 %v2892, %v2900
        %v2909 = vadd.f32 %v2893, %v2901
        %v2910 = vadd.f32 %v2894, %v2902
        %v2911 = vadd.f32 %v2895, %v2903
        %v2912 = vmul.f32 %v2265, %v2033
        %v2913 = vmul.f32 %v2267, %v2035
        %v2914 = vmul.f32 %v2418, %v2076
        %v2915 = vmul.f32 %v2420, %v2078
        %v2916 = vmul.f32 %v2269, %v2037
        %v2917 = vmul.f32 %v2271, %v2039
        %v2918 = vmul.f32 %v2422, %v2080
        %v2919 = vmul.f32 %v2424, %v2082
        %v2920 = vadd.f32 %v2904, %v2912
        %v2921 = vadd.f32 %v2905, %v2913
        %v2922 = vadd.f32 %v2906, %v2914
        %v2923 = vadd.f32 %v2907, %v2915
        %v2924 = vadd.f32 %v2908, %v2916
        %v2925 = vadd.f32 %v2909, %v2917
        %v2926 = vadd.f32 %v2910, %v2918
        %v2927 = vadd.f32 %v2911, %v2919
        %v2928 = vadd.f32 %v2920, %v2275
        %v2929 = vadd.f32 %v2921, %v2277
        %v2930 = vadd.f32 %v2922, %v2428
        %v2931 = vadd.f32 %v2923, %v2430
        %v2932 = vadd.f32 %v2924, %v2279
        %v2933 = vadd.f32 %v2925, %v2281
        %v2934 = vadd.f32 %v2926, %v2432
        %v2935 = vadd.f32 %v2927, %v2434
        %v2936 = vmul.f32 %v2928, 1000.0
        %v2937 = vmul.f32 %v2929, 1000.0
        %v2938 = vmul.f32 %v2930, 1000.0
        %v2939 = vmul.f32 %v2931, 1000.0
        %v2940 = vmul.f32 %v2932, 1000.0
        %v2941 = vmul.f32 %v2933, 1000.0
        %v2942 = vmul.f32 %v2934, 1000.0
        %v2943 = vmul.f32 %v2935, 1000.0
        %s2944 = scalar_lea.vmem %s704, 64 [#allocation5]
        %2945 = vst [vmem:[%s2944] sm:$0xff] %v2936
        %2946 = vst [vmem:[%s2944 + $0x8] sm:$0xff] %v2937
        %2947 = vst [vmem:[%s2944 + $0x10] sm:$0xff] %v2938
        %2948 = vst [vmem:[%s2944 + $0x18] sm:$0xff] %v2939
        %2949 = vst [vmem:[%s2944 + $0x20] sm:$0xff] %v2940
        %2950 = vst [vmem:[%s2944 + $0x28] sm:$0xff] %v2941
        %2951 = vst [vmem:[%s2944 + $0x30] sm:$0xff] %v2942
        %2952 = vst [vmem:[%s2944 + $0x38] sm:$0xff] %v2943
        %s2953 = scalar_lea.vmem [#allocation2], 16
        %v2954 = vld [vmem:[%s2953] sm:$0xff]
        %v2955 = vld [vmem:[%s2953 + $0x8] sm:$0xff]
        %v2956 = vpack.c.bf16 %v2940, %v2936
        %v2957 = vpack.c.bf16 %v2941, %v2937
        %v2958 = vpack.c.bf16 %v2942, %v2938
        %v2959 = vpack.c.bf16 %v2943, %v2939
        %2960 = vmatprep.subr.bf16.mxu0 0
        %2961 = vmatpush1.bf16.msra.mxu0 %v2738
        %2962 = vmatprep.subr.bf16.mxu0 0
        %2963 = vmatpush1.bf16.msra.mxu0 %v2739
        %2964 = vmatprep.subr.bf16.mxu0 0
        %2965 = vmatpush1.bf16.msra.mxu0 %v2740
        %2966 = vmatprep.subr.bf16.mxu0 0
        %2967 = vmatpush1.bf16.msra.mxu0 %v2741
        %2968 = vmatprep.subr.bf16.mxu0 0
        %2969 = vmatpush1.bf16.msra.mxu0 %v2742
        %2970 = vmatprep.subr.bf16.mxu0 0
        %2971 = vmatpush1.bf16.msra.mxu0 %v2743
        %2972 = vmatprep.subr.bf16.mxu0 0
        %2973 = vmatpush1.bf16.msra.mxu0 %v2744
        %2974 = vmatprep.subr.bf16.mxu0 0
        %2975 = vmatpush1.bf16.msra.mxu0 %v2745
        %2976 = vmatprep.subr.bf16.mxu0 0
        %2977 = vmatpush1.bf16.msra.mxu0 %v2746
        %2978 = vmatprep.subr.bf16.mxu0 0
        %2979 = vmatpush1.bf16.msra.mxu0 %v2747
        %2980 = vmatprep.subr.bf16.mxu0 0
        %2981 = vmatpush1.bf16.msra.mxu0 %v2748
        %2982 = vmatprep.subr.bf16.mxu0 0
        %2983 = vmatpush1.bf16.msra.mxu0 %v2749
        %2984 = vmatprep.subr.bf16.mxu0 0
        %2985 = vmatpush1.bf16.msra.mxu0 %v2750
        %2986 = vmatprep.subr.bf16.mxu0 0
        %2987 = vmatpush1.bf16.msra.mxu0 %v2751
        %2988 = vmatprep.subr.bf16.mxu0 0
        %2989 = vmatpush1.bf16.msra.mxu0 %v2752
        %2990 = vmatprep.subr.bf16.mxu0 0
        %2991 = vmatpush1.bf16.msra.mxu0 %v2753
        %2992 = vmatprep.mubr.bf16.mxu0 %v2957
        %2993 = vmatmul.mubr.bf16.gmra.mrb[0].mxu0 %v2956
        %v2994 = vpop.f32.mrb[0].mxu0
        %v2995 = vadd.f32 0.0, %v2994
        %v2996 = vpop.f32.mrb[0].mxu0
        %v2997 = vpop.f32.mrb[0].mxu0
        %v2998 = vadd.f32 0.0, %v2997
        %v2999 = vpop.f32.mrb[0].mxu0
        %3000 = vdwg.mxu0
        %3001 = vmatprep.subr.bf16.mxu0 0
        %3002 = vmatpush1.bf16.msra.mxu0 %v2754
        %3003 = vmatprep.subr.bf16.mxu0 0
        %3004 = vmatpush1.bf16.msra.mxu0 %v2755
        %3005 = vmatprep.subr.bf16.mxu0 0
        %3006 = vmatpush1.bf16.msra.mxu0 %v2756
        %3007 = vmatprep.subr.bf16.mxu0 0
        %3008 = vmatpush1.bf16.msra.mxu0 %v2757
        %3009 = vmatprep.subr.bf16.mxu0 0
        %3010 = vmatpush1.bf16.msra.mxu0 %v2758
        %3011 = vmatprep.subr.bf16.mxu0 0
        %3012 = vmatpush1.bf16.msra.mxu0 %v2759
        %3013 = vmatprep.subr.bf16.mxu0 0
        %3014 = vmatpush1.bf16.msra.mxu0 %v2760
        %3015 = vmatprep.subr.bf16.mxu0 0
        %3016 = vmatpush1.bf16.msra.mxu0 %v2761
        %3017 = vmatprep.subr.bf16.mxu0 0
        %3018 = vmatpush1.bf16.msra.mxu0 %v2762
        %3019 = vmatprep.subr.bf16.mxu0 0
        %3020 = vmatpush1.bf16.msra.mxu0 %v2763
        %3021 = vmatprep.subr.bf16.mxu0 0
        %3022 = vmatpush1.bf16.msra.mxu0 %v2764
        %3023 = vmatprep.subr.bf16.mxu0 0
        %3024 = vmatpush1.bf16.msra.mxu0 %v2765
        %3025 = vmatprep.subr.bf16.mxu0 0
        %3026 = vmatpush1.bf16.msra.mxu0 %v2766
        %3027 = vmatprep.subr.bf16.mxu0 0
        %3028 = vmatpush1.bf16.msra.mxu0 %v2767
        %3029 = vmatprep.subr.bf16.mxu0 0
        %3030 = vmatpush1.bf16.msra.mxu0 %v2768
        %3031 = vmatprep.subr.bf16.mxu0 0
        %3032 = vmatpush1.bf16.msra.mxu0 %v2769
        %3033 = vmatprep.mubr.bf16.mxu0 %v2959
        %3034 = vmatmul.mubr.bf16.gmra.mrb[0].mxu0 %v2958
        %v3035 = vpop.f32.mrb[0].mxu0
        %v3036 = vadd.f32 %v2995, %v3035
        %v3037 = vpop.f32.mrb[0].mxu0
        %v3038 = vpop.f32.mrb[0].mxu0
        %v3039 = vadd.f32 %v2998, %v3038
        %v3040 = vpop.f32.mrb[0].mxu0
        %3041 = vdwg.mxu0
        %v3042 = vadd.f32 %v2954, %v3036
        %v3043 = vadd.f32 %v2955, %v3039
        %3044 = vst [vmem:[%s2953] sm:$0xff] %v3042
        %3045 = vst [vmem:[%s2953 + $0x8] sm:$0xff] %v3043
        %v3046 = vmul.f32 %v2285, %v1861
        %v3047 = vmul.f32 %v2287, %v1863
        %v3048 = vmul.f32 %v2438, %v1904
        %v3049 = vmul.f32 %v2440, %v1906
        %v3050 = vmul.f32 %v2289, %v1865
        %v3051 = vmul.f32 %v2291, %v1867
        %v3052 = vmul.f32 %v2442, %v1908
        %v3053 = vmul.f32 %v2444, %v1910
        %v3054 = vmul.f32 %v2295, %v1947
        %v3055 = vmul.f32 %v2297, %v1949
        %v3056 = vmul.f32 %v2448, %v1990
        %v3057 = vmul.f32 %v2450, %v1992
        %v3058 = vmul.f32 %v2299, %v1951
        %v3059 = vmul.f32 %v2301, %v1953
        %v3060 = vmul.f32 %v2452, %v1994
        %v3061 = vmul.f32 %v2454, %v1996
        %v3062 = vadd.f32 %v3046, %v3054
        %v3063 = vadd.f32 %v3047, %v3055
        %v3064 = vadd.f32 %v3048, %v3056
        %v3065 = vadd.f32 %v3049, %v3057
        %v3066 = vadd.f32 %v3050, %v3058
        %v3067 = vadd.f32 %v3051, %v3059
        %v3068 = vadd.f32 %v3052, %v3060
        %v3069 = vadd.f32 %v3053, %v3061
        %v3070 = vmul.f32 %v2305, %v2033
        %v3071 = vmul.f32 %v2307, %v2035
        %v3072 = vmul.f32 %v2458, %v2076
        %v3073 = vmul.f32 %v2460, %v2078
        %v3074 = vmul.f32 %v2309, %v2037
        %v3075 = vmul.f32 %v2311, %v2039
        %v3076 = vmul.f32 %v2462, %v2080
        %v3077 = vmul.f32 %v2464, %v2082
        %v3078 = vadd.f32 %v3062, %v3070
        %v3079 = vadd.f32 %v3063, %v3071
        %v3080 = vadd.f32 %v3064, %v3072
        %v3081 = vadd.f32 %v3065, %v3073
        %v3082 = vadd.f32 %v3066, %v3074
        %v3083 = vadd.f32 %v3067, %v3075
        %v3084 = vadd.f32 %v3068, %v3076
        %v3085 = vadd.f32 %v3069, %v3077
        %v3086 = vadd.f32 %v3078, %v2315
        %v3087 = vadd.f32 %v3079, %v2317
        %v3088 = vadd.f32 %v3080, %v2468
        %v3089 = vadd.f32 %v3081, %v2470
        %v3090 = vadd.f32 %v3082, %v2319
        %v3091 = vadd.f32 %v3083, %v2321
        %v3092 = vadd.f32 %v3084, %v2472
        %v3093 = vadd.f32 %v3085, %v2474
        %v3094 = vmul.f32 %v3086, 1000.0
        %v3095 = vmul.f32 %v3087, 1000.0
        %v3096 = vmul.f32 %v3088, 1000.0
        %v3097 = vmul.f32 %v3089, 1000.0
        %v3098 = vmul.f32 %v3090, 1000.0
        %v3099 = vmul.f32 %v3091, 1000.0
        %v3100 = vmul.f32 %v3092, 1000.0
        %v3101 = vmul.f32 %v3093, 1000.0
        %s3102 = scalar_lea.vmem %s704, 128 [#allocation5]
        %3103 = vst [vmem:[%s3102] sm:$0xff] %v3094
        %3104 = vst [vmem:[%s3102 + $0x8] sm:$0xff] %v3095
        %3105 = vst [vmem:[%s3102 + $0x10] sm:$0xff] %v3096
        %3106 = vst [vmem:[%s3102 + $0x18] sm:$0xff] %v3097
        %3107 = vst [vmem:[%s3102 + $0x20] sm:$0xff] %v3098
        %3108 = vst [vmem:[%s3102 + $0x28] sm:$0xff] %v3099
        %3109 = vst [vmem:[%s3102 + $0x30] sm:$0xff] %v3100
        %3110 = vst [vmem:[%s3102 + $0x38] sm:$0xff] %v3101
        %s3111 = scalar_lea.vmem [#allocation2], 32
        %v3112 = vld [vmem:[%s3111] sm:$0xff]
        %v3113 = vld [vmem:[%s3111 + $0x8] sm:$0xff]
        %v3114 = vpack.c.bf16 %v3098, %v3094
        %v3115 = vpack.c.bf16 %v3099, %v3095
        %v3116 = vpack.c.bf16 %v3100, %v3096
        %v3117 = vpack.c.bf16 %v3101, %v3097
        %3118 = vmatprep.subr.bf16.mxu0 0
        %3119 = vmatpush1.bf16.msra.mxu0 %v2738
        %3120 = vmatprep.subr.bf16.mxu0 0
        %3121 = vmatpush1.bf16.msra.mxu0 %v2739
        %3122 = vmatprep.subr.bf16.mxu0 0
        %3123 = vmatpush1.bf16.msra.mxu0 %v2740
        %3124 = vmatprep.subr.bf16.mxu0 0
        %3125 = vmatpush1.bf16.msra.mxu0 %v2741
        %3126 = vmatprep.subr.bf16.mxu0 0
        %3127 = vmatpush1.bf16.msra.mxu0 %v2742
        %3128 = vmatprep.subr.bf16.mxu0 0
        %3129 = vmatpush1.bf16.msra.mxu0 %v2743
        %3130 = vmatprep.subr.bf16.mxu0 0
        %3131 = vmatpush1.bf16.msra.mxu0 %v2744
        %3132 = vmatprep.subr.bf16.mxu0 0
        %3133 = vmatpush1.bf16.msra.mxu0 %v2745
        %3134 = vmatprep.subr.bf16.mxu0 0
        %3135 = vmatpush1.bf16.msra.mxu0 %v2746
        %3136 = vmatprep.subr.bf16.mxu0 0
        %3137 = vmatpush1.bf16.msra.mxu0 %v2747
        %3138 = vmatprep.subr.bf16.mxu0 0
        %3139 = vmatpush1.bf16.msra.mxu0 %v2748
        %3140 = vmatprep.subr.bf16.mxu0 0
        %3141 = vmatpush1.bf16.msra.mxu0 %v2749
        %3142 = vmatprep.subr.bf16.mxu0 0
        %3143 = vmatpush1.bf16.msra.mxu0 %v2750
        %3144 = vmatprep.subr.bf16.mxu0 0
        %3145 = vmatpush1.bf16.msra.mxu0 %v2751
        %3146 = vmatprep.subr.bf16.mxu0 0
        %3147 = vmatpush1.bf16.msra.mxu0 %v2752
        %3148 = vmatprep.subr.bf16.mxu0 0
        %3149 = vmatpush1.bf16.msra.mxu0 %v2753
        %3150 = vmatprep.mubr.bf16.mxu0 %v3115
        %3151 = vmatmul.mubr.bf16.gmra.mrb[0].mxu0 %v3114
        %v3152 = vpop.f32.mrb[0].mxu0
        %v3153 = vadd.f32 0.0, %v3152
        %v3154 = vpop.f32.mrb[0].mxu0
        %v3155 = vpop.f32.mrb[0].mxu0
        %v3156 = vadd.f32 0.0, %v3155
        %v3157 = vpop.f32.mrb[0].mxu0
        %3158 = vdwg.mxu0
        %3159 = vmatprep.subr.bf16.mxu0 0
        %3160 = vmatpush1.bf16.msra.mxu0 %v2754
        %3161 = vmatprep.subr.bf16.mxu0 0
        %3162 = vmatpush1.bf16.msra.mxu0 %v2755
        %3163 = vmatprep.subr.bf16.mxu0 0
        %3164 = vmatpush1.bf16.msra.mxu0 %v2756
        %3165 = vmatprep.subr.bf16.mxu0 0
        %3166 = vmatpush1.bf16.msra.mxu0 %v2757
        %3167 = vmatprep.subr.bf16.mxu0 0
        %3168 = vmatpush1.bf16.msra.mxu0 %v2758
        %3169 = vmatprep.subr.bf16.mxu0 0
        %3170 = vmatpush1.bf16.msra.mxu0 %v2759
        %3171 = vmatprep.subr.bf16.mxu0 0
        %3172 = vmatpush1.bf16.msra.mxu0 %v2760
        %3173 = vmatprep.subr.bf16.mxu0 0
        %3174 = vmatpush1.bf16.msra.mxu0 %v2761
        %3175 = vmatprep.subr.bf16.mxu0 0
        %3176 = vmatpush1.bf16.msra.mxu0 %v2762
        %3177 = vmatprep.subr.bf16.mxu0 0
        %3178 = vmatpush1.bf16.msra.mxu0 %v2763
        %3179 = vmatprep.subr.bf16.mxu0 0
        %3180 = vmatpush1.bf16.msra.mxu0 %v2764
        %3181 = vmatprep.subr.bf16.mxu0 0
        %3182 = vmatpush1.bf16.msra.mxu0 %v2765
        %3183 = vmatprep.subr.bf16.mxu0 0
        %3184 = vmatpush1.bf16.msra.mxu0 %v2766
        %3185 = vmatprep.subr.bf16.mxu0 0
        %3186 = vmatpush1.bf16.msra.mxu0 %v2767
        %3187 = vmatprep.subr.bf16.mxu0 0
        %3188 = vmatpush1.bf16.msra.mxu0 %v2768
        %3189 = vmatprep.subr.bf16.mxu0 0
        %3190 = vmatpush1.bf16.msra.mxu0 %v2769
        %3191 = vmatprep.mubr.bf16.mxu0 %v3117
        %3192 = vmatmul.mubr.bf16.gmra.mrb[0].mxu0 %v3116
        %v3193 = vpop.f32.mrb[0].mxu0
        %v3194 = vadd.f32 %v3153, %v3193
        %v3195 = vpop.f32.mrb[0].mxu0
        %v3196 = vpop.f32.mrb[0].mxu0
        %v3197 = vadd.f32 %v3156, %v3196
        %v3198 = vpop.f32.mrb[0].mxu0
        %3199 = vdwg.mxu0
        %v3200 = vadd.f32 %v3112, %v3194
        %v3201 = vadd.f32 %v3113, %v3197
        %3202 = vst [vmem:[%s3111] sm:$0xff] %v3200
        %3203 = vst [vmem:[%s3111 + $0x8] sm:$0xff] %v3201
        %p3204 = scmp.eq.s32.totalorder %s23, 1
        // Predicated region
        $region91: #{smpl_regressor_forward.3} parent=77 // pred_check
          %p3205 = pneg %p3204
        $region92: #{smpl_regressor_forward.3} parent=77 // pred_check_branch
          %3207 = sbr.rel (%p3205) target = $region94
        $region93: #{smpl_regressor_forward.3} parent=77 // pred_region
          %v3208 = vld [vmem:[#allocation2] sm:$0xff]
          %v3209 = vld [vmem:[#allocation2 + $0x8] sm:$0xff]
          %v3210 = vld [vmem:[#allocation2 + $0x10] sm:$0xff]
          %v3211 = vld [vmem:[#allocation2 + $0x18] sm:$0xff]
          %v3212 = vld [vmem:[#allocation2 + $0x20] sm:$0xff]
          %v3213 = vld [vmem:[#allocation2 + $0x28] sm:$0xff]
          %3214 = vst [vmem:[%s735] sm:$0xff] %v3208
          %3215 = vst [vmem:[%s735 + $0x8] sm:$0xff] %v3209
          %3216 = vst [vmem:[%s735 + $0x10] sm:$0xff] %v3210
          %3217 = vst [vmem:[%s735 + $0x18] sm:$0xff] %v3211
          %3218 = vst [vmem:[%s735 + $0x20] sm:$0xff] %v3212
          %3219 = vst [vmem:[%s735 + $0x28] sm:$0xff] %v3213
        $region94: #{smpl_regressor_forward.3} parent=77 // pred_fallthru
          _
        %s3220 = sand.u32 %s174, 1
        %s3221 = sand.u32 %s174, 1
        %s3222 = smul.addr %s3221, 192
        %s3223 = scalar_lea.vmem [#allocation5], %s3222
        %p3224 = scmp.lt.s32.totalorder %s22, 1
        %s3225 = scalar_select %p3224, %s22, 1
        %s3226 = smul.addr %s3225, 6
        %s3227 = smul.addr %s3226, 8
        %s3228 = scalar_lea.vmem %s6, %s3227
        // Predicated region
        $region95: #{smpl_regressor_forward.3} parent=77 // pred_check
          %p3229 = pneg %p184
        $region96: #{smpl_regressor_forward.3} parent=77 // pred_check_branch
          %3231 = sbr.rel (%p3229) target = $region98
        $region97: #{smpl_regressor_forward.3} parent=77 // pred_region
          %s3232 = smul.u32 %s22, 2
          %s3233 = sadd.s32 %s3232, %s23
          %s3234 = smul.u32 4, %s3233
          %s3235 = smul.addr %s3234, 8
          %s3236 = scalar_lea.vmem %s5, %s3235
          // Predicated region
          $region99: #{smpl_regressor_forward.3} parent=97 // pred_check
            _
          $region100: #{smpl_regressor_forward.3} parent=97 // pred_check_branch
            %3238 = sbr.rel (0) target = $region102
          $region101: #{smpl_regressor_forward.3} parent=97 // pred_region
            // Predicated region
            $region103: #{smpl_regressor_forward.3} parent=101 // pred_check
              _
            $region104: #{smpl_regressor_forward.3} parent=101 // pred_check_branch
              %3240 = sbr.rel (0) target = $region106
            $region105: #{smpl_regressor_forward.3} parent=101 // pred_region
              loop: start=0, step=1, limit=1
              $region107: #{smpl_regressor_forward.3} parent=105 // loop_pre_header
                _
              $region108: #{smpl_regressor_forward.3} parent=105 // loop_header
                %s3242 = sphi 0, %s3246
                %p3243 = scmp.ge.s32.totalorder %s3242, 1
                %s3247 = sphi %s3223, %s3223
                %s3248 = sphi %s3236, %s3236
              $region109: #{smpl_regressor_forward.3} parent=105 // loop_header_branch
                %3245 = sbr.rel (%p3243) target = $region113
              $region110: #{smpl_regressor_forward.3} parent=105 // loop_body
                %v3249 = vld [vmem:[%s3247] sm:$0xff]
                %3250 = vst [vmem:[%s3248] sm:$0xff] %v3249
                %v3251 = vld [vmem:[%s3247 + $0x8] sm:$0xff]
                %3252 = vst [vmem:[%s3248 + $0x8] sm:$0xff] %v3251
                %v3253 = vld [vmem:[%s3247 + $0x10] sm:$0xff]
                %3254 = vst [vmem:[%s3248 + $0x10] sm:$0xff] %v3253
                %v3255 = vld [vmem:[%s3247 + $0x18] sm:$0xff]
                %3256 = vst [vmem:[%s3248 + $0x18] sm:$0xff] %v3255
                %v3257 = vld [vmem:[%s3247 + $0x20] sm:$0xff]
                %3258 = vst [vmem:[%s3248 + $0x80] sm:$0xff] %v3257
                %v3259 = vld [vmem:[%s3247 + $0x28] sm:$0xff]
                %3260 = vst [vmem:[%s3248 + $0x88] sm:$0xff] %v3259
                %v3261 = vld [vmem:[%s3247 + $0x30] sm:$0xff]
                %3262 = vst [vmem:[%s3248 + $0x90] sm:$0xff] %v3261
                %v3263 = vld [vmem:[%s3247 + $0x38] sm:$0xff]
                %3264 = vst [vmem:[%s3248 + $0x98] sm:$0xff] %v3263
                %v3265 = vld [vmem:[%s3247 + $0x40] sm:$0xff]
                %3266 = vst [vmem:[%s3248 + $0x100] sm:$0xff] %v3265
                %v3267 = vld [vmem:[%s3247 + $0x48] sm:$0xff]
                %3268 = vst [vmem:[%s3248 + $0x108] sm:$0xff] %v3267
                %v3269 = vld [vmem:[%s3247 + $0x50] sm:$0xff]
                %3270 = vst [vmem:[%s3248 + $0x110] sm:$0xff] %v3269
                %v3271 = vld [vmem:[%s3247 + $0x58] sm:$0xff]
                %3272 = vst [vmem:[%s3248 + $0x118] sm:$0xff] %v3271
                %v3273 = vld [vmem:[%s3247 + $0x60] sm:$0xff]
                %3274 = vst [vmem:[%s3248 + $0x180] sm:$0xff] %v3273
                %v3275 = vld [vmem:[%s3247 + $0x68] sm:$0xff]
                %3276 = vst [vmem:[%s3248 + $0x188] sm:$0xff] %v3275
                %v3277 = vld [vmem:[%s3247 + $0x70] sm:$0xff]
                %3278 = vst [vmem:[%s3248 + $0x190] sm:$0xff] %v3277
                %v3279 = vld [vmem:[%s3247 + $0x78] sm:$0xff]
                %3280 = vst [vmem:[%s3248 + $0x198] sm:$0xff] %v3279
                %v3281 = vld [vmem:[%s3247 + $0x80] sm:$0xff]
                %3282 = vst [vmem:[%s3248 + $0x200] sm:$0xff] %v3281
                %v3283 = vld [vmem:[%s3247 + $0x88] sm:$0xff]
                %3284 = vst [vmem:[%s3248 + $0x208] sm:$0xff] %v3283
                %v3285 = vld [vmem:[%s3247 + $0x90] sm:$0xff]
                %3286 = vst [vmem:[%s3248 + $0x210] sm:$0xff] %v3285
                %v3287 = vld [vmem:[%s3247 + $0x98] sm:$0xff]
                %3288 = vst [vmem:[%s3248 + $0x218] sm:$0xff] %v3287
                %v3289 = vld [vmem:[%s3247 + $0xa0] sm:$0xff]
                %3290 = vst [vmem:[%s3248 + $0x280] sm:$0xff] %v3289
                %v3291 = vld [vmem:[%s3247 + $0xa8] sm:$0xff]
                %3292 = vst [vmem:[%s3248 + $0x288] sm:$0xff] %v3291
                %v3293 = vld [vmem:[%s3247 + $0xb0] sm:$0xff]
                %3294 = vst [vmem:[%s3248 + $0x290] sm:$0xff] %v3293
                %v3295 = vld [vmem:[%s3247 + $0xb8] sm:$0xff]
                %3296 = vst [vmem:[%s3248 + $0x298] sm:$0xff] %v3295
              $region111: #{smpl_regressor_forward.3} parent=105 // loop_footer
                %s3246 = sadd.s32 1, %s3242
              $region112: #{smpl_regressor_forward.3} parent=105 // loop_footer_branch
                %3241 = sbr.rel target = $region108
              $region113: #{smpl_regressor_forward.3} parent=105 // loop_exit
                _
            $region106: #{smpl_regressor_forward.3} parent=101 // pred_fallthru
              _
            // Predicated region
            $region114: #{smpl_regressor_forward.3} parent=101 // pred_check
              _
            $region115: #{smpl_regressor_forward.3} parent=101 // pred_check_branch
              %3298 = sbr.rel target = $region117
            $region116: #{smpl_regressor_forward.3} parent=101 // pred_region
              _
            $region117: #{smpl_regressor_forward.3} parent=101 // pred_fallthru
              _
          $region102: #{smpl_regressor_forward.3} parent=97 // pred_fallthru
            _
          %3299 = vnop
        $region98: #{smpl_regressor_forward.3} parent=77 // pred_fallthru
          _
        // Predicated region
        $region118: #{smpl_regressor_forward.3} parent=77 // pred_check
          %p3300 = pneg %p210
        $region119: #{smpl_regressor_forward.3} parent=77 // pred_check_branch
          %3302 = sbr.rel (%p3300) target = $region121
        $region120: #{smpl_regressor_forward.3} parent=77 // pred_region
          _
        $region121: #{smpl_regressor_forward.3} parent=77 // pred_fallthru
          _
      $region78: #{smpl_regressor_forward.3} parent=5 // pred_fallthru
        _
      %p3303 = scmp.le.s32.totalorder 2, %s13
      // Predicated region
      $region122: #{smpl_regressor_forward.3} parent=5 // pred_check
        %p3304 = pneg %p3303
      $region123: #{smpl_regressor_forward.3} parent=5 // pred_check_branch
        %3306 = sbr.rel (%p3304) target = $region125
      $region124: #{smpl_regressor_forward.3} parent=5 // pred_region
        %s3307 = ssub.s32 %s13, 2
        // Predicated region
        $region126: #{smpl_regressor_forward.3} parent=124 // pred_check
          %p3308 = pneg %p190
        $region127: #{smpl_regressor_forward.3} parent=124 // pred_check_branch
          %3310 = sbr.rel (%p3308) target = $region129
        $region128: #{smpl_regressor_forward.3} parent=124 // pred_region
          %s3311 = sand.u32 %s175, 1
          %s3312 = sand.u32 %s175, 1
          %s3313 = smul.addr %s3312, 192
          %s3314 = scalar_lea.vmem [#allocation5], %s3313
        $region129: #{smpl_regressor_forward.3} parent=124 // pred_fallthru
          _
        // Predicated region
        $region130: #{smpl_regressor_forward.3} parent=124 // pred_check
          %p3315 = pneg %p216
        $region131: #{smpl_regressor_forward.3} parent=124 // pred_check_branch
          %3317 = sbr.rel (%p3315) target = $region133
        $region132: #{smpl_regressor_forward.3} parent=124 // pred_region
          %p3318 = scmp.lt.s32.totalorder %s24, 1
          %s3319 = scalar_select %p3318, %s24, 1
          %s3320 = smul.addr %s3319, 6
          %s3321 = smul.addr %s3320, 8
          %s3322 = scalar_lea.vmem %s6, %s3321
        $region133: #{smpl_regressor_forward.3} parent=124 // pred_fallthru
          _
      $region125: #{smpl_regressor_forward.3} parent=5 // pred_fallthru
        _
    $region6: #{smpl_regressor_forward.3} parent=1 // loop_footer
      %s17 = sadd.s32 1, %s13
    $region7: #{smpl_regressor_forward.3} parent=1 // loop_footer_branch
      %12 = sbr.rel target = $region3
    $region8: #{smpl_regressor_forward.3} parent=1 // loop_exit
      _

</llo_original>
